<compile_context>
chip_gen: v7x
topology: tpu7x:2x2x1
jax: 0.10.0
libtpu: 0.0.40
codegen_flags: <defaults>
</compile_context>

<pallas_src>
import functools

import jax
import jax.numpy as jnp
from jax.experimental import pallas as pl
from jax.experimental.pallas import tpu as pltpu

LANE = 128                      # TPU lane width; all matmul output dims padded to this
COMPUTE_DTYPE = jnp.bfloat16    # MXU input dtype (accumulation is always f32)
ACT_DTYPE = jnp.bfloat16        # storage dtype of conv/pool activations in HBM
_VMEM_LIMIT = 32 * 1024 * 1024  # safe on v5e/v6e (128 MiB) and v7x (64 MiB physical)


def _pick_tile(m, mult, max_tile=2048):
    """Row tile: a multiple of `mult`, <= max_tile, and giving >= 2 grid blocks
    whenever m > mult (v7x has 2 TensorCores to feed via the 'parallel' axis).
    Prefers exact divisors so the last block isn't ragged."""
    if m <= mult:
        return m
    half_cap = ((m + 1) // 2 + mult - 1) // mult * mult   # guarantees >= 2 blocks
    cap = max(mult, min(max_tile, half_cap))
    for t in range(cap, mult - 1, -mult):
        if m % t == 0:
            return t
    return cap


# ----------------------------- Pallas kernels ------------------------------ #

def _conv_relu_pool_kernel(x00_ref, x01_ref, x10_ref, x11_ref, w_ref, b_ref, o_ref):
    """Fused conv(+bias)+ReLU+2x2-maxpool on im2col pool-quad inputs.

    Each x??_ref holds the im2col rows of one (dy,dx) member of the 2x2 pooling
    window for the same set of pooled output pixels.  Since the bias is shared
    and ReLU is monotone:  max_i relu(x_i @ W + b) == relu(max_i(x_i @ W) + b).
    """
    def mm(ref):
        return jnp.dot(ref[...], w_ref[...], preferred_element_type=jnp.float32)

    pooled = jnp.maximum(jnp.maximum(mm(x00_ref), mm(x01_ref)),
                         jnp.maximum(mm(x10_ref), mm(x11_ref)))
    o_ref[...] = jnp.maximum(pooled + b_ref[...], 0.0).astype(o_ref.dtype)


def _fc_stack_kernel(x_ref, w1_ref, b1_ref, w2_ref, b2_ref, w3_ref, b3_ref,
                     o_ref, *, cdt):
    # Fused fc1 -> ReLU -> fc2 -> ReLU -> fc3; intermediates never leave VMEM.
    h = jnp.dot(x_ref[...], w1_ref[...], preferred_element_type=jnp.float32)
    h = jnp.maximum(h + b1_ref[...], 0.0)
    h = jnp.dot(h.astype(cdt), w2_ref[...], preferred_element_type=jnp.float32)
    h = jnp.maximum(h + b2_ref[...], 0.0)
    o = jnp.dot(h.astype(cdt), w3_ref[...], preferred_element_type=jnp.float32)
    o_ref[...] = (o + b3_ref[...]).astype(o_ref.dtype)


# ------------------------------ Kernel wrappers ----------------------------- #

def _pool_quad_patches(x, ksize, cin, dtype):
    """NHWC input -> four im2col patch matrices, one per (dy,dx) position of the
    2x2 pooling window.  Row r of every matrix corresponds to the same pooled
    output pixel (b, ph, pw); features are ordered (ki, kj, c) to match the
    weight-matrix layout.  Built directly in pool-quad order (no extra reorder
    pass) as plain-JAX data movement feeding the Pallas compute kernel."""
    bsz, h, w, _ = x.shape
    oh, ow = h - ksize + 1, w - ksize + 1
    ph, pw = oh // 2, ow // 2
    feats = ksize * ksize * cin
    quads = []
    for dy in range(2):
        for dx in range(2):
            cols = [x[:, dy + ki: dy + ki + 2 * ph - 1: 2,
                       dx + kj: dx + kj + 2 * pw - 1: 2, :cin]
                    for ki in range(ksize) for kj in range(ksize)]
            q = jnp.concatenate(cols, axis=-1).astype(dtype)   # (B, PH, PW, feats)
            quads.append(q.reshape(bsz * ph * pw, feats))
    return quads, ph, pw


def conv_relu_pool(x, w_mat, b_vec, *, ksize, cin):
    """nn.Conv2d(stride 1, no pad) + ReLU + nn.MaxPool2d(2,2), fused into one
    lane-dense Pallas kernel.  x is NHWC; returns (B, PH, PW, 128) in ACT_DTYPE
    (real channels first, padded lanes exactly zero)."""
    bsz = x.shape[0]
    quads, ph, pw = _pool_quad_patches(x, ksize, cin, w_mat.dtype)
    m, feats = quads[0].shape
    n = w_mat.shape[1]
    assert n % LANE == 0
    tm = _pick_tile(m, 16)               # bf16 rows pack 16/sublane-group
    row = lambda i: (i, 0)
    const = lambda i: (0, 0)
    out = pl.pallas_call(
        _conv_relu_pool_kernel,
        out_shape=jax.ShapeDtypeStruct((m, n), ACT_DTYPE),
        grid=(pl.cdiv(m, tm),),
        in_specs=[pl.BlockSpec((tm, feats), row)] * 4 + [
            pl.BlockSpec((feats, n), const),      # weight resident across grid
            pl.BlockSpec((1, n), const),          # bias resident across grid
        ],
        out_specs=pl.BlockSpec((tm, n), row),
        compiler_params=pltpu.CompilerParams(
            dimension_semantics=("parallel",),
            vmem_limit_bytes=_VMEM_LIMIT,
        ),
    )(*quads, w_mat, b_vec.reshape(1, n))
    return out.reshape(bsz, ph, pw, n)


def fc_stack(x, w1, b1, w2, b2, w3, b3):
    """Fused fc1+ReLU -> fc2+ReLU -> fc3 in a single pallas_call (weights resident)."""
    m, k = x.shape
    n1, n2, n3 = w1.shape[1], w2.shape[1], w3.shape[1]
    tm = _pick_tile(m, 16 if x.dtype == jnp.bfloat16 else 8, max_tile=1024)
    row = lambda i: (i, 0)
    const = lambda i: (0, 0)
    return pl.pallas_call(
        functools.partial(_fc_stack_kernel, cdt=x.dtype),
        out_shape=jax.ShapeDtypeStruct((m, n3), jnp.float32),
        grid=(pl.cdiv(m, tm),),
        in_specs=[
            pl.BlockSpec((tm, k), row),
            pl.BlockSpec((k, n1), const), pl.BlockSpec((1, n1), const),
            pl.BlockSpec((n1, n2), const), pl.BlockSpec((1, n2), const),
            pl.BlockSpec((n2, n3), const), pl.BlockSpec((1, n3), const),
        ],
        out_specs=pl.BlockSpec((tm, n3), row),
        compiler_params=pltpu.CompilerParams(
            dimension_semantics=("parallel",),
            vmem_limit_bytes=_VMEM_LIMIT,
        ),
    )(x, w1, b1.reshape(1, n1), w2, b2.reshape(1, n2), w3, b3.reshape(1, n3))


# ------------------------------ Parameters ---------------------------------- #

def init_params(key):
    """PyTorch-layout params, default-style init U(-1/sqrt(fan_in), 1/sqrt(fan_in))."""
    def uniform(k, shape, fan_in):
        bound = 1.0 / float(fan_in) ** 0.5
        return jax.random.uniform(k, shape, jnp.float32, -bound, bound)

    ks = jax.random.split(key, 10)
    return {
        "conv1_w": uniform(ks[0], (6, 3, 5, 5), 3 * 5 * 5),
        "conv1_b": uniform(ks[1], (6,), 3 * 5 * 5),
        "conv2_w": uniform(ks[2], (16, 6, 5, 5), 6 * 5 * 5),
        "conv2_b": uniform(ks[3], (16,), 6 * 5 * 5),
        "fc1_w": uniform(ks[4], (120, 16 * 5 * 5), 16 * 5 * 5),
        "fc1_b": uniform(ks[5], (120,), 16 * 5 * 5),
        "fc2_w": uniform(ks[6], (84, 120), 120),
        "fc2_b": uniform(ks[7], (84,), 120),
        "fc3_w": uniform(ks[8], (10, 84), 84),
        "fc3_b": uniform(ks[9], (10,), 84),
    }


def _pad_cols(m, n):
    return jnp.pad(m, ((0, 0), (0, n - m.shape[1])))


def _pad_vec(v, n):
    return jnp.pad(v, (0, n - v.shape[0]))


def prepare_params(p, cdt=COMPUTE_DTYPE):
    """One-time conversion of PyTorch-layout params into kernel-friendly,
    lane-dense matrices (done outside the jitted forward; no per-call .T)."""
    def conv_mat(w):                     # (O,C,K,K) -> (K*K*C, 128), rows in (ki,kj,c)
        o, c, k, _ = w.shape
        m = w.transpose(2, 3, 1, 0).reshape(k * k * c, o)
        return _pad_cols(m, LANE).astype(cdt)

    # fc1 consumes the (5,5,16) NHWC flatten (16 REAL channels only -> K=400).
    w1 = p["fc1_w"].reshape(120, 16, 5, 5).transpose(2, 3, 1, 0).reshape(400, 120)
    w1 = _pad_cols(w1, LANE).astype(cdt)

    w2 = _pad_cols(jnp.pad(p["fc2_w"].T, ((0, LANE - 120), (0, 0))), LANE).astype(cdt)
    w3 = _pad_cols(jnp.pad(p["fc3_w"].T, ((0, LANE - 84), (0, 0))), LANE).astype(cdt)

    return {
        "conv1_w": conv_mat(p["conv1_w"]), "conv1_b": _pad_vec(p["conv1_b"], LANE),
        "conv2_w": conv_mat(p["conv2_w"]), "conv2_b": _pad_vec(p["conv2_b"], LANE),
        "fc1_w": w1, "fc1_b": _pad_vec(p["fc1_b"], LANE),
        "fc2_w": w2, "fc2_b": _pad_vec(p["fc2_b"], LANE),
        "fc3_w": w3, "fc3_b": _pad_vec(p["fc3_b"], LANE),
    }


# --------------------------------- Forward ----------------------------------- #

def net_forward(kp, x):
    """x: (B, 3, 32, 32) float32 NCHW (PyTorch convention) -> (B, 10) float32."""
    x = jnp.transpose(x, (0, 2, 3, 1))                                     # NHWC once
    x = conv_relu_pool(x, kp["conv1_w"], kp["conv1_b"], ksize=5, cin=3)    # (B,14,14,128) bf16
    x = conv_relu_pool(x, kp["conv2_w"], kp["conv2_b"], ksize=5, cin=6)    # (B,5,5,128) bf16
    bsz = x.shape[0]
    x = x[..., :16].reshape(bsz, 16 * 5 * 5)                               # (B,400), real channels
    out = fc_stack(x, kp["fc1_w"], kp["fc1_b"], kp["fc2_w"], kp["fc2_b"],
                   kp["fc3_w"], kp["fc3_b"])                               # (B,128) f32
    return out[:, :10]                                                     # slice at the end


def net_reference(p, x, cdt=COMPUTE_DTYPE):
    """Plain-JAX reference with the same bf16-input / f32-accumulate math."""
    def conv(x_nchw, w, b):
        y = jax.lax.conv_general_dilated(
            x_nchw.astype(cdt), w.astype(cdt), (1, 1), "VALID",
            dimension_numbers=("NCHW", "OIHW", "NCHW"),
            preferred_element_type=jnp.float32)
        return jnp.maximum(y + b.reshape(1, -1, 1, 1), 0.0)

    def pool(t):
        b, c, h, w = t.shape
        return jnp.max(t.reshape(b, c, h // 2, 2, w // 2, 2), axis=(3, 5))

    x = pool(conv(x, p["conv1_w"], p["conv1_b"]))
    x = pool(conv(x, p["conv2_w"], p["conv2_b"]))
    x = x.reshape(x.shape[0], 16 * 5 * 5)
    h = jnp.maximum(jnp.dot(x.astype(cdt), p["fc1_w"].T.astype(cdt),
                            preferred_element_type=jnp.float32) + p["fc1_b"], 0.0)
    h = jnp.maximum(jnp.dot(h.astype(cdt), p["fc2_w"].T.astype(cdt),
                            preferred_element_type=jnp.float32) + p["fc2_b"], 0.0)
    return jnp.dot(h.astype(cdt), p["fc3_w"].T.astype(cdt),
                   preferred_element_type=jnp.float32) + p["fc3_b"]


if __name__ == "__main__":
    key = jax.random.PRNGKey(0)
    k_x, k_p = jax.random.split(key)
    # CIFAR-shaped input (32x32 required for the 16*5*5 flatten); small batch.
    x = jax.random.normal(k_x, (2, 3, 32, 32), dtype=jnp.float32)
    params = init_params(k_p)
    kparams = prepare_params(params)      # one-time layout/pad/cast, outside jit

    fwd = jax.jit(net_forward)
    out = jax.block_until_ready(fwd(kparams, x))

    assert out.shape == (2, 10), out.shape
    assert out.dtype == jnp.float32
    assert bool(jnp.all(jnp.isfinite(out)))

    ref = jax.block_until_ready(jax.jit(net_reference)(params, x))
    err = float(jnp.max(jnp.abs(out - ref)))
    assert err < 5e-3, f"mismatch vs reference: max abs err {err}"

    print("KERNEL_OK")
</pallas_src>

<mosaic_0001>
module attributes {stable_mosaic.version = 11 : i64} {
  func.func @_conv_relu_pool_kernel(%arg0: i32, %arg1: memref<208x75xbf16, #tpu.memory_space<vmem>>, %arg2: memref<208x75xbf16, #tpu.memory_space<vmem>>, %arg3: memref<208x75xbf16, #tpu.memory_space<vmem>>, %arg4: memref<208x75xbf16, #tpu.memory_space<vmem>>, %arg5: memref<75x128xbf16, #tpu.memory_space<vmem>>, %arg6: memref<1x128xf32, #tpu.memory_space<vmem>>, %arg7: memref<208x128xbf16, #tpu.memory_space<vmem>>) attributes {dimension_semantics = [#tpu.dimension_semantics<parallel>], iteration_bounds = array<i64: 2>, scalar_prefetch = 0 : i64, scratch_operands = 0 : i64, tpu.core_type = #tpu.core_type<tc>, window_params = [{transform_indices = @transform_0, window_bounds = array<i64: 208, 75>}, {transform_indices = @transform_1, window_bounds = array<i64: 208, 75>}, {transform_indices = @transform_2, window_bounds = array<i64: 208, 75>}, {transform_indices = @transform_3, window_bounds = array<i64: 208, 75>}, {pipeline_mode = #tpu.pipeline_mode<synchronous>, transform_indices = @transform_4, window_bounds = array<i64: 75, 128>}, {pipeline_mode = #tpu.pipeline_mode<synchronous>, transform_indices = @transform_5, window_bounds = array<i64: 1, 128>}, {transform_indices = @transform_6, window_bounds = array<i64: 208, 128>}]} {
    %c0 = arith.constant 0 : index
    %c0_0 = arith.constant 0 : index
    %0 = vector.load %arg1[%c0, %c0_0] : memref<208x75xbf16, #tpu.memory_space<vmem>>, vector<208x75xbf16>
    %c0_1 = arith.constant 0 : index
    %c0_2 = arith.constant 0 : index
    %1 = vector.load %arg5[%c0_1, %c0_2] : memref<75x128xbf16, #tpu.memory_space<vmem>>, vector<75x128xbf16>
    %cst = arith.constant dense<0.000000e+00> : vector<208x128xf32>
    %2 = tpu.matmul %0, %1, %cst {dimension_numbers = #tpu.dot_dimension_numbers<[1], [0], [0], [1], [0, 0, 1, 1], [], []>} : vector<208x75xbf16>, vector<75x128xbf16>, vector<208x128xf32> -> vector<208x128xf32>
    %c0_3 = arith.constant 0 : index
    %c0_4 = arith.constant 0 : index
    %3 = vector.load %arg2[%c0_3, %c0_4] : memref<208x75xbf16, #tpu.memory_space<vmem>>, vector<208x75xbf16>
    %c0_5 = arith.constant 0 : index
    %c0_6 = arith.constant 0 : index
    %4 = vector.load %arg5[%c0_5, %c0_6] : memref<75x128xbf16, #tpu.memory_space<vmem>>, vector<75x128xbf16>
    %cst_7 = arith.constant dense<0.000000e+00> : vector<208x128xf32>
    %5 = tpu.matmul %3, %4, %cst_7 {dimension_numbers = #tpu.dot_dimension_numbers<[1], [0], [0], [1], [0, 0, 1, 1], [], []>} : vector<208x75xbf16>, vector<75x128xbf16>, vector<208x128xf32> -> vector<208x128xf32>
    %6 = arith.maximumf %2, %5 : vector<208x128xf32>
    %c0_8 = arith.constant 0 : index
    %c0_9 = arith.constant 0 : index
    %7 = vector.load %arg3[%c0_8, %c0_9] : memref<208x75xbf16, #tpu.memory_space<vmem>>, vector<208x75xbf16>
    %c0_10 = arith.constant 0 : index
    %c0_11 = arith.constant 0 : index
    %8 = vector.load %arg5[%c0_10, %c0_11] : memref<75x128xbf16, #tpu.memory_space<vmem>>, vector<75x128xbf16>
    %cst_12 = arith.constant dense<0.000000e+00> : vector<208x128xf32>
    %9 = tpu.matmul %7, %8, %cst_12 {dimension_numbers = #tpu.dot_dimension_numbers<[1], [0], [0], [1], [0, 0, 1, 1], [], []>} : vector<208x75xbf16>, vector<75x128xbf16>, vector<208x128xf32> -> vector<208x128xf32>
    %c0_13 = arith.constant 0 : index
    %c0_14 = arith.constant 0 : index
    %10 = vector.load %arg4[%c0_13, %c0_14] : memref<208x75xbf16, #tpu.memory_space<vmem>>, vector<208x75xbf16>
    %c0_15 = arith.constant 0 : index
    %c0_16 = arith.constant 0 : index
    %11 = vector.load %arg5[%c0_15, %c0_16] : memref<75x128xbf16, #tpu.memory_space<vmem>>, vector<75x128xbf16>
    %cst_17 = arith.constant dense<0.000000e+00> : vector<208x128xf32>
    %12 = tpu.matmul %10, %11, %cst_17 {dimension_numbers = #tpu.dot_dimension_numbers<[1], [0], [0], [1], [0, 0, 1, 1], [], []>} : vector<208x75xbf16>, vector<75x128xbf16>, vector<208x128xf32> -> vector<208x128xf32>
    %13 = arith.maximumf %9, %12 : vector<208x128xf32>
    %14 = arith.maximumf %6, %13 : vector<208x128xf32>
    %c0_18 = arith.constant 0 : index
    %c0_19 = arith.constant 0 : index
    %15 = vector.load %arg6[%c0_18, %c0_19] : memref<1x128xf32, #tpu.memory_space<vmem>>, vector<1x128xf32>
    %16 = vector.broadcast %15 : vector<1x128xf32> to vector<208x128xf32>
    %17 = arith.addf %14, %16 : vector<208x128xf32>
    %cst_20 = arith.constant 0.000000e+00 : f32
    %18 = vector.broadcast %cst_20 : f32 to vector<208x128xf32>
    %19 = arith.maximumf %17, %18 : vector<208x128xf32>
    %20 = arith.truncf %19 : vector<208x128xf32> to vector<208x128xbf16>
    %c0_21 = arith.constant 0 : index
    %c0_22 = arith.constant 0 : index
    %21 = vector.load %arg7[%c0_21, %c0_22] : memref<208x128xbf16, #tpu.memory_space<vmem>>, vector<208x128xbf16>
    tpu.vector_store %arg7[%c0_21, %c0_22], %20 {strides = array<i32>} : memref<208x128xbf16, #tpu.memory_space<vmem>>, vector<208x128xbf16>,
    return
  }
  func.func @transform_0(%arg0: i32) -> (i32, i32) {
    %c0_i32 = arith.constant 0 : i32
    %c0_i32_0 = arith.constant 0 : i32
    return %arg0, %c0_i32 : i32, i32
  }
  func.func @transform_1(%arg0: i32) -> (i32, i32) {
    %c0_i32 = arith.constant 0 : i32
    %c0_i32_0 = arith.constant 0 : i32
    return %arg0, %c0_i32 : i32, i32
  }
  func.func @transform_2(%arg0: i32) -> (i32, i32) {
    %c0_i32 = arith.constant 0 : i32
    %c0_i32_0 = arith.constant 0 : i32
    return %arg0, %c0_i32 : i32, i32
  }
  func.func @transform_3(%arg0: i32) -> (i32, i32) {
    %c0_i32 = arith.constant 0 : i32
    %c0_i32_0 = arith.constant 0 : i32
    return %arg0, %c0_i32 : i32, i32
  }
  func.func @transform_4(%arg0: i32) -> (i32, i32) {
    %c0_i32 = arith.constant 0 : i32
    %c0_i32_0 = arith.constant 0 : i32
    %c0_i32_1 = arith.constant 0 : i32
    return %c0_i32, %c0_i32_0 : i32, i32
  }
  func.func @transform_5(%arg0: i32) -> (i32, i32) {
    %c0_i32 = arith.constant 0 : i32
    %c0_i32_0 = arith.constant 0 : i32
    %c0_i32_1 = arith.constant 0 : i32
    return %c0_i32, %c0_i32_0 : i32, i32
  }
  func.func @transform_6(%arg0: i32) -> (i32, i32) {
    %c0_i32 = arith.constant 0 : i32
    %c0_i32_0 = arith.constant 0 : i32
    return %arg0, %c0_i32 : i32, i32
  }
}

module attributes {stable_mosaic.version = 11 : i64} {
  func.func @_conv_relu_pool_kernel(%arg0: i32, %arg1: memref<32x150xbf16, #tpu.memory_space<vmem>>, %arg2: memref<32x150xbf16, #tpu.memory_space<vmem>>, %arg3: memref<32x150xbf16, #tpu.memory_space<vmem>>, %arg4: memref<32x150xbf16, #tpu.memory_space<vmem>>, %arg5: memref<150x128xbf16, #tpu.memory_space<vmem>>, %arg6: memref<1x128xf32, #tpu.memory_space<vmem>>, %arg7: memref<32x128xbf16, #tpu.memory_space<vmem>>) attributes {dimension_semantics = [#tpu.dimension_semantics<parallel>], iteration_bounds = array<i64: 2>, scalar_prefetch = 0 : i64, scratch_operands = 0 : i64, tpu.core_type = #tpu.core_type<tc>, window_params = [{transform_indices = @transform_0, window_bounds = array<i64: 32, 150>}, {transform_indices = @transform_1, window_bounds = array<i64: 32, 150>}, {transform_indices = @transform_2, window_bounds = array<i64: 32, 150>}, {transform_indices = @transform_3, window_bounds = array<i64: 32, 150>}, {pipeline_mode = #tpu.pipeline_mode<synchronous>, transform_indices = @transform_4, window_bounds = array<i64: 150, 128>}, {pipeline_mode = #tpu.pipeline_mode<synchronous>, transform_indices = @transform_5, window_bounds = array<i64: 1, 128>}, {transform_indices = @transform_6, window_bounds = array<i64: 32, 128>}]} {
    %c0 = arith.constant 0 : index
    %c0_0 = arith.constant 0 : index
    %0 = vector.load %arg1[%c0, %c0_0] : memref<32x150xbf16, #tpu.memory_space<vmem>>, vector<32x150xbf16>
    %c0_1 = arith.constant 0 : index
    %c0_2 = arith.constant 0 : index
    %1 = vector.load %arg5[%c0_1, %c0_2] : memref<150x128xbf16, #tpu.memory_space<vmem>>, vector<150x128xbf16>
    %cst = arith.constant dense<0.000000e+00> : vector<32x128xf32>
    %2 = tpu.matmul %0, %1, %cst {dimension_numbers = #tpu.dot_dimension_numbers<[1], [0], [0], [1], [0, 0, 1, 1], [], []>} : vector<32x150xbf16>, vector<150x128xbf16>, vector<32x128xf32> -> vector<32x128xf32>
    %c0_3 = arith.constant 0 : index
    %c0_4 = arith.constant 0 : index
    %3 = vector.load %arg2[%c0_3, %c0_4] : memref<32x150xbf16, #tpu.memory_space<vmem>>, vector<32x150xbf16>
    %c0_5 = arith.constant 0 : index
    %c0_6 = arith.constant 0 : index
    %4 = vector.load %arg5[%c0_5, %c0_6] : memref<150x128xbf16, #tpu.memory_space<vmem>>, vector<150x128xbf16>
    %cst_7 = arith.constant dense<0.000000e+00> : vector<32x128xf32>
    %5 = tpu.matmul %3, %4, %cst_7 {dimension_numbers = #tpu.dot_dimension_numbers<[1], [0], [0], [1], [0, 0, 1, 1], [], []>} : vector<32x150xbf16>, vector<150x128xbf16>, vector<32x128xf32> -> vector<32x128xf32>
    %6 = arith.maximumf %2, %5 : vector<32x128xf32>
    %c0_8 = arith.constant 0 : index
    %c0_9 = arith.constant 0 : index
    %7 = vector.load %arg3[%c0_8, %c0_9] : memref<32x150xbf16, #tpu.memory_space<vmem>>, vector<32x150xbf16>
    %c0_10 = arith.constant 0 : index
    %c0_11 = arith.constant 0 : index
    %8 = vector.load %arg5[%c0_10, %c0_11] : memref<150x128xbf16, #tpu.memory_space<vmem>>, vector<150x128xbf16>
    %cst_12 = arith.constant dense<0.000000e+00> : vector<32x128xf32>
    %9 = tpu.matmul %7, %8, %cst_12 {dimension_numbers = #tpu.dot_dimension_numbers<[1], [0], [0], [1], [0, 0, 1, 1], [], []>} : vector<32x150xbf16>, vector<150x128xbf16>, vector<32x128xf32> -> vector<32x128xf32>
    %c0_13 = arith.constant 0 : index
    %c0_14 = arith.constant 0 : index
    %10 = vector.load %arg4[%c0_13, %c0_14] : memref<32x150xbf16, #tpu.memory_space<vmem>>, vector<32x150xbf16>
    %c0_15 = arith.constant 0 : index
    %c0_16 = arith.constant 0 : index
    %11 = vector.load %arg5[%c0_15, %c0_16] : memref<150x128xbf16, #tpu.memory_space<vmem>>, vector<150x128xbf16>
    %cst_17 = arith.constant dense<0.000000e+00> : vector<32x128xf32>
    %12 = tpu.matmul %10, %11, %cst_17 {dimension_numbers = #tpu.dot_dimension_numbers<[1], [0], [0], [1], [0, 0, 1, 1], [], []>} : vector<32x150xbf16>, vector<150x128xbf16>, vector<32x128xf32> -> vector<32x128xf32>
    %13 = arith.maximumf %9, %12 : vector<32x128xf32>
    %14 = arith.maximumf %6, %13 : vector<32x128xf32>
    %c0_18 = arith.constant 0 : index
    %c0_19 = arith.constant 0 : index
    %15 = vector.load %arg6[%c0_18, %c0_19] : memref<1x128xf32, #tpu.memory_space<vmem>>, vector<1x128xf32>
    %16 = vector.broadcast %15 : vector<1x128xf32> to vector<32x128xf32>
    %17 = arith.addf %14, %16 : vector<32x128xf32>
    %cst_20 = arith.constant 0.000000e+00 : f32
    %18 = vector.broadcast %cst_20 : f32 to vector<32x128xf32>
    %19 = arith.maximumf %17, %18 : vector<32x128xf32>
    %20 = arith.truncf %19 : vector<32x128xf32> to vector<32x128xbf16>
    %c0_21 = arith.constant 0 : index
    %c0_22 = arith.constant 0 : index
    %21 = vector.load %arg7[%c0_21, %c0_22] : memref<32x128xbf16, #tpu.memory_space<vmem>>, vector<32x128xbf16>
    tpu.vector_store %arg7[%c0_21, %c0_22], %20 {strides = array<i32>} : memref<32x128xbf16, #tpu.memory_space<vmem>>, vector<32x128xbf16>,
    return
  }
  func.func @transform_0(%arg0: i32) -> (i32, i32) {
    %c0_i32 = arith.constant 0 : i32
    %c0_i32_0 = arith.constant 0 : i32
    return %arg0, %c0_i32 : i32, i32
  }
  func.func @transform_1(%arg0: i32) -> (i32, i32) {
    %c0_i32 = arith.constant 0 : i32
    %c0_i32_0 = arith.constant 0 : i32
    return %arg0, %c0_i32 : i32, i32
  }
  func.func @transform_2(%arg0: i32) -> (i32, i32) {
    %c0_i32 = arith.constant 0 : i32
    %c0_i32_0 = arith.constant 0 : i32
    return %arg0, %c0_i32 : i32, i32
  }
  func.func @transform_3(%arg0: i32) -> (i32, i32) {
    %c0_i32 = arith.constant 0 : i32
    %c0_i32_0 = arith.constant 0 : i32
    return %arg0, %c0_i32 : i32, i32
  }
  func.func @transform_4(%arg0: i32) -> (i32, i32) {
    %c0_i32 = arith.constant 0 : i32
    %c0_i32_0 = arith.constant 0 : i32
    %c0_i32_1 = arith.constant 0 : i32
    return %c0_i32, %c0_i32_0 : i32, i32
  }
  func.func @transform_5(%arg0: i32) -> (i32, i32) {
    %c0_i32 = arith.constant 0 : i32
    %c0_i32_0 = arith.constant 0 : i32
    %c0_i32_1 = arith.constant 0 : i32
    return %c0_i32, %c0_i32_0 : i32, i32
  }
  func.func @transform_6(%arg0: i32) -> (i32, i32) {
    %c0_i32 = arith.constant 0 : i32
    %c0_i32_0 = arith.constant 0 : i32
    return %arg0, %c0_i32 : i32, i32
  }
}

module attributes {stable_mosaic.version = 11 : i64} {
  func.func @_fc_stack_kernel(%arg0: i32, %arg1: memref<2x400xbf16, #tpu.memory_space<vmem>>, %arg2: memref<400x128xbf16, #tpu.memory_space<vmem>>, %arg3: memref<1x128xf32, #tpu.memory_space<vmem>>, %arg4: memref<128x128xbf16, #tpu.memory_space<vmem>>, %arg5: memref<1x128xf32, #tpu.memory_space<vmem>>, %arg6: memref<128x128xbf16, #tpu.memory_space<vmem>>, %arg7: memref<1x128xf32, #tpu.memory_space<vmem>>, %arg8: memref<2x128xf32, #tpu.memory_space<vmem>>) attributes {dimension_semantics = [#tpu.dimension_semantics<parallel>], iteration_bounds = array<i64: 1>, scalar_prefetch = 0 : i64, scratch_operands = 0 : i64, tpu.core_type = #tpu.core_type<tc>, window_params = [{transform_indices = @transform_0, window_bounds = array<i64: 2, 400>}, {pipeline_mode = #tpu.pipeline_mode<synchronous>, transform_indices = @transform_1, window_bounds = array<i64: 400, 128>}, {pipeline_mode = #tpu.pipeline_mode<synchronous>, transform_indices = @transform_2, window_bounds = array<i64: 1, 128>}, {pipeline_mode = #tpu.pipeline_mode<synchronous>, transform_indices = @transform_3, window_bounds = array<i64: 128, 128>}, {pipeline_mode = #tpu.pipeline_mode<synchronous>, transform_indices = @transform_4, window_bounds = array<i64: 1, 128>}, {pipeline_mode = #tpu.pipeline_mode<synchronous>, transform_indices = @transform_5, window_bounds = array<i64: 128, 128>}, {pipeline_mode = #tpu.pipeline_mode<synchronous>, transform_indices = @transform_6, window_bounds = array<i64: 1, 128>}, {transform_indices = @transform_7, window_bounds = array<i64: 2, 128>}]} {
    %c0 = arith.constant 0 : index
    %c0_0 = arith.constant 0 : index
    %0 = vector.load %arg1[%c0, %c0_0] : memref<2x400xbf16, #tpu.memory_space<vmem>>, vector<2x400xbf16>
    %c0_1 = arith.constant 0 : index
    %c0_2 = arith.constant 0 : index
    %1 = vector.load %arg2[%c0_1, %c0_2] : memref<400x128xbf16, #tpu.memory_space<vmem>>, vector<400x128xbf16>
    %cst = arith.constant dense<0.000000e+00> : vector<2x128xf32>
    %2 = tpu.matmul %0, %1, %cst {dimension_numbers = #tpu.dot_dimension_numbers<[1], [0], [0], [1], [0, 0, 1, 1], [], []>} : vector<2x400xbf16>, vector<400x128xbf16>, vector<2x128xf32> -> vector<2x128xf32>
    %c0_3 = arith.constant 0 : index
    %c0_4 = arith.constant 0 : index
    %3 = vector.load %arg3[%c0_3, %c0_4] : memref<1x128xf32, #tpu.memory_space<vmem>>, vector<1x128xf32>
    %4 = vector.broadcast %3 : vector<1x128xf32> to vector<2x128xf32>
    %5 = arith.addf %2, %4 : vector<2x128xf32>
    %cst_5 = arith.constant 0.000000e+00 : f32
    %6 = vector.broadcast %cst_5 : f32 to vector<2x128xf32>
    %7 = arith.maximumf %5, %6 : vector<2x128xf32>
    %8 = arith.truncf %7 : vector<2x128xf32> to vector<2x128xbf16>
    %c0_6 = arith.constant 0 : index
    %c0_7 = arith.constant 0 : index
    %9 = vector.load %arg4[%c0_6, %c0_7] : memref<128x128xbf16, #tpu.memory_space<vmem>>, vector<128x128xbf16>
    %cst_8 = arith.constant dense<0.000000e+00> : vector<2x128xf32>
    %10 = tpu.matmul %8, %9, %cst_8 {dimension_numbers = #tpu.dot_dimension_numbers<[1], [0], [0], [1], [0, 0, 1, 1], [], []>} : vector<2x128xbf16>, vector<128x128xbf16>, vector<2x128xf32> -> vector<2x128xf32>
    %c0_9 = arith.constant 0 : index
    %c0_10 = arith.constant 0 : index
    %11 = vector.load %arg5[%c0_9, %c0_10] : memref<1x128xf32, #tpu.memory_space<vmem>>, vector<1x128xf32>
    %12 = vector.broadcast %11 : vector<1x128xf32> to vector<2x128xf32>
    %13 = arith.addf %10, %12 : vector<2x128xf32>
    %cst_11 = arith.constant 0.000000e+00 : f32
    %14 = vector.broadcast %cst_11 : f32 to vector<2x128xf32>
    %15 = arith.maximumf %13, %14 : vector<2x128xf32>
    %16 = arith.truncf %15 : vector<2x128xf32> to vector<2x128xbf16>
    %c0_12 = arith.constant 0 : index
    %c0_13 = arith.constant 0 : index
    %17 = vector.load %arg6[%c0_12, %c0_13] : memref<128x128xbf16, #tpu.memory_space<vmem>>, vector<128x128xbf16>
    %cst_14 = arith.constant dense<0.000000e+00> : vector<2x128xf32>
    %18 = tpu.matmul %16, %17, %cst_14 {dimension_numbers = #tpu.dot_dimension_numbers<[1], [0], [0], [1], [0, 0, 1, 1], [], []>} : vector<2x128xbf16>, vector<128x128xbf16>, vector<2x128xf32> -> vector<2x128xf32>
    %c0_15 = arith.constant 0 : index
    %c0_16 = arith.constant 0 : index
    %19 = vector.load %arg7[%c0_15, %c0_16] : memref<1x128xf32, #tpu.memory_space<vmem>>, vector<1x128xf32>
    %20 = vector.broadcast %19 : vector<1x128xf32> to vector<2x128xf32>
    %21 = arith.addf %18, %20 : vector<2x128xf32>
    %c0_17 = arith.constant 0 : index
    %c0_18 = arith.constant 0 : index
    %22 = vector.load %arg8[%c0_17, %c0_18] : memref<2x128xf32, #tpu.memory_space<vmem>>, vector<2x128xf32>
    tpu.vector_store %arg8[%c0_17, %c0_18], %21 {strides = array<i32>} : memref<2x128xf32, #tpu.memory_space<vmem>>, vector<2x128xf32>,
    return
  }
  func.func @transform_0(%arg0: i32) -> (i32, i32) {
    %c0_i32 = arith.constant 0 : i32
    %c0_i32_0 = arith.constant 0 : i32
    return %arg0, %c0_i32 : i32, i32
  }
  func.func @transform_1(%arg0: i32) -> (i32, i32) {
    %c0_i32 = arith.constant 0 : i32
    %c0_i32_0 = arith.constant 0 : i32
    %c0_i32_1 = arith.constant 0 : i32
    return %c0_i32, %c0_i32_0 : i32, i32
  }
  func.func @transform_2(%arg0: i32) -> (i32, i32) {
    %c0_i32 = arith.constant 0 : i32
    %c0_i32_0 = arith.constant 0 : i32
    %c0_i32_1 = arith.constant 0 : i32
    return %c0_i32, %c0_i32_0 : i32, i32
  }
  func.func @transform_3(%arg0: i32) -> (i32, i32) {
    %c0_i32 = arith.constant 0 : i32
    %c0_i32_0 = arith.constant 0 : i32
    %c0_i32_1 = arith.constant 0 : i32
    return %c0_i32, %c0_i32_0 : i32, i32
  }
  func.func @transform_4(%arg0: i32) -> (i32, i32) {
    %c0_i32 = arith.constant 0 : i32
    %c0_i32_0 = arith.constant 0 : i32
    %c0_i32_1 = arith.constant 0 : i32
    return %c0_i32, %c0_i32_0 : i32, i32
  }
  func.func @transform_5(%arg0: i32) -> (i32, i32) {
    %c0_i32 = arith.constant 0 : i32
    %c0_i32_0 = arith.constant 0 : i32
    %c0_i32_1 = arith.constant 0 : i32
    return %c0_i32, %c0_i32_0 : i32, i32
  }
  func.func @transform_6(%arg0: i32) -> (i32, i32) {
    %c0_i32 = arith.constant 0 : i32
    %c0_i32_0 = arith.constant 0 : i32
    %c0_i32_1 = arith.constant 0 : i32
    return %c0_i32, %c0_i32_0 : i32, i32
  }
  func.func @transform_7(%arg0: i32) -> (i32, i32) {
    %c0_i32 = arith.constant 0 : i32
    %c0_i32_0 = arith.constant 0 : i32
    return %arg0, %c0_i32 : i32, i32
  }
}

</mosaic_0001>

<llo_original>
// kernel: net_forward.3
$region0: #{net_forward.3}
  #allocation0 [shape = 'u32[]', space=smem, size = 0x4, offset = 0x4, fixed_abs, tag = 'smem constant byte address 0x4 - core index']
  #allocation1 [shape = 'u32[144,128]{1,0:T(1,128)}', space=vmem, size = 0x12000, scoped, tag = 'internal scratch']
  %s0 = inlined_call_operand.vmem [shape: bf16[392,75], index: 0, kind: input, shape index: {}]
  %s1 = inlined_call_operand.vmem [shape: bf16[392,75], index: 1, kind: input, shape index: {}]
  %s2 = inlined_call_operand.vmem [shape: bf16[392,75], index: 2, kind: input, shape index: {}]
  %s3 = inlined_call_operand.vmem [shape: bf16[392,75], index: 3, kind: input, shape index: {}]
  %s4 = inlined_call_operand.vmem [shape: bf16[75,128], index: 4, kind: input, shape index: {}]
  %s5 = inlined_call_operand.vmem [shape: f32[1,128], index: 5, kind: input, shape index: {}]
  %s6 = inlined_call_operand.vmem [shape: bf16[392,128], index: 6, kind: output, shape index: {}]
  %s7 = sld [smem:[#allocation0]]
  $region101: #{net_forward.3} parent=0
    _
  %s9 = ssub.s32 1, %s7
  %s10 = scalar_select 0, %s9, %s7
  $region1: #{net_forward.3} parent=0
    #allocation2 [shape = 'u8[106496]{0}', space=vmem, size = 0x1a000, scoped, tag = 'output window, operand 0']
    loop: start=0, step=1, limit=4
    $region2: #{net_forward.3} parent=1 // loop_pre_header
      _
    $region3: #{net_forward.3} parent=1 // loop_header
      %s12 = sphi 0, %s16
      %p13 = scmp.ge.s32.totalorder %s12, 4
      %s22 = sphi 0, %s24
      %s25 = sphi 0, %s22
      %s26 = sphi 0, %s25
      %s42 = sphi 0, %s26
      %s48 = sphi 0, %s50
      %s51 = sphi 0, %s48
      %s52 = sphi 0, %s51
      %s68 = sphi 0, %s52
      %s74 = sphi 0, %s76
      %s77 = sphi 0, %s74
      %s78 = sphi 0, %s77
      %s94 = sphi 0, %s78
      %s100 = sphi 0, %s102
      %s103 = sphi 0, %s100
      %s104 = sphi 0, %s103
      %s120 = sphi 0, %s104
      %s124 = sphi 0, %s124
      %s126 = sphi 0, %s124
      %s127 = sphi 0, %s126
      %s141 = sphi 0, %s127
      %s145 = sphi 0, %s145
      %s147 = sphi 0, %s145
      %s148 = sphi 0, %s147
      %s162 = sphi 0, %s148
      %s168 = sphi 0, %s170
      %s171 = sphi 0, %s168
      %s172 = sphi 0, %s171
      %s188 = sphi 0, %s172
    $region4: #{net_forward.3} parent=1 // loop_header_branch
      %15 = sbr.rel (%p13) target = $region8
    $region5: #{net_forward.3} parent=1 // loop_body
      %s17 = ssub.s32 %s12, 1
      %s18 = ssub.s32 %s12, 2
      %s19 = sadd.s32 %s12, 1
      %s20 = ssub.s32 %s12, %s19
      %p21 = scmp.eq.s32.totalorder %s20, 0
      %s23 = sadd.s32 %s22, 1
      %s24 = scalar_select %p21, %s22, %s23
      %p27 = pneg %p21
      %p28 = scmp.eq.s32.totalorder %s12, 1
      %p29 = por %p27, %p28
      %p30 = scmp.ne.s32.totalorder %s22, %s25
      %p31 = scmp.eq.s32.totalorder %s12, 0
      %p32 = por %p30, %p31
      %p33 = scmp.ne.s32.totalorder %s22, %s25
      %p34 = scmp.eq.s32.totalorder %s17, 1
      %p35 = por %p33, %p34
      %p36 = scmp.ne.s32.totalorder %s25, %s26
      %p37 = scmp.eq.s32.totalorder %s17, 0
      %p38 = por %p36, %p37
      %p39 = scmp.ne.s32.totalorder %s25, %s26
      %p40 = scmp.eq.s32.totalorder %s18, 1
      %p41 = por %p39, %p40
      %p43 = scmp.ne.s32.totalorder %s26, %s42
      %p44 = scmp.eq.s32.totalorder %s18, 0
      %p45 = por %p43, %p44
      %s46 = ssub.s32 %s12, %s19
      %p47 = scmp.eq.s32.totalorder %s46, 0
      %s49 = sadd.s32 %s48, 1
      %s50 = scalar_select %p47, %s48, %s49
      %p53 = pneg %p47
      %p54 = scmp.eq.s32.totalorder %s12, 1
      %p55 = por %p53, %p54
      %p56 = scmp.ne.s32.totalorder %s48, %s51
      %p57 = scmp.eq.s32.totalorder %s12, 0
      %p58 = por %p56, %p57
      %p59 = scmp.ne.s32.totalorder %s48, %s51
      %p60 = scmp.eq.s32.totalorder %s17, 1
      %p61 = por %p59, %p60
      %p62 = scmp.ne.s32.totalorder %s51, %s52
      %p63 = scmp.eq.s32.totalorder %s17, 0
      %p64 = por %p62, %p63
      %p65 = scmp.ne.s32.totalorder %s51, %s52
      %p66 = scmp.eq.s32.totalorder %s18, 1
      %p67 = por %p65, %p66
      %p69 = scmp.ne.s32.totalorder %s52, %s68
      %p70 = scmp.eq.s32.totalorder %s18, 0
      %p71 = por %p69, %p70
      %s72 = ssub.s32 %s12, %s19
      %p73 = scmp.eq.s32.totalorder %s72, 0
      %s75 = sadd.s32 %s74, 1
      %s76 = scalar_select %p73, %s74, %s75
      %p79 = pneg %p73
      %p80 = scmp.eq.s32.totalorder %s12, 1
      %p81 = por %p79, %p80
      %p82 = scmp.ne.s32.totalorder %s74, %s77
      %p83 = scmp.eq.s32.totalorder %s12, 0
      %p84 = por %p82, %p83
      %p85 = scmp.ne.s32.totalorder %s74, %s77
      %p86 = scmp.eq.s32.totalorder %s17, 1
      %p87 = por %p85, %p86
      %p88 = scmp.ne.s32.totalorder %s77, %s78
      %p89 = scmp.eq.s32.totalorder %s17, 0
      %p90 = por %p88, %p89
      %p91 = scmp.ne.s32.totalorder %s77, %s78
      %p92 = scmp.eq.s32.totalorder %s18, 1
      %p93 = por %p91, %p92
      %p95 = scmp.ne.s32.totalorder %s78, %s94
      %p96 = scmp.eq.s32.totalorder %s18, 0
      %p97 = por %p95, %p96
      %s98 = ssub.s32 %s12, %s19
      %p99 = scmp.eq.s32.totalorder %s98, 0
      %s101 = sadd.s32 %s100, 1
      %s102 = scalar_select %p99, %s100, %s101
      %p105 = pneg %p99
      %p106 = scmp.eq.s32.totalorder %s12, 1
      %p107 = por %p105, %p106
      %p108 = scmp.ne.s32.totalorder %s100, %s103
      %p109 = scmp.eq.s32.totalorder %s12, 0
      %p110 = por %p108, %p109
      %p111 = scmp.ne.s32.totalorder %s100, %s103
      %p112 = scmp.eq.s32.totalorder %s17, 1
      %p113 = por %p111, %p112
      %p114 = scmp.ne.s32.totalorder %s103, %s104
      %p115 = scmp.eq.s32.totalorder %s17, 0
      %p116 = por %p114, %p115
      %p117 = scmp.ne.s32.totalorder %s103, %s104
      %p118 = scmp.eq.s32.totalorder %s18, 1
      %p119 = por %p117, %p118
      %p121 = scmp.ne.s32.totalorder %s104, %s120
      %p122 = scmp.eq.s32.totalorder %s18, 0
      %p123 = por %p121, %p122
      %s125 = sadd.s32 %s124, 1
      %p128 = scmp.eq.s32.totalorder %s12, 1
      %p129 = scmp.ne.s32.totalorder %s124, %s126
      %p130 = scmp.eq.s32.totalorder %s12, 0
      %p131 = por %p129, %p130
      %p132 = scmp.ne.s32.totalorder %s124, %s126
      %p133 = scmp.eq.s32.totalorder %s17, 1
      %p134 = por %p132, %p133
      %p135 = scmp.ne.s32.totalorder %s126, %s127
      %p136 = scmp.eq.s32.totalorder %s17, 0
      %p137 = por %p135, %p136
      %p138 = scmp.ne.s32.totalorder %s126, %s127
      %p139 = scmp.eq.s32.totalorder %s18, 1
      %p140 = por %p138, %p139
      %p142 = scmp.ne.s32.totalorder %s127, %s141
      %p143 = scmp.eq.s32.totalorder %s18, 0
      %p144 = por %p142, %p143
      %s146 = sadd.s32 %s145, 1
      %p149 = scmp.eq.s32.totalorder %s12, 1
      %p150 = scmp.ne.s32.totalorder %s145, %s147
      %p151 = scmp.eq.s32.totalorder %s12, 0
      %p152 = por %p150, %p151
      %p153 = scmp.ne.s32.totalorder %s145, %s147
      %p154 = scmp.eq.s32.totalorder %s17, 1
      %p155 = por %p153, %p154
      %p156 = scmp.ne.s32.totalorder %s147, %s148
      %p157 = scmp.eq.s32.totalorder %s17, 0
      %p158 = por %p156, %p157
      %p159 = scmp.ne.s32.totalorder %s147, %s148
      %p160 = scmp.eq.s32.totalorder %s18, 1
      %p161 = por %p159, %p160
      %p163 = scmp.ne.s32.totalorder %s148, %s162
      %p164 = scmp.eq.s32.totalorder %s18, 0
      %p165 = por %p163, %p164
      %s166 = ssub.s32 %s12, %s19
      %p167 = scmp.eq.s32.totalorder %s166, 0
      %s169 = sadd.s32 %s168, 1
      %s170 = scalar_select %p167, %s168, %s169
      %p173 = pneg %p167
      %p174 = scmp.eq.s32.totalorder %s12, 1
      %p175 = por %p173, %p174
      %p176 = scmp.ne.s32.totalorder %s168, %s171
      %p177 = scmp.eq.s32.totalorder %s12, 0
      %p178 = por %p176, %p177
      %p179 = scmp.ne.s32.totalorder %s168, %s171
      %p180 = scmp.eq.s32.totalorder %s17, 1
      %p181 = por %p179, %p180
      %p182 = scmp.ne.s32.totalorder %s171, %s172
      %p183 = scmp.eq.s32.totalorder %s17, 0
      %p184 = por %p182, %p183
      %p185 = scmp.ne.s32.totalorder %s171, %s172
      %p186 = scmp.eq.s32.totalorder %s18, 1
      %p187 = por %p185, %p186
      %p189 = scmp.ne.s32.totalorder %s172, %s188
      %p190 = scmp.eq.s32.totalorder %s18, 0
      %p191 = por %p189, %p190
      %p192 = scmp.le.s32.totalorder 1, %s12
      %p193 = scmp.lt.s32.totalorder %s12, 3
      %p194 = pnand %p192, %p193
      %p195 = pneg %p194
      // Predicated region
      $region9: #{net_forward.3} parent=5 // pred_check
        _
      $region10: #{net_forward.3} parent=5 // pred_check_branch
        %197 = sbr.rel (%p194) target = $region12
      $region11: #{net_forward.3} parent=5 // pred_region
        %s198 = ssub.s32 %s12, 1
        // Predicated region
        $region13: #{net_forward.3} parent=11 // pred_check
          %p199 = pneg %p137
        $region14: #{net_forward.3} parent=11 // pred_check_branch
          %201 = sbr.rel (%p199) target = $region16
        $region15: #{net_forward.3} parent=11 // pred_region
          _
        $region16: #{net_forward.3} parent=11 // pred_fallthru
          _
        // Predicated region
        $region17: #{net_forward.3} parent=11 // pred_check
          %p202 = pneg %p158
        $region18: #{net_forward.3} parent=11 // pred_check_branch
          %204 = sbr.rel (%p202) target = $region20
        $region19: #{net_forward.3} parent=11 // pred_region
          _
        $region20: #{net_forward.3} parent=11 // pred_fallthru
          _
      $region12: #{net_forward.3} parent=5 // pred_fallthru
        _
      %p205 = scmp.lt.s32.totalorder %s12, 2
      // Predicated region
      $region21: #{net_forward.3} parent=5 // pred_check
        %p206 = pneg %p205
      $region22: #{net_forward.3} parent=5 // pred_check_branch
        %208 = sbr.rel (%p206) target = $region24
      $region23: #{net_forward.3} parent=5 // pred_region
        // Predicated region
        $region25: #{net_forward.3} parent=23 // pred_check
          %p209 = pneg %p32
        $region26: #{net_forward.3} parent=23 // pred_check_branch
          %211 = sbr.rel (%p209) target = $region28
        $region27: #{net_forward.3} parent=23 // pred_region
          %s212 = smul.u32 26, %s12
          %s213 = ssub.s32 49, %s212
          %p214 = scmp.lt.s32.totalorder %s213, 26
          %s215 = scalar_select %p214, %s213, 26
          %s216 = smul.u32 64, %s215
          %p217 = scmp.lt.s32.totalorder %s212, 48
          %s218 = scalar_select %p217, %s212, 48
          %s219 = smul.addr %s218, 4
          %s220 = scalar_lea.vmem %s0, %s219
          %s221 = smul.u32 26, %s12
          %s222 = ssub.s32 49, %s221
          %p223 = scmp.lt.s32.totalorder %s222, 26
          %s224 = scalar_select %p223, %s222, 26
          %s225 = smul.u32 64, %s224
        $region28: #{net_forward.3} parent=23 // pred_fallthru
          _
        // Predicated region
        $region29: #{net_forward.3} parent=23 // pred_check
          %p226 = pneg %p58
        $region30: #{net_forward.3} parent=23 // pred_check_branch
          %228 = sbr.rel (%p226) target = $region32
        $region31: #{net_forward.3} parent=23 // pred_region
          %s229 = smul.u32 26, %s12
          %s230 = ssub.s32 49, %s229
          %p231 = scmp.lt.s32.totalorder %s230, 26
          %s232 = scalar_select %p231, %s230, 26
          %s233 = smul.u32 64, %s232
          %p234 = scmp.lt.s32.totalorder %s229, 48
          %s235 = scalar_select %p234, %s229, 48
          %s236 = smul.addr %s235, 4
          %s237 = scalar_lea.vmem %s1, %s236
          %s238 = smul.u32 26, %s12
          %s239 = ssub.s32 49, %s238
          %p240 = scmp.lt.s32.totalorder %s239, 26
          %s241 = scalar_select %p240, %s239, 26
          %s242 = smul.u32 64, %s241
        $region32: #{net_forward.3} parent=23 // pred_fallthru
          _
        // Predicated region
        $region33: #{net_forward.3} parent=23 // pred_check
          %p243 = pneg %p84
        $region34: #{net_forward.3} parent=23 // pred_check_branch
          %245 = sbr.rel (%p243) target = $region36
        $region35: #{net_forward.3} parent=23 // pred_region
          %s246 = smul.u32 26, %s12
          %s247 = ssub.s32 49, %s246
          %p248 = scmp.lt.s32.totalorder %s247, 26
          %s249 = scalar_select %p248, %s247, 26
          %s250 = smul.u32 64, %s249
          %p251 = scmp.lt.s32.totalorder %s246, 48
          %s252 = scalar_select %p251, %s246, 48
          %s253 = smul.addr %s252, 4
          %s254 = scalar_lea.vmem %s2, %s253
          %s255 = smul.u32 26, %s12
          %s256 = ssub.s32 49, %s255
          %p257 = scmp.lt.s32.totalorder %s256, 26
          %s258 = scalar_select %p257, %s256, 26
          %s259 = smul.u32 64, %s258
        $region36: #{net_forward.3} parent=23 // pred_fallthru
          _
        // Predicated region
        $region37: #{net_forward.3} parent=23 // pred_check
          %p260 = pneg %p110
        $region38: #{net_forward.3} parent=23 // pred_check_branch
          %262 = sbr.rel (%p260) target = $region40
        $region39: #{net_forward.3} parent=23 // pred_region
          %s263 = smul.u32 26, %s12
          %s264 = ssub.s32 49, %s263
          %p265 = scmp.lt.s32.totalorder %s264, 26
          %s266 = scalar_select %p265, %s264, 26
          %s267 = smul.u32 64, %s266
          %p268 = scmp.lt.s32.totalorder %s263, 48
          %s269 = scalar_select %p268, %s263, 48
          %s270 = smul.addr %s269, 4
          %s271 = scalar_lea.vmem %s3, %s270
          %s272 = smul.u32 26, %s12
          %s273 = ssub.s32 49, %s272
          %p274 = scmp.lt.s32.totalorder %s273, 26
          %s275 = scalar_select %p274, %s273, 26
          %s276 = smul.u32 64, %s275
        $region40: #{net_forward.3} parent=23 // pred_fallthru
          _
      $region24: #{net_forward.3} parent=5 // pred_fallthru
        _
      %p277 = scmp.le.s32.totalorder 1, %s12
      %p278 = scmp.lt.s32.totalorder %s12, 3
      %p279 = pnand %p277, %p278
      %p280 = pneg %p279
      // Predicated region
      $region41: #{net_forward.3} parent=5 // pred_check
        _
      $region42: #{net_forward.3} parent=5 // pred_check_branch
        %282 = sbr.rel (%p279) target = $region44
      $region43: #{net_forward.3} parent=5 // pred_region
        %s283 = ssub.s32 %s12, 1
        %s284 = smul.u32 26, %s17
        %s285 = ssub.s32 49, %s284
        %p286 = scmp.lt.s32.totalorder %s285, 26
        %s287 = scalar_select %p286, %s285, 26
        %s288 = smul.u32 64, %s287
        %p289 = scmp.lt.s32.totalorder %s284, 48
        %s290 = scalar_select %p289, %s284, 48
        %s291 = smul.addr %s290, 4
        %s292 = scalar_lea.vmem %s0, %s291
        %p293 = pneg %p38
        %p294 = pneg %p35
        %s295 = smul.u32 26, %s17
        %s296 = ssub.s32 49, %s295
        %p297 = scmp.lt.s32.totalorder %s296, 26
        %s298 = scalar_select %p297, %s296, 26
        %s299 = smul.u32 64, %s298
        %p300 = scmp.lt.s32.totalorder %s295, 48
        %s301 = scalar_select %p300, %s295, 48
        %s302 = smul.addr %s301, 4
        %s303 = scalar_lea.vmem %s1, %s302
        %p304 = pneg %p64
        %p305 = pneg %p61
        %s306 = smul.u32 26, %s17
        %s307 = ssub.s32 49, %s306
        %p308 = scmp.lt.s32.totalorder %s307, 26
        %s309 = scalar_select %p308, %s307, 26
        %s310 = smul.u32 64, %s309
        %p311 = scmp.lt.s32.totalorder %s306, 48
        %s312 = scalar_select %p311, %s306, 48
        %s313 = smul.addr %s312, 4
        %s314 = scalar_lea.vmem %s2, %s313
        %p315 = pneg %p90
        %p316 = pneg %p87
        %s317 = smul.u32 26, %s17
        %s318 = ssub.s32 49, %s317
        %p319 = scmp.lt.s32.totalorder %s318, 26
        %s320 = scalar_select %p319, %s318, 26
        %s321 = smul.u32 64, %s320
        %p322 = scmp.lt.s32.totalorder %s317, 48
        %s323 = scalar_select %p322, %s317, 48
        %s324 = smul.addr %s323, 4
        %s325 = scalar_lea.vmem %s3, %s324
        %p326 = pneg %p116
        %p327 = pneg %p113
        %p328 = pneg %p137
        %p329 = pneg %p134
        %p330 = pneg %p158
        %p331 = pneg %p155
        %p332 = pneg %p184
        %p333 = pneg %p181
        %s334 = sand.u32 %s171, 1
        %s335 = sand.u32 %s171, 1
        %s336 = smul.addr %s335, 104
        %s337 = scalar_lea.vmem [#allocation2], %s336
        %s338 = smul.u32 26, %s17
        %s339 = ssub.s32 49, %s338
        %p340 = scmp.lt.s32.totalorder %s339, 26
        %s341 = scalar_select %p340, %s339, 26
        %s342 = smul.u32 64, %s341
        %p343 = scmp.lt.s32.totalorder %s338, 48
        %s344 = scalar_select %p343, %s338, 48
        %s345 = smul.addr %s344, 4
        %s346 = scalar_lea.vmem %s0, %s345
        %s347 = smul.u32 26, %s17
        %s348 = ssub.s32 49, %s347
        %p349 = scmp.lt.s32.totalorder %s348, 26
        %s350 = scalar_select %p349, %s348, 26
        %s351 = smul.u32 64, %s350
        %s352 = smul.u32 26, %s17
        %s353 = ssub.s32 49, %s352
        %p354 = scmp.lt.s32.totalorder %s353, 26
        %s355 = scalar_select %p354, %s353, 26
        %s356 = smul.u32 64, %s355
        %p357 = scmp.lt.s32.totalorder %s352, 48
        %s358 = scalar_select %p357, %s352, 48
        %s359 = smul.addr %s358, 4
        %s360 = scalar_lea.vmem %s1, %s359
        %s361 = smul.u32 26, %s17
        %s362 = ssub.s32 49, %s361
        %p363 = scmp.lt.s32.totalorder %s362, 26
        %s364 = scalar_select %p363, %s362, 26
        %s365 = smul.u32 64, %s364
        %s366 = smul.u32 26, %s17
        %s367 = ssub.s32 49, %s366
        %p368 = scmp.lt.s32.totalorder %s367, 26
        %s369 = scalar_select %p368, %s367, 26
        %s370 = smul.u32 64, %s369
        %p371 = scmp.lt.s32.totalorder %s366, 48
        %s372 = scalar_select %p371, %s366, 48
        %s373 = smul.addr %s372, 4
        %s374 = scalar_lea.vmem %s2, %s373
        %s375 = smul.u32 26, %s17
        %s376 = ssub.s32 49, %s375
        %p377 = scmp.lt.s32.totalorder %s376, 26
        %s378 = scalar_select %p377, %s376, 26
        %s379 = smul.u32 64, %s378
        %s380 = smul.u32 26, %s17
        %s381 = ssub.s32 49, %s380
        %p382 = scmp.lt.s32.totalorder %s381, 26
        %s383 = scalar_select %p382, %s381, 26
        %s384 = smul.u32 64, %s383
        %p385 = scmp.lt.s32.totalorder %s380, 48
        %s386 = scalar_select %p385, %s380, 48
        %s387 = smul.addr %s386, 4
        %s388 = scalar_lea.vmem %s3, %s387
        %s389 = smul.u32 26, %s17
        %s390 = ssub.s32 49, %s389
        %p391 = scmp.lt.s32.totalorder %s390, 26
        %s392 = scalar_select %p391, %s390, 26
        %s393 = smul.u32 64, %s392
        %s394 = smul.u32 26, %s17
        %s395 = ssub.s32 49, %s394
        %p396 = scmp.lt.s32.totalorder %s395, 26
        %s397 = scalar_select %p396, %s395, 26
        %s398 = smul.u32 64, %s397
        %v400 = vld [vmem:[%s346] sm:$0xf]
        %v401 = vld [vmem:[%s346 + $0x4] sm:$0xf]
        %v402 = vld [vmem:[%s346 + $0x8] sm:$0xf]
        %v403 = vld [vmem:[%s346 + $0xc] sm:$0xf]
        %v404 = vld [vmem:[%s346 + $0x10] sm:$0xf]
        %v405 = vld [vmem:[%s346 + $0x14] sm:$0xf]
        %v406 = vld [vmem:[%s346 + $0x18] sm:$0xf]
        %v407 = vld [vmem:[%s346 + $0x1c] sm:$0xf]
        %v408 = vld [vmem:[%s346 + $0x20] sm:$0xf]
        %v409 = vld [vmem:[%s346 + $0x24] sm:$0xf]
        %v410 = vld [vmem:[%s346 + $0x28] sm:$0xf]
        %v411 = vld [vmem:[%s346 + $0x2c] sm:$0xf]
        %v412 = vld [vmem:[%s346 + $0x30] sm:$0xf]
        %v413 = vld [vmem:[%s346 + $0x34] sm:$0xf]
        %v414 = vld [vmem:[%s346 + $0x38] sm:$0xf]
        %v415 = vld [vmem:[%s346 + $0x3c] sm:$0xf]
        %v416 = vld [vmem:[%s346 + $0x40] sm:$0xf]
        %v417 = vld [vmem:[%s346 + $0x44] sm:$0xf]
        %v418 = vld [vmem:[%s346 + $0x48] sm:$0xf]
        %v419 = vld [vmem:[%s346 + $0x4c] sm:$0xf]
        %v420 = vld [vmem:[%s346 + $0x50] sm:$0xf]
        %v421 = vld [vmem:[%s346 + $0x54] sm:$0xf]
        %v422 = vld [vmem:[%s346 + $0x58] sm:$0xf]
        %v423 = vld [vmem:[%s346 + $0x5c] sm:$0xf]
        %v424 = vld [vmem:[%s346 + $0x60] sm:$0xf]
        %v425 = vld [vmem:[%s346 + $0x64] sm:$0xf]
        %v426 = vld [vmem:[%s4] sm:$0xf]
        %v427 = vld [vmem:[%s4 + $0x4] sm:$0xf]
        %v428 = vld [vmem:[%s4 + $0x8] sm:$0xf]
        %v429 = vld [vmem:[%s4 + $0xc] sm:$0xf]
        %v430 = vld [vmem:[%s4 + $0x10] sm:$0xf]
        %v431 = vld [vmem:[%s4 + $0x14] sm:$0xf]
        %v432 = vld [vmem:[%s4 + $0x18] sm:$0xf]
        %v433 = vld [vmem:[%s4 + $0x1c] sm:$0xf]
        %v434 = vld [vmem:[%s4 + $0x20] sm:$0xf]
        %v435 = vld [vmem:[%s4 + $0x24] sm:$0x3]
        %v462 = vunpack.c.l.b16 %v400
        %v463 = vunpack.c.l.b16 %v401
        %v464 = vunpack.c.l.b16 %v402
        %v465 = vunpack.c.l.b16 %v403
        %v466 = vunpack.c.l.b16 %v404
        %v467 = vunpack.c.l.b16 %v405
        %v468 = vunpack.c.l.b16 %v406
        %v469 = vunpack.c.l.b16 %v407
        %v470 = vunpack.c.l.b16 %v408
        %v471 = vunpack.c.l.b16 %v409
        %v472 = vunpack.c.l.b16 %v410
        %v473 = vunpack.c.l.b16 %v411
        %v474 = vunpack.c.l.b16 %v412
        %v475 = vunpack.c.l.b16 %v413
        %v476 = vunpack.c.l.b16 %v414
        %v477 = vunpack.c.l.b16 %v415
        %v478 = vunpack.c.l.b16 %v416
        %v479 = vunpack.c.l.b16 %v417
        %v480 = vunpack.c.l.b16 %v418
        %v481 = vunpack.c.l.b16 %v419
        %v482 = vunpack.c.l.b16 %v420
        %v483 = vunpack.c.l.b16 %v421
        %v484 = vunpack.c.l.b16 %v422
        %v485 = vunpack.c.l.b16 %v423
        %v486 = vunpack.c.l.b16 %v424
        %v487 = vunpack.c.l.b16 %v425
        %v488 = vpack.c.b16 %v463, %v462
        %v489 = vpack.c.b16 %v465, %v464
        %v490 = vpack.c.b16 %v467, %v466
        %v491 = vpack.c.b16 %v469, %v468
        %v492 = vpack.c.b16 %v471, %v470
        %v493 = vpack.c.b16 %v473, %v472
        %v494 = vpack.c.b16 %v475, %v474
        %v495 = vpack.c.b16 %v477, %v476
        %v496 = vpack.c.b16 %v479, %v478
        %v497 = vpack.c.b16 %v481, %v480
        %v498 = vpack.c.b16 %v483, %v482
        %v499 = vpack.c.b16 %v485, %v484
        %v500 = vpack.c.b16 %v487, %v486
        %v511 = vunpack.c.l.b16 %v426
        %v512 = vunpack.c.l.b16 %v427
        %v513 = vunpack.c.l.b16 %v428
        %v514 = vunpack.c.l.b16 %v429
        %v515 = vunpack.c.l.b16 %v430
        %v516 = vunpack.c.l.b16 %v431
        %v517 = vunpack.c.l.b16 %v432
        %v518 = vunpack.c.l.b16 %v433
        %v519 = vunpack.c.l.b16 %v434
        %v520 = vunpack.c.l.b16 %v435
        %v521 = vpack.c.b16 %v512, %v511
        %v522 = vpack.c.b16 %v514, %v513
        %v523 = vpack.c.b16 %v516, %v515
        %v524 = vpack.c.b16 %v518, %v517
        %v525 = vpack.c.b16 %v520, %v519
        %vm530 = vcmask 613376
        %v532 = vsel %vm530, %v488, 0
        %v535 = vsel %vm530, %v489, 0
        %v538 = vsel %vm530, %v490, 0
        %v541 = vsel %vm530, %v491, 0
        %v544 = vsel %vm530, %v492, 0
        %v547 = vsel %vm530, %v493, 0
        %v550 = vsel %vm530, %v494, 0
        %v553 = vsel %vm530, %v495, 0
        %v556 = vsel %vm530, %v496, 0
        %v559 = vsel %vm530, %v497, 0
        %v562 = vsel %vm530, %v498, 0
        %v565 = vsel %vm530, %v499, 0
        %v568 = vsel %vm530, %v500, 0
        %vm570 = vcmask 1044480
        %vm571 = vcmask 1045504
        %v572 = vsel %vm570, 4294967295, 65535
        %v573 = vsel %vm571, %v572, 0
        %v575 = vand.u32 %v525, %v573
        %577 = vmatprep.subr.bf16.mxu0 0
        %578 = vmatpush1.bf16.msra.mxu0 %v521
        %579 = vmatprep.subr.bf16.mxu0 0
        %580 = vmatpush1.bf16.msra.mxu0 %v522
        %581 = vmatprep.subr.bf16.mxu0 0
        %582 = vmatpush1.bf16.msra.mxu0 %v523
        %583 = vmatprep.subr.bf16.mxu0 0
        %584 = vmatpush1.bf16.msra.mxu0 %v524
        %585 = vmatprep.subr.bf16.mxu0 0
        %586 = vmatpush1.bf16.msra.mxu0 %v575
        %587 = vmatprep.subr.bf16.mxu0 0
        %588 = vmatpush1.bf16.msra.mxu0 0
        %589 = vmatprep.subr.bf16.mxu0 0
        %590 = vmatpush1.bf16.msra.mxu0 0
        %591 = vmatprep.subr.bf16.mxu0 0
        %592 = vmatpush1.bf16.msra.mxu0 0
        %593 = vmatprep.subr.bf16.mxu0 0
        %594 = vmatpush1.bf16.msra.mxu0 0
        %595 = vmatprep.subr.bf16.mxu0 0
        %596 = vmatpush1.bf16.msra.mxu0 0
        %597 = vmatprep.subr.bf16.mxu0 0
        %598 = vmatpush1.bf16.msra.mxu0 0
        %599 = vmatprep.subr.bf16.mxu0 0
        %600 = vmatpush1.bf16.msra.mxu0 0
        %601 = vmatprep.subr.bf16.mxu0 0
        %602 = vmatpush1.bf16.msra.mxu0 0
        %603 = vmatprep.subr.bf16.mxu0 0
        %604 = vmatpush1.bf16.msra.mxu0 0
        %605 = vmatprep.subr.bf16.mxu0 0
        %606 = vmatpush1.bf16.msra.mxu0 0
        %607 = vmatprep.subr.bf16.mxu0 0
        %608 = vmatpush1.bf16.msra.mxu0 0
        %609 = vmatprep.mubr.bf16.mxu0 0
        %610 = vmatmul.mubr.bf16.gmra.mrb[0].mxu0 %v532
        %v611 = vpop.f32.mrb[0].mxu0
        %v612 = vadd.f32 0.0, %v611
        %v613 = vpop.f32.mrb[0].mxu0
        %v614 = vpop.f32.mrb[0].mxu0
        %v615 = vadd.f32 0.0, %v614
        %v616 = vpop.f32.mrb[0].mxu0
        %617 = vmatprep.mubr.bf16.mxu0 0
        %618 = vmatmul.mubr.bf16.gmra.mrb[0].mxu0 %v535
        %v619 = vpop.f32.mrb[0].mxu0
        %v620 = vadd.f32 0.0, %v619
        %v621 = vpop.f32.mrb[0].mxu0
        %v622 = vpop.f32.mrb[0].mxu0
        %v623 = vadd.f32 0.0, %v622
        %v624 = vpop.f32.mrb[0].mxu0
        %625 = vmatprep.mubr.bf16.mxu0 0
        %626 = vmatmul.mubr.bf16.gmra.mrb[0].mxu0 %v538
        %v627 = vpop.f32.mrb[0].mxu0
        %v628 = vadd.f32 0.0, %v627
        %v629 = vpop.f32.mrb[0].mxu0
        %v630 = vpop.f32.mrb[0].mxu0
        %v631 = vadd.f32 0.0, %v630
        %v632 = vpop.f32.mrb[0].mxu0
        %633 = vmatprep.mubr.bf16.mxu0 0
        %634 = vmatmul.mubr.bf16.gmra.mrb[0].mxu0 %v541
        %v635 = vpop.f32.mrb[0].mxu0
        %v636 = vadd.f32 0.0, %v635
        %v637 = vpop.f32.mrb[0].mxu0
        %v638 = vpop.f32.mrb[0].mxu0
        %v639 = vadd.f32 0.0, %v638
        %v640 = vpop.f32.mrb[0].mxu0
        %641 = vmatprep.mubr.bf16.mxu0 0
        %642 = vmatmul.mubr.bf16.gmra.mrb[0].mxu0 %v544
        %v643 = vpop.f32.mrb[0].mxu0
        %v644 = vadd.f32 0.0, %v643
        %v645 = vpop.f32.mrb[0].mxu0
        %v646 = vpop.f32.mrb[0].mxu0
        %v647 = vadd.f32 0.0, %v646
        %v648 = vpop.f32.mrb[0].mxu0
        %649 = vmatprep.mubr.bf16.mxu0 0
        %650 = vmatmul.mubr.bf16.gmra.mrb[0].mxu0 %v547
        %v651 = vpop.f32.mrb[0].mxu0
        %v652 = vadd.f32 0.0, %v651
        %v653 = vpop.f32.mrb[0].mxu0
        %v654 = vpop.f32.mrb[0].mxu0
        %v655 = vadd.f32 0.0, %v654
        %v656 = vpop.f32.mrb[0].mxu0
        %657 = vmatprep.mubr.bf16.mxu0 0
        %658 = vmatmul.mubr.bf16.gmra.mrb[0].mxu0 %v550
        %v659 = vpop.f32.mrb[0].mxu0
        %v660 = vadd.f32 0.0, %v659
        %v661 = vpop.f32.mrb[0].mxu0
        %v662 = vpop.f32.mrb[0].mxu0
        %v663 = vadd.f32 0.0, %v662
        %v664 = vpop.f32.mrb[0].mxu0
        %665 = vmatprep.mubr.bf16.mxu0 0
        %666 = vmatmul.mubr.bf16.gmra.mrb[0].mxu0 %v553
        %v667 = vpop.f32.mrb[0].mxu0
        %v668 = vadd.f32 0.0, %v667
        %v669 = vpop.f32.mrb[0].mxu0
        %v670 = vpop.f32.mrb[0].mxu0
        %v671 = vadd.f32 0.0, %v670
        %v672 = vpop.f32.mrb[0].mxu0
        %673 = vmatprep.mubr.bf16.mxu0 0
        %674 = vmatmul.mubr.bf16.gmra.mrb[0].mxu0 %v556
        %v675 = vpop.f32.mrb[0].mxu0
        %v676 = vadd.f32 0.0, %v675
        %v677 = vpop.f32.mrb[0].mxu0
        %v678 = vpop.f32.mrb[0].mxu0
        %v679 = vadd.f32 0.0, %v678
        %v680 = vpop.f32.mrb[0].mxu0
        %681 = vmatprep.mubr.bf16.mxu0 0
        %682 = vmatmul.mubr.bf16.gmra.mrb[0].mxu0 %v559
        %v683 = vpop.f32.mrb[0].mxu0
        %v684 = vadd.f32 0.0, %v683
        %v685 = vpop.f32.mrb[0].mxu0
        %v686 = vpop.f32.mrb[0].mxu0
        %v687 = vadd.f32 0.0, %v686
        %v688 = vpop.f32.mrb[0].mxu0
        %689 = vmatprep.mubr.bf16.mxu0 0
        %690 = vmatmul.mubr.bf16.gmra.mrb[0].mxu0 %v562
        %v691 = vpop.f32.mrb[0].mxu0
        %v692 = vadd.f32 0.0, %v691
        %v693 = vpop.f32.mrb[0].mxu0
        %v694 = vpop.f32.mrb[0].mxu0
        %v695 = vadd.f32 0.0, %v694
        %v696 = vpop.f32.mrb[0].mxu0
        %697 = vmatprep.mubr.bf16.mxu0 0
        %698 = vmatmul.mubr.bf16.gmra.mrb[0].mxu0 %v565
        %v699 = vpop.f32.mrb[0].mxu0
        %v700 = vadd.f32 0.0, %v699
        %v701 = vpop.f32.mrb[0].mxu0
        %v702 = vpop.f32.mrb[0].mxu0
        %v703 = vadd.f32 0.0, %v702
        %v704 = vpop.f32.mrb[0].mxu0
        %705 = vmatprep.mubr.bf16.mxu0 0
        %706 = vmatmul.mubr.bf16.gmra.mrb[0].mxu0 %v568
        %v707 = vpop.f32.mrb[0].mxu0
        %v708 = vadd.f32 0.0, %v707
        %v709 = vpop.f32.mrb[0].mxu0
        %v710 = vpop.f32.mrb[0].mxu0
        %v711 = vadd.f32 0.0, %v710
        %v712 = vpop.f32.mrb[0].mxu0
        %713 = vdwg.mxu0
        %v714 = vld [vmem:[%s360] sm:$0xf]
        %v715 = vld [vmem:[%s360 + $0x4] sm:$0xf]
        %v716 = vld [vmem:[%s360 + $0x8] sm:$0xf]
        %v717 = vld [vmem:[%s360 + $0xc] sm:$0xf]
        %v718 = vld [vmem:[%s360 + $0x10] sm:$0xf]
        %v719 = vld [vmem:[%s360 + $0x14] sm:$0xf]
        %v720 = vld [vmem:[%s360 + $0x18] sm:$0xf]
        %v721 = vld [vmem:[%s360 + $0x1c] sm:$0xf]
        %v722 = vld [vmem:[%s360 + $0x20] sm:$0xf]
        %v723 = vld [vmem:[%s360 + $0x24] sm:$0xf]
        %v724 = vld [vmem:[%s360 + $0x28] sm:$0xf]
        %v725 = vld [vmem:[%s360 + $0x2c] sm:$0xf]
        %v726 = vld [vmem:[%s360 + $0x30] sm:$0xf]
        %v727 = vld [vmem:[%s360 + $0x34] sm:$0xf]
        %v728 = vld [vmem:[%s360 + $0x38] sm:$0xf]
        %v729 = vld [vmem:[%s360 + $0x3c] sm:$0xf]
        %v730 = vld [vmem:[%s360 + $0x40] sm:$0xf]
        %v731 = vld [vmem:[%s360 + $0x44] sm:$0xf]
        %v732 = vld [vmem:[%s360 + $0x48] sm:$0xf]
        %v733 = vld [vmem:[%s360 + $0x4c] sm:$0xf]
        %v734 = vld [vmem:[%s360 + $0x50] sm:$0xf]
        %v735 = vld [vmem:[%s360 + $0x54] sm:$0xf]
        %v736 = vld [vmem:[%s360 + $0x58] sm:$0xf]
        %v737 = vld [vmem:[%s360 + $0x5c] sm:$0xf]
        %v738 = vld [vmem:[%s360 + $0x60] sm:$0xf]
        %v739 = vld [vmem:[%s360 + $0x64] sm:$0xf]
        %v766 = vunpack.c.l.b16 %v714
        %v767 = vunpack.c.l.b16 %v715
        %v768 = vunpack.c.l.b16 %v716
        %v769 = vunpack.c.l.b16 %v717
        %v770 = vunpack.c.l.b16 %v718
        %v771 = vunpack.c.l.b16 %v719
        %v772 = vunpack.c.l.b16 %v720
        %v773 = vunpack.c.l.b16 %v721
        %v774 = vunpack.c.l.b16 %v722
        %v775 = vunpack.c.l.b16 %v723
        %v776 = vunpack.c.l.b16 %v724
        %v777 = vunpack.c.l.b16 %v725
        %v778 = vunpack.c.l.b16 %v726
        %v779 = vunpack.c.l.b16 %v727
        %v780 = vunpack.c.l.b16 %v728
        %v781 = vunpack.c.l.b16 %v729
        %v782 = vunpack.c.l.b16 %v730
        %v783 = vunpack.c.l.b16 %v731
        %v784 = vunpack.c.l.b16 %v732
        %v785 = vunpack.c.l.b16 %v733
        %v786 = vunpack.c.l.b16 %v734
        %v787 = vunpack.c.l.b16 %v735
        %v788 = vunpack.c.l.b16 %v736
        %v789 = vunpack.c.l.b16 %v737
        %v790 = vunpack.c.l.b16 %v738
        %v791 = vunpack.c.l.b16 %v739
        %v792 = vpack.c.b16 %v767, %v766
        %v793 = vpack.c.b16 %v769, %v768
        %v794 = vpack.c.b16 %v771, %v770
        %v795 = vpack.c.b16 %v773, %v772
        %v796 = vpack.c.b16 %v775, %v774
        %v797 = vpack.c.b16 %v777, %v776
        %v798 = vpack.c.b16 %v779, %v778
        %v799 = vpack.c.b16 %v781, %v780
        %v800 = vpack.c.b16 %v783, %v782
        %v801 = vpack.c.b16 %v785, %v784
        %v802 = vpack.c.b16 %v787, %v786
        %v803 = vpack.c.b16 %v789, %v788
        %v804 = vpack.c.b16 %v791, %v790
        %v806 = vsel %vm530, %v792, 0
        %v809 = vsel %vm530, %v793, 0
        %v812 = vsel %vm530, %v794, 0
        %v815 = vsel %vm530, %v795, 0
        %v818 = vsel %vm530, %v796, 0
        %v821 = vsel %vm530, %v797, 0
        %v824 = vsel %vm530, %v798, 0
        %v827 = vsel %vm530, %v799, 0
        %v830 = vsel %vm530, %v800, 0
        %v833 = vsel %vm530, %v801, 0
        %v836 = vsel %vm530, %v802, 0
        %v839 = vsel %vm530, %v803, 0
        %v842 = vsel %vm530, %v804, 0
        %844 = vmatprep.subr.bf16.mxu0 0
        %845 = vmatpush1.bf16.msra.mxu0 %v521
        %846 = vmatprep.subr.bf16.mxu0 0
        %847 = vmatpush1.bf16.msra.mxu0 %v522
        %848 = vmatprep.subr.bf16.mxu0 0
        %849 = vmatpush1.bf16.msra.mxu0 %v523
        %850 = vmatprep.subr.bf16.mxu0 0
        %851 = vmatpush1.bf16.msra.mxu0 %v524
        %852 = vmatprep.subr.bf16.mxu0 0
        %853 = vmatpush1.bf16.msra.mxu0 %v575
        %854 = vmatprep.subr.bf16.mxu0 0
        %855 = vmatpush1.bf16.msra.mxu0 0
        %856 = vmatprep.subr.bf16.mxu0 0
        %857 = vmatpush1.bf16.msra.mxu0 0
        %858 = vmatprep.subr.bf16.mxu0 0
        %859 = vmatpush1.bf16.msra.mxu0 0
        %860 = vmatprep.subr.bf16.mxu0 0
        %861 = vmatpush1.bf16.msra.mxu0 0
        %862 = vmatprep.subr.bf16.mxu0 0
        %863 = vmatpush1.bf16.msra.mxu0 0
        %864 = vmatprep.subr.bf16.mxu0 0
        %865 = vmatpush1.bf16.msra.mxu0 0
        %866 = vmatprep.subr.bf16.mxu0 0
        %867 = vmatpush1.bf16.msra.mxu0 0
        %868 = vmatprep.subr.bf16.mxu0 0
        %869 = vmatpush1.bf16.msra.mxu0 0
        %870 = vmatprep.subr.bf16.mxu0 0
        %871 = vmatpush1.bf16.msra.mxu0 0
        %872 = vmatprep.subr.bf16.mxu0 0
        %873 = vmatpush1.bf16.msra.mxu0 0
        %874 = vmatprep.subr.bf16.mxu0 0
        %875 = vmatpush1.bf16.msra.mxu0 0
        %876 = vmatprep.mubr.bf16.mxu0 0
        %877 = vmatmul.mubr.bf16.gmra.mrb[0].mxu0 %v806
        %v878 = vpop.f32.mrb[0].mxu0
        %v879 = vadd.f32 0.0, %v878
        %v880 = vpop.f32.mrb[0].mxu0
        %v881 = vpop.f32.mrb[0].mxu0
        %v882 = vadd.f32 0.0, %v881
        %v883 = vpop.f32.mrb[0].mxu0
        %884 = vmatprep.mubr.bf16.mxu0 0
        %885 = vmatmul.mubr.bf16.gmra.mrb[0].mxu0 %v809
        %v886 = vpop.f32.mrb[0].mxu0
        %v887 = vadd.f32 0.0, %v886
        %v888 = vpop.f32.mrb[0].mxu0
        %v889 = vpop.f32.mrb[0].mxu0
        %v890 = vadd.f32 0.0, %v889
        %v891 = vpop.f32.mrb[0].mxu0
        %892 = vmatprep.mubr.bf16.mxu0 0
        %893 = vmatmul.mubr.bf16.gmra.mrb[0].mxu0 %v812
        %v894 = vpop.f32.mrb[0].mxu0
        %v895 = vadd.f32 0.0, %v894
        %v896 = vpop.f32.mrb[0].mxu0
        %v897 = vpop.f32.mrb[0].mxu0
        %v898 = vadd.f32 0.0, %v897
        %v899 = vpop.f32.mrb[0].mxu0
        %900 = vmatprep.mubr.bf16.mxu0 0
        %901 = vmatmul.mubr.bf16.gmra.mrb[0].mxu0 %v815
        %v902 = vpop.f32.mrb[0].mxu0
        %v903 = vadd.f32 0.0, %v902
        %v904 = vpop.f32.mrb[0].mxu0
        %v905 = vpop.f32.mrb[0].mxu0
        %v906 = vadd.f32 0.0, %v905
        %v907 = vpop.f32.mrb[0].mxu0
        %908 = vmatprep.mubr.bf16.mxu0 0
        %909 = vmatmul.mubr.bf16.gmra.mrb[0].mxu0 %v818
        %v910 = vpop.f32.mrb[0].mxu0
        %v911 = vadd.f32 0.0, %v910
        %v912 = vpop.f32.mrb[0].mxu0
        %v913 = vpop.f32.mrb[0].mxu0
        %v914 = vadd.f32 0.0, %v913
        %v915 = vpop.f32.mrb[0].mxu0
        %916 = vmatprep.mubr.bf16.mxu0 0
        %917 = vmatmul.mubr.bf16.gmra.mrb[0].mxu0 %v821
        %v918 = vpop.f32.mrb[0].mxu0
        %v919 = vadd.f32 0.0, %v918
        %v920 = vpop.f32.mrb[0].mxu0
        %v921 = vpop.f32.mrb[0].mxu0
        %v922 = vadd.f32 0.0, %v921
        %v923 = vpop.f32.mrb[0].mxu0
        %924 = vmatprep.mubr.bf16.mxu0 0
        %925 = vmatmul.mubr.bf16.gmra.mrb[0].mxu0 %v824
        %v926 = vpop.f32.mrb[0].mxu0
        %v927 = vadd.f32 0.0, %v926
        %v928 = vpop.f32.mrb[0].mxu0
        %v929 = vpop.f32.mrb[0].mxu0
        %v930 = vadd.f32 0.0, %v929
        %v931 = vpop.f32.mrb[0].mxu0
        %932 = vmatprep.mubr.bf16.mxu0 0
        %933 = vmatmul.mubr.bf16.gmra.mrb[0].mxu0 %v827
        %v934 = vpop.f32.mrb[0].mxu0
        %v935 = vadd.f32 0.0, %v934
        %v936 = vpop.f32.mrb[0].mxu0
        %v937 = vpop.f32.mrb[0].mxu0
        %v938 = vadd.f32 0.0, %v937
        %v939 = vpop.f32.mrb[0].mxu0
        %940 = vmatprep.mubr.bf16.mxu0 0
        %941 = vmatmul.mubr.bf16.gmra.mrb[0].mxu0 %v830
        %v942 = vpop.f32.mrb[0].mxu0
        %v943 = vadd.f32 0.0, %v942
        %v944 = vpop.f32.mrb[0].mxu0
        %v945 = vpop.f32.mrb[0].mxu0
        %v946 = vadd.f32 0.0, %v945
        %v947 = vpop.f32.mrb[0].mxu0
        %948 = vmatprep.mubr.bf16.mxu0 0
        %949 = vmatmul.mubr.bf16.gmra.mrb[0].mxu0 %v833
        %v950 = vpop.f32.mrb[0].mxu0
        %v951 = vadd.f32 0.0, %v950
        %v952 = vpop.f32.mrb[0].mxu0
        %v953 = vpop.f32.mrb[0].mxu0
        %v954 = vadd.f32 0.0, %v953
        %v955 = vpop.f32.mrb[0].mxu0
        %956 = vmatprep.mubr.bf16.mxu0 0
        %957 = vmatmul.mubr.bf16.gmra.mrb[0].mxu0 %v836
        %v958 = vpop.f32.mrb[0].mxu0
        %v959 = vadd.f32 0.0, %v958
        %v960 = vpop.f32.mrb[0].mxu0
        %v961 = vpop.f32.mrb[0].mxu0
        %v962 = vadd.f32 0.0, %v961
        %v963 = vpop.f32.mrb[0].mxu0
        %964 = vmatprep.mubr.bf16.mxu0 0
        %965 = vmatmul.mubr.bf16.gmra.mrb[0].mxu0 %v839
        %v966 = vpop.f32.mrb[0].mxu0
        %v967 = vadd.f32 0.0, %v966
        %v968 = vpop.f32.mrb[0].mxu0
        %v969 = vpop.f32.mrb[0].mxu0
        %v970 = vadd.f32 0.0, %v969
        %v971 = vpop.f32.mrb[0].mxu0
        %972 = vmatprep.mubr.bf16.mxu0 0
        %973 = vmatmul.mubr.bf16.gmra.mrb[0].mxu0 %v842
        %v974 = vpop.f32.mrb[0].mxu0
        %v975 = vadd.f32 0.0, %v974
        %v976 = vpop.f32.mrb[0].mxu0
        %v977 = vpop.f32.mrb[0].mxu0
        %v978 = vadd.f32 0.0, %v977
        %v979 = vpop.f32.mrb[0].mxu0
        %980 = vdwg.mxu0
        %v981 = vmax.f32 %v612, %v879
        %v982 = vmax.f32 %v615, %v882
        %v983 = vmax.f32 %v620, %v887
        %v984 = vmax.f32 %v623, %v890
        %v985 = vmax.f32 %v628, %v895
        %v986 = vmax.f32 %v631, %v898
        %v987 = vmax.f32 %v636, %v903
        %v988 = vmax.f32 %v639, %v906
        %v989 = vmax.f32 %v644, %v911
        %v990 = vmax.f32 %v647, %v914
        %v991 = vmax.f32 %v652, %v919
        %v992 = vmax.f32 %v655, %v922
        %v993 = vmax.f32 %v660, %v927
        %v994 = vmax.f32 %v663, %v930
        %v995 = vmax.f32 %v668, %v935
        %v996 = vmax.f32 %v671, %v938
        %v997 = vmax.f32 %v676, %v943
        %v998 = vmax.f32 %v679, %v946
        %v999 = vmax.f32 %v684, %v951
        %v1000 = vmax.f32 %v687, %v954
        %v1001 = vmax.f32 %v692, %v959
        %v1002 = vmax.f32 %v695, %v962
        %v1003 = vmax.f32 %v700, %v967
        %v1004 = vmax.f32 %v703, %v970
        %v1005 = vmax.f32 %v708, %v975
        %v1006 = vmax.f32 %v711, %v978
        %v1007 = vld [vmem:[%s374] sm:$0xf]
        %v1008 = vld [vmem:[%s374 + $0x4] sm:$0xf]
        %v1009 = vld [vmem:[%s374 + $0x8] sm:$0xf]
        %v1010 = vld [vmem:[%s374 + $0xc] sm:$0xf]
        %v1011 = vld [vmem:[%s374 + $0x10] sm:$0xf]
        %v1012 = vld [vmem:[%s374 + $0x14] sm:$0xf]
        %v1013 = vld [vmem:[%s374 + $0x18] sm:$0xf]
        %v1014 = vld [vmem:[%s374 + $0x1c] sm:$0xf]
        %v1015 = vld [vmem:[%s374 + $0x20] sm:$0xf]
        %v1016 = vld [vmem:[%s374 + $0x24] sm:$0xf]
        %v1017 = vld [vmem:[%s374 + $0x28] sm:$0xf]
        %v1018 = vld [vmem:[%s374 + $0x2c] sm:$0xf]
        %v1019 = vld [vmem:[%s374 + $0x30] sm:$0xf]
        %v1020 = vld [vmem:[%s374 + $0x34] sm:$0xf]
        %v1021 = vld [vmem:[%s374 + $0x38] sm:$0xf]
        %v1022 = vld [vmem:[%s374 + $0x3c] sm:$0xf]
        %v1023 = vld [vmem:[%s374 + $0x40] sm:$0xf]
        %v1024 = vld [vmem:[%s374 + $0x44] sm:$0xf]
        %v1025 = vld [vmem:[%s374 + $0x48] sm:$0xf]
        %v1026 = vld [vmem:[%s374 + $0x4c] sm:$0xf]
        %v1027 = vld [vmem:[%s374 + $0x50] sm:$0xf]
        %v1028 = vld [vmem:[%s374 + $0x54] sm:$0xf]
        %v1029 = vld [vmem:[%s374 + $0x58] sm:$0xf]
        %v1030 = vld [vmem:[%s374 + $0x5c] sm:$0xf]
        %v1031 = vld [vmem:[%s374 + $0x60] sm:$0xf]
        %v1032 = vld [vmem:[%s374 + $0x64] sm:$0xf]
        %v1059 = vunpack.c.l.b16 %v1007
        %v1060 = vunpack.c.l.b16 %v1008
        %v1061 = vunpack.c.l.b16 %v1009
        %v1062 = vunpack.c.l.b16 %v1010
        %v1063 = vunpack.c.l.b16 %v1011
        %v1064 = vunpack.c.l.b16 %v1012
        %v1065 = vunpack.c.l.b16 %v1013
        %v1066 = vunpack.c.l.b16 %v1014
        %v1067 = vunpack.c.l.b16 %v1015
        %v1068 = vunpack.c.l.b16 %v1016
        %v1069 = vunpack.c.l.b16 %v1017
        %v1070 = vunpack.c.l.b16 %v1018
        %v1071 = vunpack.c.l.b16 %v1019
        %v1072 = vunpack.c.l.b16 %v1020
        %v1073 = vunpack.c.l.b16 %v1021
        %v1074 = vunpack.c.l.b16 %v1022
        %v1075 = vunpack.c.l.b16 %v1023
        %v1076 = vunpack.c.l.b16 %v1024
        %v1077 = vunpack.c.l.b16 %v1025
        %v1078 = vunpack.c.l.b16 %v1026
        %v1079 = vunpack.c.l.b16 %v1027
        %v1080 = vunpack.c.l.b16 %v1028
        %v1081 = vunpack.c.l.b16 %v1029
        %v1082 = vunpack.c.l.b16 %v1030
        %v1083 = vunpack.c.l.b16 %v1031
        %v1084 = vunpack.c.l.b16 %v1032
        %v1085 = vpack.c.b16 %v1060, %v1059
        %v1086 = vpack.c.b16 %v1062, %v1061
        %v1087 = vpack.c.b16 %v1064, %v1063
        %v1088 = vpack.c.b16 %v1066, %v1065
        %v1089 = vpack.c.b16 %v1068, %v1067
        %v1090 = vpack.c.b16 %v1070, %v1069
        %v1091 = vpack.c.b16 %v1072, %v1071
        %v1092 = vpack.c.b16 %v1074, %v1073
        %v1093 = vpack.c.b16 %v1076, %v1075
        %v1094 = vpack.c.b16 %v1078, %v1077
        %v1095 = vpack.c.b16 %v1080, %v1079
        %v1096 = vpack.c.b16 %v1082, %v1081
        %v1097 = vpack.c.b16 %v1084, %v1083
        %v1099 = vsel %vm530, %v1085, 0
        %v1102 = vsel %vm530, %v1086, 0
        %v1105 = vsel %vm530, %v1087, 0
        %v1108 = vsel %vm530, %v1088, 0
        %v1111 = vsel %vm530, %v1089, 0
        %v1114 = vsel %vm530, %v1090, 0
        %v1117 = vsel %vm530, %v1091, 0
        %v1120 = vsel %vm530, %v1092, 0
        %v1123 = vsel %vm530, %v1093, 0
        %v1126 = vsel %vm530, %v1094, 0
        %v1129 = vsel %vm530, %v1095, 0
        %v1132 = vsel %vm530, %v1096, 0
        %v1135 = vsel %vm530, %v1097, 0
        %1137 = vmatprep.subr.bf16.mxu0 0
        %1138 = vmatpush1.bf16.msra.mxu0 %v521
        %1139 = vmatprep.subr.bf16.mxu0 0
        %1140 = vmatpush1.bf16.msra.mxu0 %v522
        %1141 = vmatprep.subr.bf16.mxu0 0
        %1142 = vmatpush1.bf16.msra.mxu0 %v523
        %1143 = vmatprep.subr.bf16.mxu0 0
        %1144 = vmatpush1.bf16.msra.mxu0 %v524
        %1145 = vmatprep.subr.bf16.mxu0 0
        %1146 = vmatpush1.bf16.msra.mxu0 %v575
        %1147 = vmatprep.subr.bf16.mxu0 0
        %1148 = vmatpush1.bf16.msra.mxu0 0
        %1149 = vmatprep.subr.bf16.mxu0 0
        %1150 = vmatpush1.bf16.msra.mxu0 0
        %1151 = vmatprep.subr.bf16.mxu0 0
        %1152 = vmatpush1.bf16.msra.mxu0 0
        %1153 = vmatprep.subr.bf16.mxu0 0
        %1154 = vmatpush1.bf16.msra.mxu0 0
        %1155 = vmatprep.subr.bf16.mxu0 0
        %1156 = vmatpush1.bf16.msra.mxu0 0
        %1157 = vmatprep.subr.bf16.mxu0 0
        %1158 = vmatpush1.bf16.msra.mxu0 0
        %1159 = vmatprep.subr.bf16.mxu0 0
        %1160 = vmatpush1.bf16.msra.mxu0 0
        %1161 = vmatprep.subr.bf16.mxu0 0
        %1162 = vmatpush1.bf16.msra.mxu0 0
        %1163 = vmatprep.subr.bf16.mxu0 0
        %1164 = vmatpush1.bf16.msra.mxu0 0
        %1165 = vmatprep.subr.bf16.mxu0 0
        %1166 = vmatpush1.bf16.msra.mxu0 0
        %1167 = vmatprep.subr.bf16.mxu0 0
        %1168 = vmatpush1.bf16.msra.mxu0 0
        %1169 = vmatprep.mubr.bf16.mxu0 0
        %1170 = vmatmul.mubr.bf16.gmra.mrb[0].mxu0 %v1099
        %v1171 = vpop.f32.mrb[0].mxu0
        %v1172 = vadd.f32 0.0, %v1171
        %v1173 = vpop.f32.mrb[0].mxu0
        %v1174 = vpop.f32.mrb[0].mxu0
        %v1175 = vadd.f32 0.0, %v1174
        %v1176 = vpop.f32.mrb[0].mxu0
        %1177 = vmatprep.mubr.bf16.mxu0 0
        %1178 = vmatmul.mubr.bf16.gmra.mrb[0].mxu0 %v1102
        %v1179 = vpop.f32.mrb[0].mxu0
        %v1180 = vadd.f32 0.0, %v1179
        %v1181 = vpop.f32.mrb[0].mxu0
        %v1182 = vpop.f32.mrb[0].mxu0
        %v1183 = vadd.f32 0.0, %v1182
        %v1184 = vpop.f32.mrb[0].mxu0
        %1185 = vmatprep.mubr.bf16.mxu0 0
        %1186 = vmatmul.mubr.bf16.gmra.mrb[0].mxu0 %v1105
        %v1187 = vpop.f32.mrb[0].mxu0
        %v1188 = vadd.f32 0.0, %v1187
        %v1189 = vpop.f32.mrb[0].mxu0
        %v1190 = vpop.f32.mrb[0].mxu0
        %v1191 = vadd.f32 0.0, %v1190
        %v1192 = vpop.f32.mrb[0].mxu0
        %1193 = vmatprep.mubr.bf16.mxu0 0
        %1194 = vmatmul.mubr.bf16.gmra.mrb[0].mxu0 %v1108
        %v1195 = vpop.f32.mrb[0].mxu0
        %v1196 = vadd.f32 0.0, %v1195
        %v1197 = vpop.f32.mrb[0].mxu0
        %v1198 = vpop.f32.mrb[0].mxu0
        %v1199 = vadd.f32 0.0, %v1198
        %v1200 = vpop.f32.mrb[0].mxu0
        %1201 = vmatprep.mubr.bf16.mxu0 0
        %1202 = vmatmul.mubr.bf16.gmra.mrb[0].mxu0 %v1111
        %v1203 = vpop.f32.mrb[0].mxu0
        %v1204 = vadd.f32 0.0, %v1203
        %v1205 = vpop.f32.mrb[0].mxu0
        %v1206 = vpop.f32.mrb[0].mxu0
        %v1207 = vadd.f32 0.0, %v1206
        %v1208 = vpop.f32.mrb[0].mxu0
        %1209 = vmatprep.mubr.bf16.mxu0 0
        %1210 = vmatmul.mubr.bf16.gmra.mrb[0].mxu0 %v1114
        %v1211 = vpop.f32.mrb[0].mxu0
        %v1212 = vadd.f32 0.0, %v1211
        %v1213 = vpop.f32.mrb[0].mxu0
        %v1214 = vpop.f32.mrb[0].mxu0
        %v1215 = vadd.f32 0.0, %v1214
        %v1216 = vpop.f32.mrb[0].mxu0
        %1217 = vmatprep.mubr.bf16.mxu0 0
        %1218 = vmatmul.mubr.bf16.gmra.mrb[0].mxu0 %v1117
        %v1219 = vpop.f32.mrb[0].mxu0
        %v1220 = vadd.f32 0.0, %v1219
        %v1221 = vpop.f32.mrb[0].mxu0
        %v1222 = vpop.f32.mrb[0].mxu0
        %v1223 = vadd.f32 0.0, %v1222
        %v1224 = vpop.f32.mrb[0].mxu0
        %1225 = vmatprep.mubr.bf16.mxu0 0
        %1226 = vmatmul.mubr.bf16.gmra.mrb[0].mxu0 %v1120
        %v1227 = vpop.f32.mrb[0].mxu0
        %v1228 = vadd.f32 0.0, %v1227
        %v1229 = vpop.f32.mrb[0].mxu0
        %v1230 = vpop.f32.mrb[0].mxu0
        %v1231 = vadd.f32 0.0, %v1230
        %v1232 = vpop.f32.mrb[0].mxu0
        %1233 = vmatprep.mubr.bf16.mxu0 0
        %1234 = vmatmul.mubr.bf16.gmra.mrb[0].mxu0 %v1123
        %v1235 = vpop.f32.mrb[0].mxu0
        %v1236 = vadd.f32 0.0, %v1235
        %v1237 = vpop.f32.mrb[0].mxu0
        %v1238 = vpop.f32.mrb[0].mxu0
        %v1239 = vadd.f32 0.0, %v1238
        %v1240 = vpop.f32.mrb[0].mxu0
        %1241 = vmatprep.mubr.bf16.mxu0 0
        %1242 = vmatmul.mubr.bf16.gmra.mrb[0].mxu0 %v1126
        %v1243 = vpop.f32.mrb[0].mxu0
        %v1244 = vadd.f32 0.0, %v1243
        %v1245 = vpop.f32.mrb[0].mxu0
        %v1246 = vpop.f32.mrb[0].mxu0
        %v1247 = vadd.f32 0.0, %v1246
        %v1248 = vpop.f32.mrb[0].mxu0
        %1249 = vmatprep.mubr.bf16.mxu0 0
        %1250 = vmatmul.mubr.bf16.gmra.mrb[0].mxu0 %v1129
        %v1251 = vpop.f32.mrb[0].mxu0
        %v1252 = vadd.f32 0.0, %v1251
        %v1253 = vpop.f32.mrb[0].mxu0
        %v1254 = vpop.f32.mrb[0].mxu0
        %v1255 = vadd.f32 0.0, %v1254
        %v1256 = vpop.f32.mrb[0].mxu0
        %1257 = vmatprep.mubr.bf16.mxu0 0
        %1258 = vmatmul.mubr.bf16.gmra.mrb[0].mxu0 %v1132
        %v1259 = vpop.f32.mrb[0].mxu0
        %v1260 = vadd.f32 0.0, %v1259
        %v1261 = vpop.f32.mrb[0].mxu0
        %v1262 = vpop.f32.mrb[0].mxu0
        %v1263 = vadd.f32 0.0, %v1262
        %v1264 = vpop.f32.mrb[0].mxu0
        %1265 = vmatprep.mubr.bf16.mxu0 0
        %1266 = vmatmul.mubr.bf16.gmra.mrb[0].mxu0 %v1135
        %v1267 = vpop.f32.mrb[0].mxu0
        %v1268 = vadd.f32 0.0, %v1267
        %v1269 = vpop.f32.mrb[0].mxu0
        %v1270 = vpop.f32.mrb[0].mxu0
        %v1271 = vadd.f32 0.0, %v1270
        %v1272 = vpop.f32.mrb[0].mxu0
        %1273 = vdwg.mxu0
        %v1274 = vld [vmem:[%s388] sm:$0xf]
        %v1275 = vld [vmem:[%s388 + $0x4] sm:$0xf]
        %v1276 = vld [vmem:[%s388 + $0x8] sm:$0xf]
        %v1277 = vld [vmem:[%s388 + $0xc] sm:$0xf]
        %v1278 = vld [vmem:[%s388 + $0x10] sm:$0xf]
        %v1279 = vld [vmem:[%s388 + $0x14] sm:$0xf]
        %v1280 = vld [vmem:[%s388 + $0x18] sm:$0xf]
        %v1281 = vld [vmem:[%s388 + $0x1c] sm:$0xf]
        %v1282 = vld [vmem:[%s388 + $0x20] sm:$0xf]
        %v1283 = vld [vmem:[%s388 + $0x24] sm:$0xf]
        %v1284 = vld [vmem:[%s388 + $0x28] sm:$0xf]
        %v1285 = vld [vmem:[%s388 + $0x2c] sm:$0xf]
        %v1286 = vld [vmem:[%s388 + $0x30] sm:$0xf]
        %v1287 = vld [vmem:[%s388 + $0x34] sm:$0xf]
        %v1288 = vld [vmem:[%s388 + $0x38] sm:$0xf]
        %v1289 = vld [vmem:[%s388 + $0x3c] sm:$0xf]
        %v1290 = vld [vmem:[%s388 + $0x40] sm:$0xf]
        %v1291 = vld [vmem:[%s388 + $0x44] sm:$0xf]
        %v1292 = vld [vmem:[%s388 + $0x48] sm:$0xf]
        %v1293 = vld [vmem:[%s388 + $0x4c] sm:$0xf]
        %v1294 = vld [vmem:[%s388 + $0x50] sm:$0xf]
        %v1295 = vld [vmem:[%s388 + $0x54] sm:$0xf]
        %v1296 = vld [vmem:[%s388 + $0x58] sm:$0xf]
        %v1297 = vld [vmem:[%s388 + $0x5c] sm:$0xf]
        %v1298 = vld [vmem:[%s388 + $0x60] sm:$0xf]
        %v1299 = vld [vmem:[%s388 + $0x64] sm:$0xf]
        %v1326 = vunpack.c.l.b16 %v1274
        %v1327 = vunpack.c.l.b16 %v1275
        %v1328 = vunpack.c.l.b16 %v1276
        %v1329 = vunpack.c.l.b16 %v1277
        %v1330 = vunpack.c.l.b16 %v1278
        %v1331 = vunpack.c.l.b16 %v1279
        %v1332 = vunpack.c.l.b16 %v1280
        %v1333 = vunpack.c.l.b16 %v1281
        %v1334 = vunpack.c.l.b16 %v1282
        %v1335 = vunpack.c.l.b16 %v1283
        %v1336 = vunpack.c.l.b16 %v1284
        %v1337 = vunpack.c.l.b16 %v1285
        %v1338 = vunpack.c.l.b16 %v1286
        %v1339 = vunpack.c.l.b16 %v1287
        %v1340 = vunpack.c.l.b16 %v1288
        %v1341 = vunpack.c.l.b16 %v1289
        %v1342 = vunpack.c.l.b16 %v1290
        %v1343 = vunpack.c.l.b16 %v1291
        %v1344 = vunpack.c.l.b16 %v1292
        %v1345 = vunpack.c.l.b16 %v1293
        %v1346 = vunpack.c.l.b16 %v1294
        %v1347 = vunpack.c.l.b16 %v1295
        %v1348 = vunpack.c.l.b16 %v1296
        %v1349 = vunpack.c.l.b16 %v1297
        %v1350 = vunpack.c.l.b16 %v1298
        %v1351 = vunpack.c.l.b16 %v1299
        %v1352 = vpack.c.b16 %v1327, %v1326
        %v1353 = vpack.c.b16 %v1329, %v1328
        %v1354 = vpack.c.b16 %v1331, %v1330
        %v1355 = vpack.c.b16 %v1333, %v1332
        %v1356 = vpack.c.b16 %v1335, %v1334
        %v1357 = vpack.c.b16 %v1337, %v1336
        %v1358 = vpack.c.b16 %v1339, %v1338
        %v1359 = vpack.c.b16 %v1341, %v1340
        %v1360 = vpack.c.b16 %v1343, %v1342
        %v1361 = vpack.c.b16 %v1345, %v1344
        %v1362 = vpack.c.b16 %v1347, %v1346
        %v1363 = vpack.c.b16 %v1349, %v1348
        %v1364 = vpack.c.b16 %v1351, %v1350
        %v1366 = vsel %vm530, %v1352, 0
        %v1369 = vsel %vm530, %v1353, 0
        %v1372 = vsel %vm530, %v1354, 0
        %v1375 = vsel %vm530, %v1355, 0
        %v1378 = vsel %vm530, %v1356, 0
        %v1381 = vsel %vm530, %v1357, 0
        %v1384 = vsel %vm530, %v1358, 0
        %v1387 = vsel %vm530, %v1359, 0
        %v1390 = vsel %vm530, %v1360, 0
        %v1393 = vsel %vm530, %v1361, 0
        %v1396 = vsel %vm530, %v1362, 0
        %v1399 = vsel %vm530, %v1363, 0
        %v1402 = vsel %vm530, %v1364, 0
        %1404 = vmatprep.subr.bf16.mxu0 0
        %1405 = vmatpush1.bf16.msra.mxu0 %v521
        %1406 = vmatprep.subr.bf16.mxu0 0
        %1407 = vmatpush1.bf16.msra.mxu0 %v522
        %1408 = vmatprep.subr.bf16.mxu0 0
        %1409 = vmatpush1.bf16.msra.mxu0 %v523
        %1410 = vmatprep.subr.bf16.mxu0 0
        %1411 = vmatpush1.bf16.msra.mxu0 %v524
        %1412 = vmatprep.subr.bf16.mxu0 0
        %1413 = vmatpush1.bf16.msra.mxu0 %v575
        %1414 = vmatprep.subr.bf16.mxu0 0
        %1415 = vmatpush1.bf16.msra.mxu0 0
        %1416 = vmatprep.subr.bf16.mxu0 0
        %1417 = vmatpush1.bf16.msra.mxu0 0
        %1418 = vmatprep.subr.bf16.mxu0 0
        %1419 = vmatpush1.bf16.msra.mxu0 0
        %1420 = vmatprep.subr.bf16.mxu0 0
        %1421 = vmatpush1.bf16.msra.mxu0 0
        %1422 = vmatprep.subr.bf16.mxu0 0
        %1423 = vmatpush1.bf16.msra.mxu0 0
        %1424 = vmatprep.subr.bf16.mxu0 0
        %1425 = vmatpush1.bf16.msra.mxu0 0
        %1426 = vmatprep.subr.bf16.mxu0 0
        %1427 = vmatpush1.bf16.msra.mxu0 0
        %1428 = vmatprep.subr.bf16.mxu0 0
        %1429 = vmatpush1.bf16.msra.mxu0 0
        %1430 = vmatprep.subr.bf16.mxu0 0
        %1431 = vmatpush1.bf16.msra.mxu0 0
        %1432 = vmatprep.subr.bf16.mxu0 0
        %1433 = vmatpush1.bf16.msra.mxu0 0
        %1434 = vmatprep.subr.bf16.mxu0 0
        %1435 = vmatpush1.bf16.msra.mxu0 0
        %1436 = vmatprep.mubr.bf16.mxu0 0
        %1437 = vmatmul.mubr.bf16.gmra.mrb[0].mxu0 %v1366
        %v1438 = vpop.f32.mrb[0].mxu0
        %v1439 = vadd.f32 0.0, %v1438
        %v1440 = vpop.f32.mrb[0].mxu0
        %v1441 = vpop.f32.mrb[0].mxu0
        %v1442 = vadd.f32 0.0, %v1441
        %v1443 = vpop.f32.mrb[0].mxu0
        %1444 = vmatprep.mubr.bf16.mxu0 0
        %1445 = vmatmul.mubr.bf16.gmra.mrb[0].mxu0 %v1369
        %v1446 = vpop.f32.mrb[0].mxu0
        %v1447 = vadd.f32 0.0, %v1446
        %v1448 = vpop.f32.mrb[0].mxu0
        %v1449 = vpop.f32.mrb[0].mxu0
        %v1450 = vadd.f32 0.0, %v1449
        %v1451 = vpop.f32.mrb[0].mxu0
        %1452 = vmatprep.mubr.bf16.mxu0 0
        %1453 = vmatmul.mubr.bf16.gmra.mrb[0].mxu0 %v1372
        %v1454 = vpop.f32.mrb[0].mxu0
        %v1455 = vadd.f32 0.0, %v1454
        %v1456 = vpop.f32.mrb[0].mxu0
        %v1457 = vpop.f32.mrb[0].mxu0
        %v1458 = vadd.f32 0.0, %v1457
        %v1459 = vpop.f32.mrb[0].mxu0
        %1460 = vmatprep.mubr.bf16.mxu0 0
        %1461 = vmatmul.mubr.bf16.gmra.mrb[0].mxu0 %v1375
        %v1462 = vpop.f32.mrb[0].mxu0
        %v1463 = vadd.f32 0.0, %v1462
        %v1464 = vpop.f32.mrb[0].mxu0
        %v1465 = vpop.f32.mrb[0].mxu0
        %v1466 = vadd.f32 0.0, %v1465
        %v1467 = vpop.f32.mrb[0].mxu0
        %1468 = vmatprep.mubr.bf16.mxu0 0
        %1469 = vmatmul.mubr.bf16.gmra.mrb[0].mxu0 %v1378
        %v1470 = vpop.f32.mrb[0].mxu0
        %v1471 = vadd.f32 0.0, %v1470
        %v1472 = vpop.f32.mrb[0].mxu0
        %v1473 = vpop.f32.mrb[0].mxu0
        %v1474 = vadd.f32 0.0, %v1473
        %v1475 = vpop.f32.mrb[0].mxu0
        %1476 = vmatprep.mubr.bf16.mxu0 0
        %1477 = vmatmul.mubr.bf16.gmra.mrb[0].mxu0 %v1381
        %v1478 = vpop.f32.mrb[0].mxu0
        %v1479 = vadd.f32 0.0, %v1478
        %v1480 = vpop.f32.mrb[0].mxu0
        %v1481 = vpop.f32.mrb[0].mxu0
        %v1482 = vadd.f32 0.0, %v1481
        %v1483 = vpop.f32.mrb[0].mxu0
        %1484 = vmatprep.mubr.bf16.mxu0 0
        %1485 = vmatmul.mubr.bf16.gmra.mrb[0].mxu0 %v1384
        %v1486 = vpop.f32.mrb[0].mxu0
        %v1487 = vadd.f32 0.0, %v1486
        %v1488 = vpop.f32.mrb[0].mxu0
        %v1489 = vpop.f32.mrb[0].mxu0
        %v1490 = vadd.f32 0.0, %v1489
        %v1491 = vpop.f32.mrb[0].mxu0
        %1492 = vmatprep.mubr.bf16.mxu0 0
        %1493 = vmatmul.mubr.bf16.gmra.mrb[0].mxu0 %v1387
        %v1494 = vpop.f32.mrb[0].mxu0
        %v1495 = vadd.f32 0.0, %v1494
        %v1496 = vpop.f32.mrb[0].mxu0
        %v1497 = vpop.f32.mrb[0].mxu0
        %v1498 = vadd.f32 0.0, %v1497
        %v1499 = vpop.f32.mrb[0].mxu0
        %1500 = vmatprep.mubr.bf16.mxu0 0
        %1501 = vmatmul.mubr.bf16.gmra.mrb[0].mxu0 %v1390
        %v1502 = vpop.f32.mrb[0].mxu0
        %v1503 = vadd.f32 0.0, %v1502
        %v1504 = vpop.f32.mrb[0].mxu0
        %v1505 = vpop.f32.mrb[0].mxu0
        %v1506 = vadd.f32 0.0, %v1505
        %v1507 = vpop.f32.mrb[0].mxu0
        %1508 = vmatprep.mubr.bf16.mxu0 0
        %1509 = vmatmul.mubr.bf16.gmra.mrb[0].mxu0 %v1393
        %v1510 = vpop.f32.mrb[0].mxu0
        %v1511 = vadd.f32 0.0, %v1510
        %v1512 = vpop.f32.mrb[0].mxu0
        %v1513 = vpop.f32.mrb[0].mxu0
        %v1514 = vadd.f32 0.0, %v1513
        %v1515 = vpop.f32.mrb[0].mxu0
        %1516 = vmatprep.mubr.bf16.mxu0 0
        %1517 = vmatmul.mubr.bf16.gmra.mrb[0].mxu0 %v1396
        %v1518 = vpop.f32.mrb[0].mxu0
        %v1519 = vadd.f32 0.0, %v1518
        %v1520 = vpop.f32.mrb[0].mxu0
        %v1521 = vpop.f32.mrb[0].mxu0
        %v1522 = vadd.f32 0.0, %v1521
        %v1523 = vpop.f32.mrb[0].mxu0
        %1524 = vmatprep.mubr.bf16.mxu0 0
        %1525 = vmatmul.mubr.bf16.gmra.mrb[0].mxu0 %v1399
        %v1526 = vpop.f32.mrb[0].mxu0
        %v1527 = vadd.f32 0.0, %v1526
        %v1528 = vpop.f32.mrb[0].mxu0
        %v1529 = vpop.f32.mrb[0].mxu0
        %v1530 = vadd.f32 0.0, %v1529
        %v1531 = vpop.f32.mrb[0].mxu0
        %1532 = vmatprep.mubr.bf16.mxu0 0
        %1533 = vmatmul.mubr.bf16.gmra.mrb[0].mxu0 %v1402
        %v1534 = vpop.f32.mrb[0].mxu0
        %v1535 = vadd.f32 0.0, %v1534
        %v1536 = vpop.f32.mrb[0].mxu0
        %v1537 = vpop.f32.mrb[0].mxu0
        %v1538 = vadd.f32 0.0, %v1537
        %v1539 = vpop.f32.mrb[0].mxu0
        %1540 = vdwg.mxu0
        %v1541 = vmax.f32 %v1172, %v1439
        %v1542 = vmax.f32 %v1175, %v1442
        %v1543 = vmax.f32 %v1180, %v1447
        %v1544 = vmax.f32 %v1183, %v1450
        %v1545 = vmax.f32 %v1188, %v1455
        %v1546 = vmax.f32 %v1191, %v1458
        %v1547 = vmax.f32 %v1196, %v1463
        %v1548 = vmax.f32 %v1199, %v1466
        %v1549 = vmax.f32 %v1204, %v1471
        %v1550 = vmax.f32 %v1207, %v1474
        %v1551 = vmax.f32 %v1212, %v1479
        %v1552 = vmax.f32 %v1215, %v1482
        %v1553 = vmax.f32 %v1220, %v1487
        %v1554 = vmax.f32 %v1223, %v1490
        %v1555 = vmax.f32 %v1228, %v1495
        %v1556 = vmax.f32 %v1231, %v1498
        %v1557 = vmax.f32 %v1236, %v1503
        %v1558 = vmax.f32 %v1239, %v1506
        %v1559 = vmax.f32 %v1244, %v1511
        %v1560 = vmax.f32 %v1247, %v1514
        %v1561 = vmax.f32 %v1252, %v1519
        %v1562 = vmax.f32 %v1255, %v1522
        %v1563 = vmax.f32 %v1260, %v1527
        %v1564 = vmax.f32 %v1263, %v1530
        %v1565 = vmax.f32 %v1268, %v1535
        %v1566 = vmax.f32 %v1271, %v1538
        %v1567 = vmax.f32 %v981, %v1541
        %v1568 = vmax.f32 %v982, %v1542
        %v1569 = vmax.f32 %v983, %v1543
        %v1570 = vmax.f32 %v984, %v1544
        %v1571 = vmax.f32 %v985, %v1545
        %v1572 = vmax.f32 %v986, %v1546
        %v1573 = vmax.f32 %v987, %v1547
        %v1574 = vmax.f32 %v988, %v1548
        %v1575 = vmax.f32 %v989, %v1549
        %v1576 = vmax.f32 %v990, %v1550
        %v1577 = vmax.f32 %v991, %v1551
        %v1578 = vmax.f32 %v992, %v1552
        %v1579 = vmax.f32 %v993, %v1553
        %v1580 = vmax.f32 %v994, %v1554
        %v1581 = vmax.f32 %v995, %v1555
        %v1582 = vmax.f32 %v996, %v1556
        %v1583 = vmax.f32 %v997, %v1557
        %v1584 = vmax.f32 %v998, %v1558
        %v1585 = vmax.f32 %v999, %v1559
        %v1586 = vmax.f32 %v1000, %v1560
        %v1587 = vmax.f32 %v1001, %v1561
        %v1588 = vmax.f32 %v1002, %v1562
        %v1589 = vmax.f32 %v1003, %v1563
        %v1590 = vmax.f32 %v1004, %v1564
        %v1591 = vmax.f32 %v1005, %v1565
        %v1592 = vmax.f32 %v1006, %v1566
        %v1593 = vld [vmem:[%s5] sm:$0x1]
        %v1595 = vlaneseq
        %v1596 = vshrl.u32 %v1595, 7
        %v1597 = vsub.s32 0, %v1596
        %v1598 = vrot.slane %v1593, %v1597
        %v1600 = vadd.f32 %v1567, %v1598
        %v1601 = vadd.f32 %v1568, %v1598
        %v1602 = vadd.f32 %v1569, %v1598
        %v1603 = vadd.f32 %v1570, %v1598
        %v1604 = vadd.f32 %v1571, %v1598
        %v1605 = vadd.f32 %v1572, %v1598
        %v1606 = vadd.f32 %v1573, %v1598
        %v1607 = vadd.f32 %v1574, %v1598
        %v1608 = vadd.f32 %v1575, %v1598
        %v1609 = vadd.f32 %v1576, %v1598
        %v1610 = vadd.f32 %v1577, %v1598
        %v1611 = vadd.f32 %v1578, %v1598
        %v1612 = vadd.f32 %v1579, %v1598
        %v1613 = vadd.f32 %v1580, %v1598
        %v1614 = vadd.f32 %v1581, %v1598
        %v1615 = vadd.f32 %v1582, %v1598
        %v1616 = vadd.f32 %v1583, %v1598
        %v1617 = vadd.f32 %v1584, %v1598
        %v1618 = vadd.f32 %v1585, %v1598
        %v1619 = vadd.f32 %v1586, %v1598
        %v1620 = vadd.f32 %v1587, %v1598
        %v1621 = vadd.f32 %v1588, %v1598
        %v1622 = vadd.f32 %v1589, %v1598
        %v1623 = vadd.f32 %v1590, %v1598
        %v1624 = vadd.f32 %v1591, %v1598
        %v1625 = vadd.f32 %v1592, %v1598
        %v1626 = vmax.f32 %v1600, 0.0
        %v1627 = vmax.f32 %v1601, 0.0
        %v1628 = vmax.f32 %v1602, 0.0
        %v1629 = vmax.f32 %v1603, 0.0
        %v1630 = vmax.f32 %v1604, 0.0
        %v1631 = vmax.f32 %v1605, 0.0
        %v1632 = vmax.f32 %v1606, 0.0
        %v1633 = vmax.f32 %v1607, 0.0
        %v1634 = vmax.f32 %v1608, 0.0
        %v1635 = vmax.f32 %v1609, 0.0
        %v1636 = vmax.f32 %v1610, 0.0
        %v1637 = vmax.f32 %v1611, 0.0
        %v1638 = vmax.f32 %v1612, 0.0
        %v1639 = vmax.f32 %v1613, 0.0
        %v1640 = vmax.f32 %v1614, 0.0
        %v1641 = vmax.f32 %v1615, 0.0
        %v1642 = vmax.f32 %v1616, 0.0
        %v1643 = vmax.f32 %v1617, 0.0
        %v1644 = vmax.f32 %v1618, 0.0
        %v1645 = vmax.f32 %v1619, 0.0
        %v1646 = vmax.f32 %v1620, 0.0
        %v1647 = vmax.f32 %v1621, 0.0
        %v1648 = vmax.f32 %v1622, 0.0
        %v1649 = vmax.f32 %v1623, 0.0
        %v1650 = vmax.f32 %v1624, 0.0
        %v1651 = vmax.f32 %v1625, 0.0
        %v1652 = vpack.c.bf16 %v1627, %v1626
        %v1653 = vpack.c.bf16 %v1629, %v1628
        %v1654 = vpack.c.bf16 %v1631, %v1630
        %v1655 = vpack.c.bf16 %v1633, %v1632
        %v1656 = vpack.c.bf16 %v1635, %v1634
        %v1657 = vpack.c.bf16 %v1637, %v1636
        %v1658 = vpack.c.bf16 %v1639, %v1638
        %v1659 = vpack.c.bf16 %v1641, %v1640
        %v1660 = vpack.c.bf16 %v1643, %v1642
        %v1661 = vpack.c.bf16 %v1645, %v1644
        %v1662 = vpack.c.bf16 %v1647, %v1646
        %v1663 = vpack.c.bf16 %v1649, %v1648
        %v1664 = vpack.c.bf16 %v1651, %v1650
        %v1678 = vunpack.c.l.b16 %v1652
        %v1679 = vunpack.c.h.b16 %v1652
        %v1680 = vunpack.c.l.b16 %v1653
        %v1681 = vunpack.c.h.b16 %v1653
        %v1682 = vunpack.c.l.b16 %v1654
        %v1683 = vunpack.c.h.b16 %v1654
        %v1684 = vunpack.c.l.b16 %v1655
        %v1685 = vunpack.c.h.b16 %v1655
        %v1686 = vunpack.c.l.b16 %v1656
        %v1687 = vunpack.c.h.b16 %v1656
        %v1688 = vunpack.c.l.b16 %v1657
        %v1689 = vunpack.c.h.b16 %v1657
        %v1690 = vunpack.c.l.b16 %v1658
        %v1691 = vunpack.c.h.b16 %v1658
        %v1692 = vunpack.c.l.b16 %v1659
        %v1693 = vunpack.c.h.b16 %v1659
        %v1694 = vunpack.c.l.b16 %v1660
        %v1695 = vunpack.c.h.b16 %v1660
        %v1696 = vunpack.c.l.b16 %v1661
        %v1697 = vunpack.c.h.b16 %v1661
        %v1698 = vunpack.c.l.b16 %v1662
        %v1699 = vunpack.c.h.b16 %v1662
        %v1700 = vunpack.c.l.b16 %v1663
        %v1701 = vunpack.c.h.b16 %v1663
        %v1702 = vunpack.c.l.b16 %v1664
        %v1703 = vunpack.c.h.b16 %v1664
        %v1704 = vpack.c.b16 %v1678, %v1678
        %v1705 = vpack.c.b16 %v1679, %v1679
        %v1706 = vpack.c.b16 %v1680, %v1680
        %v1707 = vpack.c.b16 %v1681, %v1681
        %v1708 = vpack.c.b16 %v1682, %v1682
        %v1709 = vpack.c.b16 %v1683, %v1683
        %v1710 = vpack.c.b16 %v1684, %v1684
        %v1711 = vpack.c.b16 %v1685, %v1685
        %v1712 = vpack.c.b16 %v1686, %v1686
        %v1713 = vpack.c.b16 %v1687, %v1687
        %v1714 = vpack.c.b16 %v1688, %v1688
        %v1715 = vpack.c.b16 %v1689, %v1689
        %v1716 = vpack.c.b16 %v1690, %v1690
        %v1717 = vpack.c.b16 %v1691, %v1691
        %v1718 = vpack.c.b16 %v1692, %v1692
        %v1719 = vpack.c.b16 %v1693, %v1693
        %v1720 = vpack.c.b16 %v1694, %v1694
        %v1721 = vpack.c.b16 %v1695, %v1695
        %v1722 = vpack.c.b16 %v1696, %v1696
        %v1723 = vpack.c.b16 %v1697, %v1697
        %v1724 = vpack.c.b16 %v1698, %v1698
        %v1725 = vpack.c.b16 %v1699, %v1699
        %v1726 = vpack.c.b16 %v1700, %v1700
        %v1727 = vpack.c.b16 %v1701, %v1701
        %v1728 = vpack.c.b16 %v1702, %v1702
        %v1729 = vpack.c.b16 %v1703, %v1703
        %1756 = vst [vmem:[%s337] sm:$0xf] %v1704
        %1757 = vst [vmem:[%s337 + $0x4] sm:$0xf] %v1705
        %1758 = vst [vmem:[%s337 + $0x8] sm:$0xf] %v1706
        %1759 = vst [vmem:[%s337 + $0xc] sm:$0xf] %v1707
        %1760 = vst [vmem:[%s337 + $0x10] sm:$0xf] %v1708
        %1761 = vst [vmem:[%s337 + $0x14] sm:$0xf] %v1709
        %1762 = vst [vmem:[%s337 + $0x18] sm:$0xf] %v1710
        %1763 = vst [vmem:[%s337 + $0x1c] sm:$0xf] %v1711
        %1764 = vst [vmem:[%s337 + $0x20] sm:$0xf] %v1712
        %1765 = vst [vmem:[%s337 + $0x24] sm:$0xf] %v1713
        %1766 = vst [vmem:[%s337 + $0x28] sm:$0xf] %v1714
        %1767 = vst [vmem:[%s337 + $0x2c] sm:$0xf] %v1715
        %1768 = vst [vmem:[%s337 + $0x30] sm:$0xf] %v1716
        %1769 = vst [vmem:[%s337 + $0x34] sm:$0xf] %v1717
        %1770 = vst [vmem:[%s337 + $0x38] sm:$0xf] %v1718
        %1771 = vst [vmem:[%s337 + $0x3c] sm:$0xf] %v1719
        %1772 = vst [vmem:[%s337 + $0x40] sm:$0xf] %v1720
        %1773 = vst [vmem:[%s337 + $0x44] sm:$0xf] %v1721
        %1774 = vst [vmem:[%s337 + $0x48] sm:$0xf] %v1722
        %1775 = vst [vmem:[%s337 + $0x4c] sm:$0xf] %v1723
        %1776 = vst [vmem:[%s337 + $0x50] sm:$0xf] %v1724
        %1777 = vst [vmem:[%s337 + $0x54] sm:$0xf] %v1725
        %1778 = vst [vmem:[%s337 + $0x58] sm:$0xf] %v1726
        %1779 = vst [vmem:[%s337 + $0x5c] sm:$0xf] %v1727
        %1780 = vst [vmem:[%s337 + $0x60] sm:$0xf] %v1728
        %1781 = vst [vmem:[%s337 + $0x64] sm:$0xf] %v1729
        %s1782 = sand.u32 %s171, 1
        %s1783 = sand.u32 %s171, 1
        %s1784 = smul.addr %s1783, 104
        %s1785 = scalar_lea.vmem [#allocation2], %s1784
        // Predicated region
        $region45: #{net_forward.3} parent=43 // pred_check
          %p1786 = pneg %p181
        $region46: #{net_forward.3} parent=43 // pred_check_branch
          %1788 = sbr.rel (%p1786) target = $region48
        $region47: #{net_forward.3} parent=43 // pred_region
          %s1789 = smul.u32 26, %s17
          %s1790 = ssub.s32 49, %s1789
          %p1791 = scmp.lt.s32.totalorder %s1790, 26
          %s1792 = scalar_select %p1791, %s1790, 26
          %s1793 = smul.u32 64, %s1792
          %p1794 = scmp.ne.s32.totalorder 0, %s1793
          %s1795 = smul.addr %s1789, 4
          %s1796 = scalar_lea.vmem %s6, %s1795
          // Predicated region
          $region49: #{net_forward.3} parent=47 // pred_check
            %p1797 = pneg %p1794
          $region50: #{net_forward.3} parent=47 // pred_check_branch
            %1799 = sbr.rel (%p1797) target = $region52
          $region51: #{net_forward.3} parent=47 // pred_region
            // Predicated region
            $region53: #{net_forward.3} parent=51 // pred_check
              _
            $region54: #{net_forward.3} parent=51 // pred_check_branch
              %1801 = sbr.rel target = $region56
            $region55: #{net_forward.3} parent=51 // pred_region
              // Predicated region
              $region75: #{net_forward.3} parent=55 // pred_check
                _
              $region76: #{net_forward.3} parent=55 // pred_check_branch
                %1901 = sbr.rel (0) target = $region78
              $region77: #{net_forward.3} parent=55 // pred_region
                %s1903 = sdiv.u32.pop %s1792, 26
                %s1904 = srem.u32.pop %s1792, 26
                // While loop
                $region79: #{net_forward.3} parent=77 // loop_pre_header
                  _
                $region80: #{net_forward.3} parent=77 // loop_header
                  %s1906 = sphi 0, %s1908
                  %p1907 = scmp.ge.s32.totalorder %s1906, %s1903
                  %s1911 = sphi 0, %s1968
                  %s1912 = sphi %s1785, %s1971
                  %s1913 = sphi %s1796, %s1972
                $region81: #{net_forward.3} parent=77 // loop_header_branch
                  %1910 = sbr.rel (%p1907) target = $region85
                $region82: #{net_forward.3} parent=77 // loop_body
                  %v1914 = vld [vmem:[%s1912] sm:$0xf]
                  %1915 = vst [vmem:[%s1913] sm:$0xf] %v1914
                  %v1916 = vld [vmem:[%s1912 + $0x4] sm:$0xf]
                  %1917 = vst [vmem:[%s1913 + $0x4] sm:$0xf] %v1916
                  %v1918 = vld [vmem:[%s1912 + $0x8] sm:$0xf]
                  %1919 = vst [vmem:[%s1913 + $0x8] sm:$0xf] %v1918
                  %v1920 = vld [vmem:[%s1912 + $0xc] sm:$0xf]
                  %1921 = vst [vmem:[%s1913 + $0xc] sm:$0xf] %v1920
                  %v1922 = vld [vmem:[%s1912 + $0x10] sm:$0xf]
                  %1923 = vst [vmem:[%s1913 + $0x10] sm:$0xf] %v1922
                  %v1924 = vld [vmem:[%s1912 + $0x14] sm:$0xf]
                  %1925 = vst [vmem:[%s1913 + $0x14] sm:$0xf] %v1924
                  %v1926 = vld [vmem:[%s1912 + $0x18] sm:$0xf]
                  %1927 = vst [vmem:[%s1913 + $0x18] sm:$0xf] %v1926
                  %v1928 = vld [vmem:[%s1912 + $0x1c] sm:$0xf]
                  %1929 = vst [vmem:[%s1913 + $0x1c] sm:$0xf] %v1928
                  %v1930 = vld [vmem:[%s1912 + $0x20] sm:$0xf]
                  %1931 = vst [vmem:[%s1913 + $0x20] sm:$0xf] %v1930
                  %v1932 = vld [vmem:[%s1912 + $0x24] sm:$0xf]
                  %1933 = vst [vmem:[%s1913 + $0x24] sm:$0xf] %v1932
                  %v1934 = vld [vmem:[%s1912 + $0x28] sm:$0xf]
                  %1935 = vst [vmem:[%s1913 + $0x28] sm:$0xf] %v1934
                  %v1936 = vld [vmem:[%s1912 + $0x2c] sm:$0xf]
                  %1937 = vst [vmem:[%s1913 + $0x2c] sm:$0xf] %v1936
                  %v1938 = vld [vmem:[%s1912 + $0x30] sm:$0xf]
                  %1939 = vst [vmem:[%s1913 + $0x30] sm:$0xf] %v1938
                  %v1940 = vld [vmem:[%s1912 + $0x34] sm:$0xf]
                  %1941 = vst [vmem:[%s1913 + $0x34] sm:$0xf] %v1940
                  %v1942 = vld [vmem:[%s1912 + $0x38] sm:$0xf]
                  %1943 = vst [vmem:[%s1913 + $0x38] sm:$0xf] %v1942
                  %v1944 = vld [vmem:[%s1912 + $0x3c] sm:$0xf]
                  %1945 = vst [vmem:[%s1913 + $0x3c] sm:$0xf] %v1944
                  %v1946 = vld [vmem:[%s1912 + $0x40] sm:$0xf]
                  %1947 = vst [vmem:[%s1913 + $0x40] sm:$0xf] %v1946
                  %v1948 = vld [vmem:[%s1912 + $0x44] sm:$0xf]
                  %1949 = vst [vmem:[%s1913 + $0x44] sm:$0xf] %v1948
                  %v1950 = vld [vmem:[%s1912 + $0x48] sm:$0xf]
                  %1951 = vst [vmem:[%s1913 + $0x48] sm:$0xf] %v1950
                  %v1952 = vld [vmem:[%s1912 + $0x4c] sm:$0xf]
                  %1953 = vst [vmem:[%s1913 + $0x4c] sm:$0xf] %v1952
                  %v1954 = vld [vmem:[%s1912 + $0x50] sm:$0xf]
                  %1955 = vst [vmem:[%s1913 + $0x50] sm:$0xf] %v1954
                  %v1956 = vld [vmem:[%s1912 + $0x54] sm:$0xf]
                  %1957 = vst [vmem:[%s1913 + $0x54] sm:$0xf] %v1956
                  %v1958 = vld [vmem:[%s1912 + $0x58] sm:$0xf]
                  %1959 = vst [vmem:[%s1913 + $0x58] sm:$0xf] %v1958
                  %v1960 = vld [vmem:[%s1912 + $0x5c] sm:$0xf]
                  %1961 = vst [vmem:[%s1913 + $0x5c] sm:$0xf] %v1960
                  %v1962 = vld [vmem:[%s1912 + $0x60] sm:$0xf]
                  %1963 = vst [vmem:[%s1913 + $0x60] sm:$0xf] %v1962
                  %v1964 = vld [vmem:[%s1912 + $0x64] sm:$0xf]
                  %1965 = vst [vmem:[%s1913 + $0x64] sm:$0xf] %v1964
                  %s1966 = sadd.s32 1, %s1911
                  %p1967 = scmp.ge.s32.totalorder %s1966, %s1903
                  %s1968 = scalar_select %p1967, 0, %s1966
                  %s1969 = smul.u32 %s1968, 104
                  %s1970 = smul.u32 %s1968, 104
                  %s1971 = scalar_lea.vmem %s1785, %s1969 [#allocation2]
                  %s1972 = scalar_lea.vmem %s1796, %s1970
                $region83: #{net_forward.3} parent=77 // loop_footer
                  %s1908 = sadd.s32 %s1906, 1
                $region84: #{net_forward.3} parent=77 // loop_footer_branch
                  %1905 = sbr.rel target = $region80
                $region85: #{net_forward.3} parent=77 // loop_exit
                  _
                %s1973 = sdiv.u32.pop %s1792, 26
                %s1974 = srem.u32.pop %s1792, 26
                %s1975 = smul.u32 %s1973, 26
                %s1976 = smul.u32 4, %s1975
                %s1977 = scalar_lea.vmem %s1785, %s1976 [#allocation2]
                %s1978 = smul.u32 4, %s1975
                %s1979 = scalar_lea.vmem %s1796, %s1978
                // While loop
                $region86: #{net_forward.3} parent=77 // loop_pre_header
                  _
                $region87: #{net_forward.3} parent=77 // loop_header
                  %s1981 = sphi 0, %s1983
                  %p1982 = scmp.ge.s32.totalorder %s1981, %s1974
                  %s1986 = sphi 0, %s1993
                  %s1987 = sphi %s1977, %s1996
                  %s1988 = sphi %s1979, %s1997
                $region88: #{net_forward.3} parent=77 // loop_header_branch
                  %1985 = sbr.rel (%p1982) target = $region92
                $region89: #{net_forward.3} parent=77 // loop_body
                  %v1989 = vld [vmem:[%s1987] sm:$0xf]
                  %1990 = vst [vmem:[%s1988] sm:$0xf] %v1989
                  %s1991 = sadd.s32 1, %s1986
                  %p1992 = scmp.ge.s32.totalorder %s1991, %s1974
                  %s1993 = scalar_select %p1992, 0, %s1991
                  %s1994 = smul.u32 %s1993, 4
                  %s1995 = smul.u32 %s1993, 4
                  %s1996 = scalar_lea.vmem %s1977, %s1994 [#allocation2]
                  %s1997 = scalar_lea.vmem %s1979, %s1995
                $region90: #{net_forward.3} parent=77 // loop_footer
                  %s1983 = sadd.s32 %s1981, 1
                $region91: #{net_forward.3} parent=77 // loop_footer_branch
                  %1980 = sbr.rel target = $region87
                $region92: #{net_forward.3} parent=77 // loop_exit
                  _
              $region78: #{net_forward.3} parent=55 // pred_fallthru
                _
            $region56: #{net_forward.3} parent=51 // pred_fallthru
              _
            // Predicated region
            $region57: #{net_forward.3} parent=51 // pred_check
              _
            $region58: #{net_forward.3} parent=51 // pred_check_branch
              %1803 = sbr.rel (0) target = $region60
            $region59: #{net_forward.3} parent=51 // pred_region
              %s1805 = sdiv.u32.pop %s1792, 26
              %s1806 = srem.u32.pop %s1792, 26
              // While loop
              $region61: #{net_forward.3} parent=59 // loop_pre_header
                _
              $region62: #{net_forward.3} parent=59 // loop_header
                %s1808 = sphi 0, %s1810
                %p1809 = scmp.ge.s32.totalorder %s1808, %s1805
                %s1813 = sphi 0, %s1870
                %s1814 = sphi %s1785, %s1873
                %s1815 = sphi %s1796, %s1874
              $region63: #{net_forward.3} parent=59 // loop_header_branch
                %1812 = sbr.rel (%p1809) target = $region67
              $region64: #{net_forward.3} parent=59 // loop_body
                %v1816 = vld [vmem:[%s1814] sm:$0xf]
                %1817 = vst [vmem:[%s1815] sm:$0xf] %v1816
                %v1818 = vld [vmem:[%s1814 + $0x4] sm:$0xf]
                %1819 = vst [vmem:[%s1815 + $0x4] sm:$0xf] %v1818
                %v1820 = vld [vmem:[%s1814 + $0x8] sm:$0xf]
                %1821 = vst [vmem:[%s1815 + $0x8] sm:$0xf] %v1820
                %v1822 = vld [vmem:[%s1814 + $0xc] sm:$0xf]
                %1823 = vst [vmem:[%s1815 + $0xc] sm:$0xf] %v1822
                %v1824 = vld [vmem:[%s1814 + $0x10] sm:$0xf]
                %1825 = vst [vmem:[%s1815 + $0x10] sm:$0xf] %v1824
                %v1826 = vld [vmem:[%s1814 + $0x14] sm:$0xf]
                %1827 = vst [vmem:[%s1815 + $0x14] sm:$0xf] %v1826
                %v1828 = vld [vmem:[%s1814 + $0x18] sm:$0xf]
                %1829 = vst [vmem:[%s1815 + $0x18] sm:$0xf] %v1828
                %v1830 = vld [vmem:[%s1814 + $0x1c] sm:$0xf]
                %1831 = vst [vmem:[%s1815 + $0x1c] sm:$0xf] %v1830
                %v1832 = vld [vmem:[%s1814 + $0x20] sm:$0xf]
                %1833 = vst [vmem:[%s1815 + $0x20] sm:$0xf] %v1832
                %v1834 = vld [vmem:[%s1814 + $0x24] sm:$0xf]
                %1835 = vst [vmem:[%s1815 + $0x24] sm:$0xf] %v1834
                %v1836 = vld [vmem:[%s1814 + $0x28] sm:$0xf]
                %1837 = vst [vmem:[%s1815 + $0x28] sm:$0xf] %v1836
                %v1838 = vld [vmem:[%s1814 + $0x2c] sm:$0xf]
                %1839 = vst [vmem:[%s1815 + $0x2c] sm:$0xf] %v1838
                %v1840 = vld [vmem:[%s1814 + $0x30] sm:$0xf]
                %1841 = vst [vmem:[%s1815 + $0x30] sm:$0xf] %v1840
                %v1842 = vld [vmem:[%s1814 + $0x34] sm:$0xf]
                %1843 = vst [vmem:[%s1815 + $0x34] sm:$0xf] %v1842
                %v1844 = vld [vmem:[%s1814 + $0x38] sm:$0xf]
                %1845 = vst [vmem:[%s1815 + $0x38] sm:$0xf] %v1844
                %v1846 = vld [vmem:[%s1814 + $0x3c] sm:$0xf]
                %1847 = vst [vmem:[%s1815 + $0x3c] sm:$0xf] %v1846
                %v1848 = vld [vmem:[%s1814 + $0x40] sm:$0xf]
                %1849 = vst [vmem:[%s1815 + $0x40] sm:$0xf] %v1848
                %v1850 = vld [vmem:[%s1814 + $0x44] sm:$0xf]
                %1851 = vst [vmem:[%s1815 + $0x44] sm:$0xf] %v1850
                %v1852 = vld [vmem:[%s1814 + $0x48] sm:$0xf]
                %1853 = vst [vmem:[%s1815 + $0x48] sm:$0xf] %v1852
                %v1854 = vld [vmem:[%s1814 + $0x4c] sm:$0xf]
                %1855 = vst [vmem:[%s1815 + $0x4c] sm:$0xf] %v1854
                %v1856 = vld [vmem:[%s1814 + $0x50] sm:$0xf]
                %1857 = vst [vmem:[%s1815 + $0x50] sm:$0xf] %v1856
                %v1858 = vld [vmem:[%s1814 + $0x54] sm:$0xf]
                %1859 = vst [vmem:[%s1815 + $0x54] sm:$0xf] %v1858
                %v1860 = vld [vmem:[%s1814 + $0x58] sm:$0xf]
                %1861 = vst [vmem:[%s1815 + $0x58] sm:$0xf] %v1860
                %v1862 = vld [vmem:[%s1814 + $0x5c] sm:$0xf]
                %1863 = vst [vmem:[%s1815 + $0x5c] sm:$0xf] %v1862
                %v1864 = vld [vmem:[%s1814 + $0x60] sm:$0xf]
                %1865 = vst [vmem:[%s1815 + $0x60] sm:$0xf] %v1864
                %v1866 = vld [vmem:[%s1814 + $0x64] sm:$0xf]
                %1867 = vst [vmem:[%s1815 + $0x64] sm:$0xf] %v1866
                %s1868 = sadd.s32 1, %s1813
                %p1869 = scmp.ge.s32.totalorder %s1868, %s1805
                %s1870 = scalar_select %p1869, 0, %s1868
                %s1871 = smul.u32 %s1870, 104
                %s1872 = smul.u32 %s1870, 104
                %s1873 = scalar_lea.vmem %s1785, %s1871 [#allocation2]
                %s1874 = scalar_lea.vmem %s1796, %s1872
              $region65: #{net_forward.3} parent=59 // loop_footer
                %s1810 = sadd.s32 %s1808, 1
              $region66: #{net_forward.3} parent=59 // loop_footer_branch
                %1807 = sbr.rel target = $region62
              $region67: #{net_forward.3} parent=59 // loop_exit
                _
              %s1875 = sdiv.u32.pop %s1792, 26
              %s1876 = srem.u32.pop %s1792, 26
              %s1877 = smul.u32 %s1875, 26
              %s1878 = smul.u32 4, %s1877
              %s1879 = scalar_lea.vmem %s1785, %s1878 [#allocation2]
              %s1880 = smul.u32 4, %s1877
              %s1881 = scalar_lea.vmem %s1796, %s1880
              // While loop
              $region68: #{net_forward.3} parent=59 // loop_pre_header
                _
              $region69: #{net_forward.3} parent=59 // loop_header
                %s1883 = sphi 0, %s1885
                %p1884 = scmp.ge.s32.totalorder %s1883, %s1876
                %s1888 = sphi 0, %s1895
                %s1889 = sphi %s1879, %s1898
                %s1890 = sphi %s1881, %s1899
              $region70: #{net_forward.3} parent=59 // loop_header_branch
                %1887 = sbr.rel (%p1884) target = $region74
              $region71: #{net_forward.3} parent=59 // loop_body
                %v1891 = vld [vmem:[%s1889] sm:$0xf]
                %1892 = vst [vmem:[%s1890] sm:$0xf] %v1891
                %s1893 = sadd.s32 1, %s1888
                %p1894 = scmp.ge.s32.totalorder %s1893, %s1876
                %s1895 = scalar_select %p1894, 0, %s1893
                %s1896 = smul.u32 %s1895, 4
                %s1897 = smul.u32 %s1895, 4
                %s1898 = scalar_lea.vmem %s1879, %s1896 [#allocation2]
                %s1899 = scalar_lea.vmem %s1881, %s1897
              $region72: #{net_forward.3} parent=59 // loop_footer
                %s1885 = sadd.s32 %s1883, 1
              $region73: #{net_forward.3} parent=59 // loop_footer_branch
                %1882 = sbr.rel target = $region69
              $region74: #{net_forward.3} parent=59 // loop_exit
                _
            $region60: #{net_forward.3} parent=51 // pred_fallthru
              _
          $region52: #{net_forward.3} parent=47 // pred_fallthru
            _
          %1998 = vnop
        $region48: #{net_forward.3} parent=43 // pred_fallthru
          _
      $region44: #{net_forward.3} parent=5 // pred_fallthru
        _
      %p1999 = scmp.le.s32.totalorder 2, %s12
      // Predicated region
      $region93: #{net_forward.3} parent=5 // pred_check
        %p2000 = pneg %p1999
      $region94: #{net_forward.3} parent=5 // pred_check_branch
        %2002 = sbr.rel (%p2000) target = $region96
      $region95: #{net_forward.3} parent=5 // pred_region
        %s2003 = ssub.s32 %s12, 2
        // Predicated region
        $region97: #{net_forward.3} parent=95 // pred_check
          %p2004 = pneg %p187
        $region98: #{net_forward.3} parent=95 // pred_check_branch
          %2006 = sbr.rel (%p2004) target = $region100
        $region99: #{net_forward.3} parent=95 // pred_region
          %s2007 = sand.u32 %s172, 1
          %s2008 = sand.u32 %s172, 1
          %s2009 = smul.addr %s2008, 104
          %s2010 = scalar_lea.vmem [#allocation2], %s2009
        $region100: #{net_forward.3} parent=95 // pred_fallthru
          _
      $region96: #{net_forward.3} parent=5 // pred_fallthru
        _
    $region6: #{net_forward.3} parent=1 // loop_footer
      %s16 = sadd.s32 1, %s12
    $region7: #{net_forward.3} parent=1 // loop_footer_branch
      %11 = sbr.rel target = $region3
    $region8: #{net_forward.3} parent=1 // loop_exit
      _

// kernel: net_forward.4
$region0: #{net_forward.4}
  #allocation0 [shape = 'u32[]', space=smem, size = 0x4, offset = 0x4, fixed_abs, tag = 'smem constant byte address 0x4 - core index']
  #allocation1 [shape = 'u32[144,128]{1,0:T(1,128)}', space=vmem, size = 0x12000, scoped, tag = 'internal scratch']
  %s0 = inlined_call_operand.vmem [shape: bf16[50,150], index: 0, kind: input, shape index: {}]
  %s1 = inlined_call_operand.vmem [shape: bf16[50,150], index: 1, kind: input, shape index: {}]
  %s2 = inlined_call_operand.vmem [shape: bf16[50,150], index: 2, kind: input, shape index: {}]
  %s3 = inlined_call_operand.vmem [shape: bf16[50,150], index: 3, kind: input, shape index: {}]
  %s4 = inlined_call_operand.vmem [shape: bf16[150,128], index: 4, kind: input, shape index: {}]
  %s5 = inlined_call_operand.vmem [shape: f32[1,128], index: 5, kind: input, shape index: {}]
  %s6 = inlined_call_operand.vmem [shape: bf16[50,128], index: 6, kind: output, shape index: {}]
  %s7 = sld [smem:[#allocation0]]
  $region101: #{net_forward.4} parent=0
    _
  %s9 = ssub.s32 1, %s7
  %s10 = scalar_select 0, %s9, %s7
  $region1: #{net_forward.4} parent=0
    #allocation2 [shape = 'u8[16384]{0}', space=vmem, size = 0x4000, scoped, tag = 'output window, operand 0']
    loop: start=0, step=1, limit=4
    $region2: #{net_forward.4} parent=1 // loop_pre_header
      _
    $region3: #{net_forward.4} parent=1 // loop_header
      %s12 = sphi 0, %s16
      %p13 = scmp.ge.s32.totalorder %s12, 4
      %s22 = sphi 0, %s24
      %s25 = sphi 0, %s22
      %s26 = sphi 0, %s25
      %s42 = sphi 0, %s26
      %s48 = sphi 0, %s50
      %s51 = sphi 0, %s48
      %s52 = sphi 0, %s51
      %s68 = sphi 0, %s52
      %s74 = sphi 0, %s76
      %s77 = sphi 0, %s74
      %s78 = sphi 0, %s77
      %s94 = sphi 0, %s78
      %s100 = sphi 0, %s102
      %s103 = sphi 0, %s100
      %s104 = sphi 0, %s103
      %s120 = sphi 0, %s104
      %s124 = sphi 0, %s124
      %s126 = sphi 0, %s124
      %s127 = sphi 0, %s126
      %s141 = sphi 0, %s127
      %s145 = sphi 0, %s145
      %s147 = sphi 0, %s145
      %s148 = sphi 0, %s147
      %s162 = sphi 0, %s148
      %s168 = sphi 0, %s170
      %s171 = sphi 0, %s168
      %s172 = sphi 0, %s171
      %s188 = sphi 0, %s172
    $region4: #{net_forward.4} parent=1 // loop_header_branch
      %15 = sbr.rel (%p13) target = $region8
    $region5: #{net_forward.4} parent=1 // loop_body
      %s17 = ssub.s32 %s12, 1
      %s18 = ssub.s32 %s12, 2
      %s19 = sadd.s32 %s12, 1
      %s20 = ssub.s32 %s12, %s19
      %p21 = scmp.eq.s32.totalorder %s20, 0
      %s23 = sadd.s32 %s22, 1
      %s24 = scalar_select %p21, %s22, %s23
      %p27 = pneg %p21
      %p28 = scmp.eq.s32.totalorder %s12, 1
      %p29 = por %p27, %p28
      %p30 = scmp.ne.s32.totalorder %s22, %s25
      %p31 = scmp.eq.s32.totalorder %s12, 0
      %p32 = por %p30, %p31
      %p33 = scmp.ne.s32.totalorder %s22, %s25
      %p34 = scmp.eq.s32.totalorder %s17, 1
      %p35 = por %p33, %p34
      %p36 = scmp.ne.s32.totalorder %s25, %s26
      %p37 = scmp.eq.s32.totalorder %s17, 0
      %p38 = por %p36, %p37
      %p39 = scmp.ne.s32.totalorder %s25, %s26
      %p40 = scmp.eq.s32.totalorder %s18, 1
      %p41 = por %p39, %p40
      %p43 = scmp.ne.s32.totalorder %s26, %s42
      %p44 = scmp.eq.s32.totalorder %s18, 0
      %p45 = por %p43, %p44
      %s46 = ssub.s32 %s12, %s19
      %p47 = scmp.eq.s32.totalorder %s46, 0
      %s49 = sadd.s32 %s48, 1
      %s50 = scalar_select %p47, %s48, %s49
      %p53 = pneg %p47
      %p54 = scmp.eq.s32.totalorder %s12, 1
      %p55 = por %p53, %p54
      %p56 = scmp.ne.s32.totalorder %s48, %s51
      %p57 = scmp.eq.s32.totalorder %s12, 0
      %p58 = por %p56, %p57
      %p59 = scmp.ne.s32.totalorder %s48, %s51
      %p60 = scmp.eq.s32.totalorder %s17, 1
      %p61 = por %p59, %p60
      %p62 = scmp.ne.s32.totalorder %s51, %s52
      %p63 = scmp.eq.s32.totalorder %s17, 0
      %p64 = por %p62, %p63
      %p65 = scmp.ne.s32.totalorder %s51, %s52
      %p66 = scmp.eq.s32.totalorder %s18, 1
      %p67 = por %p65, %p66
      %p69 = scmp.ne.s32.totalorder %s52, %s68
      %p70 = scmp.eq.s32.totalorder %s18, 0
      %p71 = por %p69, %p70
      %s72 = ssub.s32 %s12, %s19
      %p73 = scmp.eq.s32.totalorder %s72, 0
      %s75 = sadd.s32 %s74, 1
      %s76 = scalar_select %p73, %s74, %s75
      %p79 = pneg %p73
      %p80 = scmp.eq.s32.totalorder %s12, 1
      %p81 = por %p79, %p80
      %p82 = scmp.ne.s32.totalorder %s74, %s77
      %p83 = scmp.eq.s32.totalorder %s12, 0
      %p84 = por %p82, %p83
      %p85 = scmp.ne.s32.totalorder %s74, %s77
      %p86 = scmp.eq.s32.totalorder %s17, 1
      %p87 = por %p85, %p86
      %p88 = scmp.ne.s32.totalorder %s77, %s78
      %p89 = scmp.eq.s32.totalorder %s17, 0
      %p90 = por %p88, %p89
      %p91 = scmp.ne.s32.totalorder %s77, %s78
      %p92 = scmp.eq.s32.totalorder %s18, 1
      %p93 = por %p91, %p92
      %p95 = scmp.ne.s32.totalorder %s78, %s94
      %p96 = scmp.eq.s32.totalorder %s18, 0
      %p97 = por %p95, %p96
      %s98 = ssub.s32 %s12, %s19
      %p99 = scmp.eq.s32.totalorder %s98, 0
      %s101 = sadd.s32 %s100, 1
      %s102 = scalar_select %p99, %s100, %s101
      %p105 = pneg %p99
      %p106 = scmp.eq.s32.totalorder %s12, 1
      %p107 = por %p105, %p106
      %p108 = scmp.ne.s32.totalorder %s100, %s103
      %p109 = scmp.eq.s32.totalorder %s12, 0
      %p110 = por %p108, %p109
      %p111 = scmp.ne.s32.totalorder %s100, %s103
      %p112 = scmp.eq.s32.totalorder %s17, 1
      %p113 = por %p111, %p112
      %p114 = scmp.ne.s32.totalorder %s103, %s104
      %p115 = scmp.eq.s32.totalorder %s17, 0
      %p116 = por %p114, %p115
      %p117 = scmp.ne.s32.totalorder %s103, %s104
      %p118 = scmp.eq.s32.totalorder %s18, 1
      %p119 = por %p117, %p118
      %p121 = scmp.ne.s32.totalorder %s104, %s120
      %p122 = scmp.eq.s32.totalorder %s18, 0
      %p123 = por %p121, %p122
      %s125 = sadd.s32 %s124, 1
      %p128 = scmp.eq.s32.totalorder %s12, 1
      %p129 = scmp.ne.s32.totalorder %s124, %s126
      %p130 = scmp.eq.s32.totalorder %s12, 0
      %p131 = por %p129, %p130
      %p132 = scmp.ne.s32.totalorder %s124, %s126
      %p133 = scmp.eq.s32.totalorder %s17, 1
      %p134 = por %p132, %p133
      %p135 = scmp.ne.s32.totalorder %s126, %s127
      %p136 = scmp.eq.s32.totalorder %s17, 0
      %p137 = por %p135, %p136
      %p138 = scmp.ne.s32.totalorder %s126, %s127
      %p139 = scmp.eq.s32.totalorder %s18, 1
      %p140 = por %p138, %p139
      %p142 = scmp.ne.s32.totalorder %s127, %s141
      %p143 = scmp.eq.s32.totalorder %s18, 0
      %p144 = por %p142, %p143
      %s146 = sadd.s32 %s145, 1
      %p149 = scmp.eq.s32.totalorder %s12, 1
      %p150 = scmp.ne.s32.totalorder %s145, %s147
      %p151 = scmp.eq.s32.totalorder %s12, 0
      %p152 = por %p150, %p151
      %p153 = scmp.ne.s32.totalorder %s145, %s147
      %p154 = scmp.eq.s32.totalorder %s17, 1
      %p155 = por %p153, %p154
      %p156 = scmp.ne.s32.totalorder %s147, %s148
      %p157 = scmp.eq.s32.totalorder %s17, 0
      %p158 = por %p156, %p157
      %p159 = scmp.ne.s32.totalorder %s147, %s148
      %p160 = scmp.eq.s32.totalorder %s18, 1
      %p161 = por %p159, %p160
      %p163 = scmp.ne.s32.totalorder %s148, %s162
      %p164 = scmp.eq.s32.totalorder %s18, 0
      %p165 = por %p163, %p164
      %s166 = ssub.s32 %s12, %s19
      %p167 = scmp.eq.s32.totalorder %s166, 0
      %s169 = sadd.s32 %s168, 1
      %s170 = scalar_select %p167, %s168, %s169
      %p173 = pneg %p167
      %p174 = scmp.eq.s32.totalorder %s12, 1
      %p175 = por %p173, %p174
      %p176 = scmp.ne.s32.totalorder %s168, %s171
      %p177 = scmp.eq.s32.totalorder %s12, 0
      %p178 = por %p176, %p177
      %p179 = scmp.ne.s32.totalorder %s168, %s171
      %p180 = scmp.eq.s32.totalorder %s17, 1
      %p181 = por %p179, %p180
      %p182 = scmp.ne.s32.totalorder %s171, %s172
      %p183 = scmp.eq.s32.totalorder %s17, 0
      %p184 = por %p182, %p183
      %p185 = scmp.ne.s32.totalorder %s171, %s172
      %p186 = scmp.eq.s32.totalorder %s18, 1
      %p187 = por %p185, %p186
      %p189 = scmp.ne.s32.totalorder %s172, %s188
      %p190 = scmp.eq.s32.totalorder %s18, 0
      %p191 = por %p189, %p190
      %p192 = scmp.le.s32.totalorder 1, %s12
      %p193 = scmp.lt.s32.totalorder %s12, 3
      %p194 = pnand %p192, %p193
      %p195 = pneg %p194
      // Predicated region
      $region9: #{net_forward.4} parent=5 // pred_check
        _
      $region10: #{net_forward.4} parent=5 // pred_check_branch
        %197 = sbr.rel (%p194) target = $region12
      $region11: #{net_forward.4} parent=5 // pred_region
        %s198 = ssub.s32 %s12, 1
        // Predicated region
        $region13: #{net_forward.4} parent=11 // pred_check
          %p199 = pneg %p137
        $region14: #{net_forward.4} parent=11 // pred_check_branch
          %201 = sbr.rel (%p199) target = $region16
        $region15: #{net_forward.4} parent=11 // pred_region
          _
        $region16: #{net_forward.4} parent=11 // pred_fallthru
          _
        // Predicated region
        $region17: #{net_forward.4} parent=11 // pred_check
          %p202 = pneg %p158
        $region18: #{net_forward.4} parent=11 // pred_check_branch
          %204 = sbr.rel (%p202) target = $region20
        $region19: #{net_forward.4} parent=11 // pred_region
          _
        $region20: #{net_forward.4} parent=11 // pred_fallthru
          _
      $region12: #{net_forward.4} parent=5 // pred_fallthru
        _
      %p205 = scmp.lt.s32.totalorder %s12, 2
      // Predicated region
      $region21: #{net_forward.4} parent=5 // pred_check
        %p206 = pneg %p205
      $region22: #{net_forward.4} parent=5 // pred_check_branch
        %208 = sbr.rel (%p206) target = $region24
      $region23: #{net_forward.4} parent=5 // pred_region
        // Predicated region
        $region25: #{net_forward.4} parent=23 // pred_check
          %p209 = pneg %p32
        $region26: #{net_forward.4} parent=23 // pred_check_branch
          %211 = sbr.rel (%p209) target = $region28
        $region27: #{net_forward.4} parent=23 // pred_region
          %s212 = smul.u32 4, %s12
          %s213 = ssub.s32 7, %s212
          %p214 = scmp.lt.s32.totalorder %s213, 4
          %s215 = scalar_select %p214, %s213, 4
          %s216 = smul.u32 64, %s215
          %s217 = smul.u32 %s216, 2
          %p218 = scmp.lt.s32.totalorder %s212, 6
          %s219 = scalar_select %p218, %s212, 6
          %s220 = smul.addr %s219, 2
          %s221 = smul.addr %s220, 4
          %s222 = scalar_lea.vmem %s0, %s221
          %s223 = smul.u32 4, %s12
          %s224 = ssub.s32 7, %s223
          %p225 = scmp.lt.s32.totalorder %s224, 4
          %s226 = scalar_select %p225, %s224, 4
          %s227 = smul.u32 64, %s226
          %s228 = smul.u32 %s227, 2
        $region28: #{net_forward.4} parent=23 // pred_fallthru
          _
        // Predicated region
        $region29: #{net_forward.4} parent=23 // pred_check
          %p229 = pneg %p58
        $region30: #{net_forward.4} parent=23 // pred_check_branch
          %231 = sbr.rel (%p229) target = $region32
        $region31: #{net_forward.4} parent=23 // pred_region
          %s232 = smul.u32 4, %s12
          %s233 = ssub.s32 7, %s232
          %p234 = scmp.lt.s32.totalorder %s233, 4
          %s235 = scalar_select %p234, %s233, 4
          %s236 = smul.u32 64, %s235
          %s237 = smul.u32 %s236, 2
          %p238 = scmp.lt.s32.totalorder %s232, 6
          %s239 = scalar_select %p238, %s232, 6
          %s240 = smul.addr %s239, 2
          %s241 = smul.addr %s240, 4
          %s242 = scalar_lea.vmem %s1, %s241
          %s243 = smul.u32 4, %s12
          %s244 = ssub.s32 7, %s243
          %p245 = scmp.lt.s32.totalorder %s244, 4
          %s246 = scalar_select %p245, %s244, 4
          %s247 = smul.u32 64, %s246
          %s248 = smul.u32 %s247, 2
        $region32: #{net_forward.4} parent=23 // pred_fallthru
          _
        // Predicated region
        $region33: #{net_forward.4} parent=23 // pred_check
          %p249 = pneg %p84
        $region34: #{net_forward.4} parent=23 // pred_check_branch
          %251 = sbr.rel (%p249) target = $region36
        $region35: #{net_forward.4} parent=23 // pred_region
          %s252 = smul.u32 4, %s12
          %s253 = ssub.s32 7, %s252
          %p254 = scmp.lt.s32.totalorder %s253, 4
          %s255 = scalar_select %p254, %s253, 4
          %s256 = smul.u32 64, %s255
          %s257 = smul.u32 %s256, 2
          %p258 = scmp.lt.s32.totalorder %s252, 6
          %s259 = scalar_select %p258, %s252, 6
          %s260 = smul.addr %s259, 2
          %s261 = smul.addr %s260, 4
          %s262 = scalar_lea.vmem %s2, %s261
          %s263 = smul.u32 4, %s12
          %s264 = ssub.s32 7, %s263
          %p265 = scmp.lt.s32.totalorder %s264, 4
          %s266 = scalar_select %p265, %s264, 4
          %s267 = smul.u32 64, %s266
          %s268 = smul.u32 %s267, 2
        $region36: #{net_forward.4} parent=23 // pred_fallthru
          _
        // Predicated region
        $region37: #{net_forward.4} parent=23 // pred_check
          %p269 = pneg %p110
        $region38: #{net_forward.4} parent=23 // pred_check_branch
          %271 = sbr.rel (%p269) target = $region40
        $region39: #{net_forward.4} parent=23 // pred_region
          %s272 = smul.u32 4, %s12
          %s273 = ssub.s32 7, %s272
          %p274 = scmp.lt.s32.totalorder %s273, 4
          %s275 = scalar_select %p274, %s273, 4
          %s276 = smul.u32 64, %s275
          %s277 = smul.u32 %s276, 2
          %p278 = scmp.lt.s32.totalorder %s272, 6
          %s279 = scalar_select %p278, %s272, 6
          %s280 = smul.addr %s279, 2
          %s281 = smul.addr %s280, 4
          %s282 = scalar_lea.vmem %s3, %s281
          %s283 = smul.u32 4, %s12
          %s284 = ssub.s32 7, %s283
          %p285 = scmp.lt.s32.totalorder %s284, 4
          %s286 = scalar_select %p285, %s284, 4
          %s287 = smul.u32 64, %s286
          %s288 = smul.u32 %s287, 2
        $region40: #{net_forward.4} parent=23 // pred_fallthru
          _
      $region24: #{net_forward.4} parent=5 // pred_fallthru
        _
      %p289 = scmp.le.s32.totalorder 1, %s12
      %p290 = scmp.lt.s32.totalorder %s12, 3
      %p291 = pnand %p289, %p290
      %p292 = pneg %p291
      // Predicated region
      $region41: #{net_forward.4} parent=5 // pred_check
        _
      $region42: #{net_forward.4} parent=5 // pred_check_branch
        %294 = sbr.rel (%p291) target = $region44
      $region43: #{net_forward.4} parent=5 // pred_region
        %s295 = ssub.s32 %s12, 1
        %s296 = smul.u32 4, %s17
        %s297 = ssub.s32 7, %s296
        %p298 = scmp.lt.s32.totalorder %s297, 4
        %s299 = scalar_select %p298, %s297, 4
        %s300 = smul.u32 64, %s299
        %s301 = smul.u32 %s300, 2
        %p302 = scmp.lt.s32.totalorder %s296, 6
        %s303 = scalar_select %p302, %s296, 6
        %s304 = smul.addr %s303, 2
        %s305 = smul.addr %s304, 4
        %s306 = scalar_lea.vmem %s0, %s305
        %p307 = pneg %p38
        %p308 = pneg %p35
        %s309 = smul.u32 4, %s17
        %s310 = ssub.s32 7, %s309
        %p311 = scmp.lt.s32.totalorder %s310, 4
        %s312 = scalar_select %p311, %s310, 4
        %s313 = smul.u32 64, %s312
        %s314 = smul.u32 %s313, 2
        %p315 = scmp.lt.s32.totalorder %s309, 6
        %s316 = scalar_select %p315, %s309, 6
        %s317 = smul.addr %s316, 2
        %s318 = smul.addr %s317, 4
        %s319 = scalar_lea.vmem %s1, %s318
        %p320 = pneg %p64
        %p321 = pneg %p61
        %s322 = smul.u32 4, %s17
        %s323 = ssub.s32 7, %s322
        %p324 = scmp.lt.s32.totalorder %s323, 4
        %s325 = scalar_select %p324, %s323, 4
        %s326 = smul.u32 64, %s325
        %s327 = smul.u32 %s326, 2
        %p328 = scmp.lt.s32.totalorder %s322, 6
        %s329 = scalar_select %p328, %s322, 6
        %s330 = smul.addr %s329, 2
        %s331 = smul.addr %s330, 4
        %s332 = scalar_lea.vmem %s2, %s331
        %p333 = pneg %p90
        %p334 = pneg %p87
        %s335 = smul.u32 4, %s17
        %s336 = ssub.s32 7, %s335
        %p337 = scmp.lt.s32.totalorder %s336, 4
        %s338 = scalar_select %p337, %s336, 4
        %s339 = smul.u32 64, %s338
        %s340 = smul.u32 %s339, 2
        %p341 = scmp.lt.s32.totalorder %s335, 6
        %s342 = scalar_select %p341, %s335, 6
        %s343 = smul.addr %s342, 2
        %s344 = smul.addr %s343, 4
        %s345 = scalar_lea.vmem %s3, %s344
        %p346 = pneg %p116
        %p347 = pneg %p113
        %p348 = pneg %p137
        %p349 = pneg %p134
        %p350 = pneg %p158
        %p351 = pneg %p155
        %p352 = pneg %p184
        %p353 = pneg %p181
        %s354 = sand.u32 %s171, 1
        %s355 = sand.u32 %s171, 1
        %s356 = smul.addr %s355, 16
        %s357 = scalar_lea.vmem [#allocation2], %s356
        %s358 = smul.u32 4, %s17
        %s359 = ssub.s32 7, %s358
        %p360 = scmp.lt.s32.totalorder %s359, 4
        %s361 = scalar_select %p360, %s359, 4
        %s362 = smul.u32 64, %s361
        %s363 = smul.u32 %s362, 2
        %p364 = scmp.lt.s32.totalorder %s358, 6
        %s365 = scalar_select %p364, %s358, 6
        %s366 = smul.addr %s365, 2
        %s367 = smul.addr %s366, 4
        %s368 = scalar_lea.vmem %s0, %s367
        %s369 = smul.u32 4, %s17
        %s370 = ssub.s32 7, %s369
        %p371 = scmp.lt.s32.totalorder %s370, 4
        %s372 = scalar_select %p371, %s370, 4
        %s373 = smul.u32 64, %s372
        %s374 = smul.u32 %s373, 2
        %s375 = smul.u32 4, %s17
        %s376 = ssub.s32 7, %s375
        %p377 = scmp.lt.s32.totalorder %s376, 4
        %s378 = scalar_select %p377, %s376, 4
        %s379 = smul.u32 64, %s378
        %s380 = smul.u32 %s379, 2
        %p381 = scmp.lt.s32.totalorder %s375, 6
        %s382 = scalar_select %p381, %s375, 6
        %s383 = smul.addr %s382, 2
        %s384 = smul.addr %s383, 4
        %s385 = scalar_lea.vmem %s1, %s384
        %s386 = smul.u32 4, %s17
        %s387 = ssub.s32 7, %s386
        %p388 = scmp.lt.s32.totalorder %s387, 4
        %s389 = scalar_select %p388, %s387, 4
        %s390 = smul.u32 64, %s389
        %s391 = smul.u32 %s390, 2
        %s392 = smul.u32 4, %s17
        %s393 = ssub.s32 7, %s392
        %p394 = scmp.lt.s32.totalorder %s393, 4
        %s395 = scalar_select %p394, %s393, 4
        %s396 = smul.u32 64, %s395
        %s397 = smul.u32 %s396, 2
        %p398 = scmp.lt.s32.totalorder %s392, 6
        %s399 = scalar_select %p398, %s392, 6
        %s400 = smul.addr %s399, 2
        %s401 = smul.addr %s400, 4
        %s402 = scalar_lea.vmem %s2, %s401
        %s403 = smul.u32 4, %s17
        %s404 = ssub.s32 7, %s403
        %p405 = scmp.lt.s32.totalorder %s404, 4
        %s406 = scalar_select %p405, %s404, 4
        %s407 = smul.u32 64, %s406
        %s408 = smul.u32 %s407, 2
        %s409 = smul.u32 4, %s17
        %s410 = ssub.s32 7, %s409
        %p411 = scmp.lt.s32.totalorder %s410, 4
        %s412 = scalar_select %p411, %s410, 4
        %s413 = smul.u32 64, %s412
        %s414 = smul.u32 %s413, 2
        %p415 = scmp.lt.s32.totalorder %s409, 6
        %s416 = scalar_select %p415, %s409, 6
        %s417 = smul.addr %s416, 2
        %s418 = smul.addr %s417, 4
        %s419 = scalar_lea.vmem %s3, %s418
        %s420 = smul.u32 4, %s17
        %s421 = ssub.s32 7, %s420
        %p422 = scmp.lt.s32.totalorder %s421, 4
        %s423 = scalar_select %p422, %s421, 4
        %s424 = smul.u32 64, %s423
        %s425 = smul.u32 %s424, 2
        %s426 = smul.u32 4, %s17
        %s427 = ssub.s32 7, %s426
        %p428 = scmp.lt.s32.totalorder %s427, 4
        %s429 = scalar_select %p428, %s427, 4
        %s430 = smul.u32 64, %s429
        %v432 = vld [vmem:[%s368] sm:$0xff]
        %v433 = vld [vmem:[%s368 + $0x8] sm:$0xff]
        %v434 = vld [vmem:[%s368 + $0x10] sm:$0xff]
        %v435 = vld [vmem:[%s368 + $0x18] sm:$0xff]
        %v436 = vld [vmem:[%s4] sm:$0xf]
        %v437 = vld [vmem:[%s4 + $0x4] sm:$0xf]
        %v438 = vld [vmem:[%s4 + $0x8] sm:$0xf]
        %v439 = vld [vmem:[%s4 + $0xc] sm:$0xf]
        %v440 = vld [vmem:[%s4 + $0x10] sm:$0xf]
        %v441 = vld [vmem:[%s4 + $0x14] sm:$0xf]
        %v442 = vld [vmem:[%s4 + $0x18] sm:$0xf]
        %v443 = vld [vmem:[%s4 + $0x1c] sm:$0xf]
        %v444 = vld [vmem:[%s4 + $0x20] sm:$0xf]
        %v445 = vld [vmem:[%s4 + $0x24] sm:$0xf]
        %v446 = vld [vmem:[%s4 + $0x28] sm:$0xf]
        %v447 = vld [vmem:[%s4 + $0x2c] sm:$0xf]
        %v448 = vld [vmem:[%s4 + $0x30] sm:$0xf]
        %v449 = vld [vmem:[%s4 + $0x34] sm:$0xf]
        %v450 = vld [vmem:[%s4 + $0x38] sm:$0xf]
        %v451 = vld [vmem:[%s4 + $0x3c] sm:$0xf]
        %v452 = vld [vmem:[%s4 + $0x40] sm:$0xf]
        %v453 = vld [vmem:[%s4 + $0x44] sm:$0xf]
        %v454 = vld [vmem:[%s4 + $0x48] sm:$0x7]
        %v459 = vunpack.c.l.b16 %v432
        %v460 = vunpack.c.h.b16 %v432
        %v461 = vunpack.c.l.b16 %v433
        %v462 = vunpack.c.h.b16 %v433
        %v463 = vunpack.c.l.b16 %v434
        %v464 = vunpack.c.h.b16 %v434
        %v465 = vunpack.c.l.b16 %v435
        %v466 = vunpack.c.h.b16 %v435
        %v467 = vpack.c.b16 %v461, %v459
        %v468 = vpack.c.b16 %v462, %v460
        %v469 = vpack.c.b16 %v465, %v463
        %v470 = vpack.c.b16 %v466, %v464
        %v492 = vunpack.c.l.b16 %v436
        %v493 = vunpack.c.l.b16 %v437
        %v494 = vunpack.c.l.b16 %v438
        %v495 = vunpack.c.l.b16 %v439
        %v496 = vunpack.c.l.b16 %v440
        %v497 = vunpack.c.l.b16 %v441
        %v498 = vunpack.c.l.b16 %v442
        %v499 = vunpack.c.l.b16 %v443
        %v500 = vunpack.c.l.b16 %v444
        %v501 = vunpack.c.l.b16 %v445
        %v502 = vunpack.c.l.b16 %v446
        %v503 = vunpack.c.l.b16 %v447
        %v504 = vunpack.c.l.b16 %v448
        %v505 = vunpack.c.l.b16 %v449
        %v506 = vunpack.c.l.b16 %v450
        %v507 = vunpack.c.l.b16 %v451
        %v508 = vunpack.c.l.b16 %v452
        %v509 = vunpack.c.l.b16 %v453
        %v510 = vunpack.c.l.b16 %v454
        %v511 = vpack.c.b16 %v493, %v492
        %v512 = vpack.c.b16 %v495, %v494
        %v513 = vpack.c.b16 %v497, %v496
        %v514 = vpack.c.b16 %v499, %v498
        %v515 = vpack.c.b16 %v501, %v500
        %v516 = vpack.c.b16 %v503, %v502
        %v517 = vpack.c.b16 %v505, %v504
        %v518 = vpack.c.b16 %v507, %v506
        %v519 = vpack.c.b16 %v509, %v508
        %v520 = vpack.c.b16 %v510, %v510
        %vm530 = vcmask 179200
        %v532 = vsel %vm530, %v468, 0
        %v535 = vsel %vm530, %v470, 0
        %vm537 = vcmask 1042432
        %v539 = vsel %vm537, %v520, 0
        %541 = vmatprep.subr.bf16.mxu0 0
        %542 = vmatpush1.bf16.msra.mxu0 %v511
        %543 = vmatprep.subr.bf16.mxu0 0
        %544 = vmatpush1.bf16.msra.mxu0 %v512
        %545 = vmatprep.subr.bf16.mxu0 0
        %546 = vmatpush1.bf16.msra.mxu0 %v513
        %547 = vmatprep.subr.bf16.mxu0 0
        %548 = vmatpush1.bf16.msra.mxu0 %v514
        %549 = vmatprep.subr.bf16.mxu0 0
        %550 = vmatpush1.bf16.msra.mxu0 %v515
        %551 = vmatprep.subr.bf16.mxu0 0
        %552 = vmatpush1.bf16.msra.mxu0 %v516
        %553 = vmatprep.subr.bf16.mxu0 0
        %554 = vmatpush1.bf16.msra.mxu0 %v517
        %555 = vmatprep.subr.bf16.mxu0 0
        %556 = vmatpush1.bf16.msra.mxu0 %v518
        %557 = vmatprep.subr.bf16.mxu0 0
        %558 = vmatpush1.bf16.msra.mxu0 %v519
        %559 = vmatprep.subr.bf16.mxu0 0
        %560 = vmatpush1.bf16.msra.mxu0 %v539
        %561 = vmatprep.subr.bf16.mxu0 0
        %562 = vmatpush1.bf16.msra.mxu0 0
        %563 = vmatprep.subr.bf16.mxu0 0
        %564 = vmatpush1.bf16.msra.mxu0 0
        %565 = vmatprep.subr.bf16.mxu0 0
        %566 = vmatpush1.bf16.msra.mxu0 0
        %567 = vmatprep.subr.bf16.mxu0 0
        %568 = vmatpush1.bf16.msra.mxu0 0
        %569 = vmatprep.subr.bf16.mxu0 0
        %570 = vmatpush1.bf16.msra.mxu0 0
        %571 = vmatprep.subr.bf16.mxu0 0
        %572 = vmatpush1.bf16.msra.mxu0 0
        %573 = vmatprep.mubr.bf16.mxu0 %v532
        %574 = vmatmul.mubr.bf16.gmra.mrb[0].mxu0 %v467
        %v575 = vpop.f32.mrb[0].mxu0
        %v576 = vadd.f32 0.0, %v575
        %v577 = vpop.f32.mrb[0].mxu0
        %v578 = vpop.f32.mrb[0].mxu0
        %v579 = vadd.f32 0.0, %v578
        %v580 = vpop.f32.mrb[0].mxu0
        %581 = vmatprep.mubr.bf16.mxu0 %v535
        %582 = vmatmul.mubr.bf16.gmra.mrb[0].mxu0 %v469
        %v583 = vpop.f32.mrb[0].mxu0
        %v584 = vadd.f32 0.0, %v583
        %v585 = vpop.f32.mrb[0].mxu0
        %v586 = vpop.f32.mrb[0].mxu0
        %v587 = vadd.f32 0.0, %v586
        %v588 = vpop.f32.mrb[0].mxu0
        %589 = vdwg.mxu0
        %v590 = vld [vmem:[%s385] sm:$0xff]
        %v591 = vld [vmem:[%s385 + $0x8] sm:$0xff]
        %v592 = vld [vmem:[%s385 + $0x10] sm:$0xff]
        %v593 = vld [vmem:[%s385 + $0x18] sm:$0xff]
        %v598 = vunpack.c.l.b16 %v590
        %v599 = vunpack.c.h.b16 %v590
        %v600 = vunpack.c.l.b16 %v591
        %v601 = vunpack.c.h.b16 %v591
        %v602 = vunpack.c.l.b16 %v592
        %v603 = vunpack.c.h.b16 %v592
        %v604 = vunpack.c.l.b16 %v593
        %v605 = vunpack.c.h.b16 %v593
        %v606 = vpack.c.b16 %v600, %v598
        %v607 = vpack.c.b16 %v601, %v599
        %v608 = vpack.c.b16 %v604, %v602
        %v609 = vpack.c.b16 %v605, %v603
        %v613 = vsel %vm530, %v607, 0
        %v616 = vsel %vm530, %v609, 0
        %618 = vmatprep.subr.bf16.mxu0 0
        %619 = vmatpush1.bf16.msra.mxu0 %v511
        %620 = vmatprep.subr.bf16.mxu0 0
        %621 = vmatpush1.bf16.msra.mxu0 %v512
        %622 = vmatprep.subr.bf16.mxu0 0
        %623 = vmatpush1.bf16.msra.mxu0 %v513
        %624 = vmatprep.subr.bf16.mxu0 0
        %625 = vmatpush1.bf16.msra.mxu0 %v514
        %626 = vmatprep.subr.bf16.mxu0 0
        %627 = vmatpush1.bf16.msra.mxu0 %v515
        %628 = vmatprep.subr.bf16.mxu0 0
        %629 = vmatpush1.bf16.msra.mxu0 %v516
        %630 = vmatprep.subr.bf16.mxu0 0
        %631 = vmatpush1.bf16.msra.mxu0 %v517
        %632 = vmatprep.subr.bf16.mxu0 0
        %633 = vmatpush1.bf16.msra.mxu0 %v518
        %634 = vmatprep.subr.bf16.mxu0 0
        %635 = vmatpush1.bf16.msra.mxu0 %v519
        %636 = vmatprep.subr.bf16.mxu0 0
        %637 = vmatpush1.bf16.msra.mxu0 %v539
        %638 = vmatprep.subr.bf16.mxu0 0
        %639 = vmatpush1.bf16.msra.mxu0 0
        %640 = vmatprep.subr.bf16.mxu0 0
        %641 = vmatpush1.bf16.msra.mxu0 0
        %642 = vmatprep.subr.bf16.mxu0 0
        %643 = vmatpush1.bf16.msra.mxu0 0
        %644 = vmatprep.subr.bf16.mxu0 0
        %645 = vmatpush1.bf16.msra.mxu0 0
        %646 = vmatprep.subr.bf16.mxu0 0
        %647 = vmatpush1.bf16.msra.mxu0 0
        %648 = vmatprep.subr.bf16.mxu0 0
        %649 = vmatpush1.bf16.msra.mxu0 0
        %650 = vmatprep.mubr.bf16.mxu0 %v613
        %651 = vmatmul.mubr.bf16.gmra.mrb[0].mxu0 %v606
        %v652 = vpop.f32.mrb[0].mxu0
        %v653 = vadd.f32 0.0, %v652
        %v654 = vpop.f32.mrb[0].mxu0
        %v655 = vpop.f32.mrb[0].mxu0
        %v656 = vadd.f32 0.0, %v655
        %v657 = vpop.f32.mrb[0].mxu0
        %658 = vmatprep.mubr.bf16.mxu0 %v616
        %659 = vmatmul.mubr.bf16.gmra.mrb[0].mxu0 %v608
        %v660 = vpop.f32.mrb[0].mxu0
        %v661 = vadd.f32 0.0, %v660
        %v662 = vpop.f32.mrb[0].mxu0
        %v663 = vpop.f32.mrb[0].mxu0
        %v664 = vadd.f32 0.0, %v663
        %v665 = vpop.f32.mrb[0].mxu0
        %666 = vdwg.mxu0
        %v667 = vmax.f32 %v576, %v653
        %v668 = vmax.f32 %v579, %v656
        %v669 = vmax.f32 %v584, %v661
        %v670 = vmax.f32 %v587, %v664
        %v671 = vld [vmem:[%s402] sm:$0xff]
        %v672 = vld [vmem:[%s402 + $0x8] sm:$0xff]
        %v673 = vld [vmem:[%s402 + $0x10] sm:$0xff]
        %v674 = vld [vmem:[%s402 + $0x18] sm:$0xff]
        %v679 = vunpack.c.l.b16 %v671
        %v680 = vunpack.c.h.b16 %v671
        %v681 = vunpack.c.l.b16 %v672
        %v682 = vunpack.c.h.b16 %v672
        %v683 = vunpack.c.l.b16 %v673
        %v684 = vunpack.c.h.b16 %v673
        %v685 = vunpack.c.l.b16 %v674
        %v686 = vunpack.c.h.b16 %v674
        %v687 = vpack.c.b16 %v681, %v679
        %v688 = vpack.c.b16 %v682, %v680
        %v689 = vpack.c.b16 %v685, %v683
        %v690 = vpack.c.b16 %v686, %v684
        %v694 = vsel %vm530, %v688, 0
        %v697 = vsel %vm530, %v690, 0
        %699 = vmatprep.subr.bf16.mxu0 0
        %700 = vmatpush1.bf16.msra.mxu0 %v511
        %701 = vmatprep.subr.bf16.mxu0 0
        %702 = vmatpush1.bf16.msra.mxu0 %v512
        %703 = vmatprep.subr.bf16.mxu0 0
        %704 = vmatpush1.bf16.msra.mxu0 %v513
        %705 = vmatprep.subr.bf16.mxu0 0
        %706 = vmatpush1.bf16.msra.mxu0 %v514
        %707 = vmatprep.subr.bf16.mxu0 0
        %708 = vmatpush1.bf16.msra.mxu0 %v515
        %709 = vmatprep.subr.bf16.mxu0 0
        %710 = vmatpush1.bf16.msra.mxu0 %v516
        %711 = vmatprep.subr.bf16.mxu0 0
        %712 = vmatpush1.bf16.msra.mxu0 %v517
        %713 = vmatprep.subr.bf16.mxu0 0
        %714 = vmatpush1.bf16.msra.mxu0 %v518
        %715 = vmatprep.subr.bf16.mxu0 0
        %716 = vmatpush1.bf16.msra.mxu0 %v519
        %717 = vmatprep.subr.bf16.mxu0 0
        %718 = vmatpush1.bf16.msra.mxu0 %v539
        %719 = vmatprep.subr.bf16.mxu0 0
        %720 = vmatpush1.bf16.msra.mxu0 0
        %721 = vmatprep.subr.bf16.mxu0 0
        %722 = vmatpush1.bf16.msra.mxu0 0
        %723 = vmatprep.subr.bf16.mxu0 0
        %724 = vmatpush1.bf16.msra.mxu0 0
        %725 = vmatprep.subr.bf16.mxu0 0
        %726 = vmatpush1.bf16.msra.mxu0 0
        %727 = vmatprep.subr.bf16.mxu0 0
        %728 = vmatpush1.bf16.msra.mxu0 0
        %729 = vmatprep.subr.bf16.mxu0 0
        %730 = vmatpush1.bf16.msra.mxu0 0
        %731 = vmatprep.mubr.bf16.mxu0 %v694
        %732 = vmatmul.mubr.bf16.gmra.mrb[0].mxu0 %v687
        %v733 = vpop.f32.mrb[0].mxu0
        %v734 = vadd.f32 0.0, %v733
        %v735 = vpop.f32.mrb[0].mxu0
        %v736 = vpop.f32.mrb[0].mxu0
        %v737 = vadd.f32 0.0, %v736
        %v738 = vpop.f32.mrb[0].mxu0
        %739 = vmatprep.mubr.bf16.mxu0 %v697
        %740 = vmatmul.mubr.bf16.gmra.mrb[0].mxu0 %v689
        %v741 = vpop.f32.mrb[0].mxu0
        %v742 = vadd.f32 0.0, %v741
        %v743 = vpop.f32.mrb[0].mxu0
        %v744 = vpop.f32.mrb[0].mxu0
        %v745 = vadd.f32 0.0, %v744
        %v746 = vpop.f32.mrb[0].mxu0
        %747 = vdwg.mxu0
        %v748 = vld [vmem:[%s419] sm:$0xff]
        %v749 = vld [vmem:[%s419 + $0x8] sm:$0xff]
        %v750 = vld [vmem:[%s419 + $0x10] sm:$0xff]
        %v751 = vld [vmem:[%s419 + $0x18] sm:$0xff]
        %v756 = vunpack.c.l.b16 %v748
        %v757 = vunpack.c.h.b16 %v748
        %v758 = vunpack.c.l.b16 %v749
        %v759 = vunpack.c.h.b16 %v749
        %v760 = vunpack.c.l.b16 %v750
        %v761 = vunpack.c.h.b16 %v750
        %v762 = vunpack.c.l.b16 %v751
        %v763 = vunpack.c.h.b16 %v751
        %v764 = vpack.c.b16 %v758, %v756
        %v765 = vpack.c.b16 %v759, %v757
        %v766 = vpack.c.b16 %v762, %v760
        %v767 = vpack.c.b16 %v763, %v761
        %v771 = vsel %vm530, %v765, 0
        %v774 = vsel %vm530, %v767, 0
        %776 = vmatprep.subr.bf16.mxu0 0
        %777 = vmatpush1.bf16.msra.mxu0 %v511
        %778 = vmatprep.subr.bf16.mxu0 0
        %779 = vmatpush1.bf16.msra.mxu0 %v512
        %780 = vmatprep.subr.bf16.mxu0 0
        %781 = vmatpush1.bf16.msra.mxu0 %v513
        %782 = vmatprep.subr.bf16.mxu0 0
        %783 = vmatpush1.bf16.msra.mxu0 %v514
        %784 = vmatprep.subr.bf16.mxu0 0
        %785 = vmatpush1.bf16.msra.mxu0 %v515
        %786 = vmatprep.subr.bf16.mxu0 0
        %787 = vmatpush1.bf16.msra.mxu0 %v516
        %788 = vmatprep.subr.bf16.mxu0 0
        %789 = vmatpush1.bf16.msra.mxu0 %v517
        %790 = vmatprep.subr.bf16.mxu0 0
        %791 = vmatpush1.bf16.msra.mxu0 %v518
        %792 = vmatprep.subr.bf16.mxu0 0
        %793 = vmatpush1.bf16.msra.mxu0 %v519
        %794 = vmatprep.subr.bf16.mxu0 0
        %795 = vmatpush1.bf16.msra.mxu0 %v539
        %796 = vmatprep.subr.bf16.mxu0 0
        %797 = vmatpush1.bf16.msra.mxu0 0
        %798 = vmatprep.subr.bf16.mxu0 0
        %799 = vmatpush1.bf16.msra.mxu0 0
        %800 = vmatprep.subr.bf16.mxu0 0
        %801 = vmatpush1.bf16.msra.mxu0 0
        %802 = vmatprep.subr.bf16.mxu0 0
        %803 = vmatpush1.bf16.msra.mxu0 0
        %804 = vmatprep.subr.bf16.mxu0 0
        %805 = vmatpush1.bf16.msra.mxu0 0
        %806 = vmatprep.subr.bf16.mxu0 0
        %807 = vmatpush1.bf16.msra.mxu0 0
        %808 = vmatprep.mubr.bf16.mxu0 %v771
        %809 = vmatmul.mubr.bf16.gmra.mrb[0].mxu0 %v764
        %v810 = vpop.f32.mrb[0].mxu0
        %v811 = vadd.f32 0.0, %v810
        %v812 = vpop.f32.mrb[0].mxu0
        %v813 = vpop.f32.mrb[0].mxu0
        %v814 = vadd.f32 0.0, %v813
        %v815 = vpop.f32.mrb[0].mxu0
        %816 = vmatprep.mubr.bf16.mxu0 %v774
        %817 = vmatmul.mubr.bf16.gmra.mrb[0].mxu0 %v766
        %v818 = vpop.f32.mrb[0].mxu0
        %v819 = vadd.f32 0.0, %v818
        %v820 = vpop.f32.mrb[0].mxu0
        %v821 = vpop.f32.mrb[0].mxu0
        %v822 = vadd.f32 0.0, %v821
        %v823 = vpop.f32.mrb[0].mxu0
        %824 = vdwg.mxu0
        %v825 = vmax.f32 %v734, %v811
        %v826 = vmax.f32 %v737, %v814
        %v827 = vmax.f32 %v742, %v819
        %v828 = vmax.f32 %v745, %v822
        %v829 = vmax.f32 %v667, %v825
        %v830 = vmax.f32 %v668, %v826
        %v831 = vmax.f32 %v669, %v827
        %v832 = vmax.f32 %v670, %v828
        %v833 = vld [vmem:[%s5] sm:$0x1]
        %v835 = vlaneseq
        %v836 = vshrl.u32 %v835, 7
        %v837 = vsub.s32 0, %v836
        %v838 = vrot.slane %v833, %v837
        %v840 = vadd.f32 %v829, %v838
        %v841 = vadd.f32 %v830, %v838
        %v842 = vadd.f32 %v831, %v838
        %v843 = vadd.f32 %v832, %v838
        %v844 = vmax.f32 %v840, 0.0
        %v845 = vmax.f32 %v841, 0.0
        %v846 = vmax.f32 %v842, 0.0
        %v847 = vmax.f32 %v843, 0.0
        %v848 = vpack.c.bf16 %v845, %v844
        %v849 = vpack.c.bf16 %v847, %v846
        %v852 = vunpack.c.l.b16 %v848
        %v853 = vunpack.c.h.b16 %v848
        %v854 = vunpack.c.l.b16 %v849
        %v855 = vunpack.c.h.b16 %v849
        %v856 = vpack.c.b16 %v852, %v852
        %v857 = vpack.c.b16 %v853, %v853
        %v858 = vpack.c.b16 %v854, %v854
        %v859 = vpack.c.b16 %v855, %v855
        %864 = vst [vmem:[%s357] sm:$0xf] %v856
        %865 = vst [vmem:[%s357 + $0x4] sm:$0xf] %v857
        %866 = vst [vmem:[%s357 + $0x8] sm:$0xf] %v858
        %867 = vst [vmem:[%s357 + $0xc] sm:$0xf] %v859
        %s868 = sand.u32 %s171, 1
        %s869 = sand.u32 %s171, 1
        %s870 = smul.addr %s869, 16
        %s871 = scalar_lea.vmem [#allocation2], %s870
        // Predicated region
        $region45: #{net_forward.4} parent=43 // pred_check
          %p872 = pneg %p181
        $region46: #{net_forward.4} parent=43 // pred_check_branch
          %874 = sbr.rel (%p872) target = $region48
        $region47: #{net_forward.4} parent=43 // pred_region
          %s875 = smul.u32 4, %s17
          %s876 = ssub.s32 7, %s875
          %p877 = scmp.lt.s32.totalorder %s876, 4
          %s878 = scalar_select %p877, %s876, 4
          %s879 = smul.u32 64, %s878
          %p880 = scmp.ne.s32.totalorder 0, %s879
          %s881 = smul.addr %s875, 4
          %s882 = scalar_lea.vmem %s6, %s881
          // Predicated region
          $region49: #{net_forward.4} parent=47 // pred_check
            %p883 = pneg %p880
          $region50: #{net_forward.4} parent=47 // pred_check_branch
            %885 = sbr.rel (%p883) target = $region52
          $region51: #{net_forward.4} parent=47 // pred_region
            // Predicated region
            $region53: #{net_forward.4} parent=51 // pred_check
              _
            $region54: #{net_forward.4} parent=51 // pred_check_branch
              %887 = sbr.rel target = $region56
            $region55: #{net_forward.4} parent=51 // pred_region
              // Predicated region
              $region75: #{net_forward.4} parent=55 // pred_check
                _
              $region76: #{net_forward.4} parent=55 // pred_check_branch
                %942 = sbr.rel (0) target = $region78
              $region77: #{net_forward.4} parent=55 // pred_region
                %s944 = sshrl.u32 %s878, 2
                // While loop
                $region79: #{net_forward.4} parent=77 // loop_pre_header
                  _
                $region80: #{net_forward.4} parent=77 // loop_header
                  %s946 = sphi 0, %s948
                  %p947 = scmp.ge.s32.totalorder %s946, %s944
                  %s951 = sphi 0, %s964
                  %s952 = sphi %s871, %s967
                  %s953 = sphi %s882, %s968
                $region81: #{net_forward.4} parent=77 // loop_header_branch
                  %950 = sbr.rel (%p947) target = $region85
                $region82: #{net_forward.4} parent=77 // loop_body
                  %v954 = vld [vmem:[%s952] sm:$0xf]
                  %955 = vst [vmem:[%s953] sm:$0xf] %v954
                  %v956 = vld [vmem:[%s952 + $0x4] sm:$0xf]
                  %957 = vst [vmem:[%s953 + $0x4] sm:$0xf] %v956
                  %v958 = vld [vmem:[%s952 + $0x8] sm:$0xf]
                  %959 = vst [vmem:[%s953 + $0x8] sm:$0xf] %v958
                  %v960 = vld [vmem:[%s952 + $0xc] sm:$0xf]
                  %961 = vst [vmem:[%s953 + $0xc] sm:$0xf] %v960
                  %s962 = sadd.s32 1, %s951
                  %p963 = scmp.ge.s32.totalorder %s962, %s944
                  %s964 = scalar_select %p963, 0, %s962
                  %s965 = smul.u32 %s964, 16
                  %s966 = smul.u32 %s964, 16
                  %s967 = scalar_lea.vmem %s871, %s965 [#allocation2]
                  %s968 = scalar_lea.vmem %s882, %s966
                $region83: #{net_forward.4} parent=77 // loop_footer
                  %s948 = sadd.s32 %s946, 1
                $region84: #{net_forward.4} parent=77 // loop_footer_branch
                  %945 = sbr.rel target = $region80
                $region85: #{net_forward.4} parent=77 // loop_exit
                  _
                %s969 = sshrl.u32 %s878, 2
                %s970 = sand.u32 %s878, 3
                %s971 = smul.u32 %s969, 4
                %s972 = smul.u32 4, %s971
                %s973 = scalar_lea.vmem %s871, %s972 [#allocation2]
                %s974 = smul.u32 4, %s971
                %s975 = scalar_lea.vmem %s882, %s974
                // While loop
                $region86: #{net_forward.4} parent=77 // loop_pre_header
                  _
                $region87: #{net_forward.4} parent=77 // loop_header
                  %s977 = sphi 0, %s979
                  %p978 = scmp.ge.s32.totalorder %s977, %s970
                  %s982 = sphi 0, %s989
                  %s983 = sphi %s973, %s992
                  %s984 = sphi %s975, %s993
                $region88: #{net_forward.4} parent=77 // loop_header_branch
                  %981 = sbr.rel (%p978) target = $region92
                $region89: #{net_forward.4} parent=77 // loop_body
                  %v985 = vld [vmem:[%s983] sm:$0xf]
                  %986 = vst [vmem:[%s984] sm:$0xf] %v985
                  %s987 = sadd.s32 1, %s982
                  %p988 = scmp.ge.s32.totalorder %s987, %s970
                  %s989 = scalar_select %p988, 0, %s987
                  %s990 = smul.u32 %s989, 4
                  %s991 = smul.u32 %s989, 4
                  %s992 = scalar_lea.vmem %s973, %s990 [#allocation2]
                  %s993 = scalar_lea.vmem %s975, %s991
                $region90: #{net_forward.4} parent=77 // loop_footer
                  %s979 = sadd.s32 %s977, 1
                $region91: #{net_forward.4} parent=77 // loop_footer_branch
                  %976 = sbr.rel target = $region87
                $region92: #{net_forward.4} parent=77 // loop_exit
                  _
              $region78: #{net_forward.4} parent=55 // pred_fallthru
                _
            $region56: #{net_forward.4} parent=51 // pred_fallthru
              _
            // Predicated region
            $region57: #{net_forward.4} parent=51 // pred_check
              _
            $region58: #{net_forward.4} parent=51 // pred_check_branch
              %889 = sbr.rel (0) target = $region60
            $region59: #{net_forward.4} parent=51 // pred_region
              %s891 = sshrl.u32 %s878, 2
              // While loop
              $region61: #{net_forward.4} parent=59 // loop_pre_header
                _
              $region62: #{net_forward.4} parent=59 // loop_header
                %s893 = sphi 0, %s895
                %p894 = scmp.ge.s32.totalorder %s893, %s891
                %s898 = sphi 0, %s911
                %s899 = sphi %s871, %s914
                %s900 = sphi %s882, %s915
              $region63: #{net_forward.4} parent=59 // loop_header_branch
                %897 = sbr.rel (%p894) target = $region67
              $region64: #{net_forward.4} parent=59 // loop_body
                %v901 = vld [vmem:[%s899] sm:$0xf]
                %902 = vst [vmem:[%s900] sm:$0xf] %v901
                %v903 = vld [vmem:[%s899 + $0x4] sm:$0xf]
                %904 = vst [vmem:[%s900 + $0x4] sm:$0xf] %v903
                %v905 = vld [vmem:[%s899 + $0x8] sm:$0xf]
                %906 = vst [vmem:[%s900 + $0x8] sm:$0xf] %v905
                %v907 = vld [vmem:[%s899 + $0xc] sm:$0xf]
                %908 = vst [vmem:[%s900 + $0xc] sm:$0xf] %v907
                %s909 = sadd.s32 1, %s898
                %p910 = scmp.ge.s32.totalorder %s909, %s891
                %s911 = scalar_select %p910, 0, %s909
                %s912 = smul.u32 %s911, 16
                %s913 = smul.u32 %s911, 16
                %s914 = scalar_lea.vmem %s871, %s912 [#allocation2]
                %s915 = scalar_lea.vmem %s882, %s913
              $region65: #{net_forward.4} parent=59 // loop_footer
                %s895 = sadd.s32 %s893, 1
              $region66: #{net_forward.4} parent=59 // loop_footer_branch
                %892 = sbr.rel target = $region62
              $region67: #{net_forward.4} parent=59 // loop_exit
                _
              %s916 = sshrl.u32 %s878, 2
              %s917 = sand.u32 %s878, 3
              %s918 = smul.u32 %s916, 4
              %s919 = smul.u32 4, %s918
              %s920 = scalar_lea.vmem %s871, %s919 [#allocation2]
              %s921 = smul.u32 4, %s918
              %s922 = scalar_lea.vmem %s882, %s921
              // While loop
              $region68: #{net_forward.4} parent=59 // loop_pre_header
                _
              $region69: #{net_forward.4} parent=59 // loop_header
                %s924 = sphi 0, %s926
                %p925 = scmp.ge.s32.totalorder %s924, %s917
                %s929 = sphi 0, %s936
                %s930 = sphi %s920, %s939
                %s931 = sphi %s922, %s940
              $region70: #{net_forward.4} parent=59 // loop_header_branch
                %928 = sbr.rel (%p925) target = $region74
              $region71: #{net_forward.4} parent=59 // loop_body
                %v932 = vld [vmem:[%s930] sm:$0xf]
                %933 = vst [vmem:[%s931] sm:$0xf] %v932
                %s934 = sadd.s32 1, %s929
                %p935 = scmp.ge.s32.totalorder %s934, %s917
                %s936 = scalar_select %p935, 0, %s934
                %s937 = smul.u32 %s936, 4
                %s938 = smul.u32 %s936, 4
                %s939 = scalar_lea.vmem %s920, %s937 [#allocation2]
                %s940 = scalar_lea.vmem %s922, %s938
              $region72: #{net_forward.4} parent=59 // loop_footer
                %s926 = sadd.s32 %s924, 1
              $region73: #{net_forward.4} parent=59 // loop_footer_branch
                %923 = sbr.rel target = $region69
              $region74: #{net_forward.4} parent=59 // loop_exit
                _
            $region60: #{net_forward.4} parent=51 // pred_fallthru
              _
          $region52: #{net_forward.4} parent=47 // pred_fallthru
            _
          %994 = vnop
        $region48: #{net_forward.4} parent=43 // pred_fallthru
          _
      $region44: #{net_forward.4} parent=5 // pred_fallthru
        _
      %p995 = scmp.le.s32.totalorder 2, %s12
      // Predicated region
      $region93: #{net_forward.4} parent=5 // pred_check
        %p996 = pneg %p995
      $region94: #{net_forward.4} parent=5 // pred_check_branch
        %998 = sbr.rel (%p996) target = $region96
      $region95: #{net_forward.4} parent=5 // pred_region
        %s999 = ssub.s32 %s12, 2
        // Predicated region
        $region97: #{net_forward.4} parent=95 // pred_check
          %p1000 = pneg %p187
        $region98: #{net_forward.4} parent=95 // pred_check_branch
          %1002 = sbr.rel (%p1000) target = $region100
        $region99: #{net_forward.4} parent=95 // pred_region
          %s1003 = sand.u32 %s172, 1
          %s1004 = sand.u32 %s172, 1
          %s1005 = smul.addr %s1004, 16
          %s1006 = scalar_lea.vmem [#allocation2], %s1005
        $region100: #{net_forward.4} parent=95 // pred_fallthru
          _
      $region96: #{net_forward.4} parent=5 // pred_fallthru
        _
    $region6: #{net_forward.4} parent=1 // loop_footer
      %s16 = sadd.s32 1, %s12
    $region7: #{net_forward.4} parent=1 // loop_footer_branch
      %11 = sbr.rel target = $region3
    $region8: #{net_forward.4} parent=1 // loop_exit
      _

// kernel: net_forward.5
$region0: #{net_forward.5}
  #allocation0 [shape = 'u32[]', space=smem, size = 0x4, offset = 0x4, fixed_abs, tag = 'smem constant byte address 0x4 - core index']
  #allocation1 [shape = 'u32[144,128]{1,0:T(1,128)}', space=vmem, size = 0x12000, scoped, tag = 'internal scratch']
  %s0 = inlined_call_operand.vmem [shape: bf16[2,400], index: 0, kind: input, shape index: {}]
  %s1 = inlined_call_operand.vmem [shape: bf16[400,128], index: 1, kind: input, shape index: {}]
  %s2 = inlined_call_operand.vmem [shape: f32[1,128], index: 2, kind: input, shape index: {}]
  %s3 = inlined_call_operand.vmem [shape: bf16[128,128], index: 3, kind: input, shape index: {}]
  %s4 = inlined_call_operand.vmem [shape: f32[1,128], index: 4, kind: input, shape index: {}]
  %s5 = inlined_call_operand.vmem [shape: bf16[128,128], index: 5, kind: input, shape index: {}]
  %s6 = inlined_call_operand.vmem [shape: f32[1,128], index: 6, kind: input, shape index: {}]
  %s7 = inlined_call_operand.hbm [shape: f32[2,128], index: 7, kind: output, shape index: {}]
  %s8 = sld [smem:[#allocation0]]
  $region38: #{net_forward.5} parent=0
    _
  %s10 = ssub.s32 1, %s8
  %s11 = scalar_select 0, %s10, %s8
  $region1: #{net_forward.5} parent=0
    #allocation2 [shape = 'u8[1024]{0}', space=vmem, size = 0x400, scoped, tag = 'output window, operand 0, single buffered']
    #allocation3 [shape = 's32[1]{0}', space=sflag, size = 0x4, scoped, tag = 'scoped memory for net_forward.5']
    %12 = vsyncpa [#allocation3], 0
    // Predicated region
    $region2: #{net_forward.5} parent=1 // pred_check
      _
    $region3: #{net_forward.5} parent=1 // pred_check_branch
      %14 = sbr.rel (0) target = $region5
    $region4: #{net_forward.5} parent=1 // pred_region
      _
    $region5: #{net_forward.5} parent=1 // pred_fallthru
      _
    // Predicated region
    $region6: #{net_forward.5} parent=1 // pred_check
      _
    $region7: #{net_forward.5} parent=1 // pred_check_branch
      %16 = sbr.rel (0) target = $region9
    $region8: #{net_forward.5} parent=1 // pred_region
      _
    $region9: #{net_forward.5} parent=1 // pred_fallthru
      _
    // Predicated region
    $region10: #{net_forward.5} parent=1 // pred_check
      _
    $region11: #{net_forward.5} parent=1 // pred_check_branch
      %18 = sbr.rel (0) target = $region13
    $region12: #{net_forward.5} parent=1 // pred_region
      _
    $region13: #{net_forward.5} parent=1 // pred_fallthru
      _
    // Predicated region
    $region14: #{net_forward.5} parent=1 // pred_check
      _
    $region15: #{net_forward.5} parent=1 // pred_check_branch
      %20 = sbr.rel (0) target = $region17
    $region16: #{net_forward.5} parent=1 // pred_region
      _
    $region17: #{net_forward.5} parent=1 // pred_fallthru
      _
    // Predicated region
    $region18: #{net_forward.5} parent=1 // pred_check
      _
    $region19: #{net_forward.5} parent=1 // pred_check_branch
      %22 = sbr.rel (0) target = $region21
    $region20: #{net_forward.5} parent=1 // pred_region
      _
    $region21: #{net_forward.5} parent=1 // pred_fallthru
      _
    // Predicated region
    $region22: #{net_forward.5} parent=1 // pred_check
      _
    $region23: #{net_forward.5} parent=1 // pred_check_branch
      %24 = sbr.rel (0) target = $region25
    $region24: #{net_forward.5} parent=1 // pred_region
      _
    $region25: #{net_forward.5} parent=1 // pred_fallthru
      _
    // Predicated region
    $region26: #{net_forward.5} parent=1 // pred_check
      _
    $region27: #{net_forward.5} parent=1 // pred_check_branch
      %26 = sbr.rel (0) target = $region29
    $region28: #{net_forward.5} parent=1 // pred_region
      _
    $region29: #{net_forward.5} parent=1 // pred_fallthru
      _
    %v28 = vld [vmem:[%s0] sm:$0xf]
    %v29 = vld [vmem:[%s1] sm:$0xf]
    %v30 = vld [vmem:[%s1 + $0x4] sm:$0xf]
    %v31 = vld [vmem:[%s1 + $0x8] sm:$0xf]
    %v32 = vld [vmem:[%s1 + $0xc] sm:$0xf]
    %v33 = vld [vmem:[%s1 + $0x10] sm:$0xf]
    %v34 = vld [vmem:[%s1 + $0x14] sm:$0xf]
    %v35 = vld [vmem:[%s1 + $0x18] sm:$0xf]
    %v36 = vld [vmem:[%s1 + $0x1c] sm:$0xf]
    %v37 = vld [vmem:[%s1 + $0x20] sm:$0xf]
    %v38 = vld [vmem:[%s1 + $0x24] sm:$0xf]
    %v39 = vld [vmem:[%s1 + $0x28] sm:$0xf]
    %v40 = vld [vmem:[%s1 + $0x2c] sm:$0xf]
    %v41 = vld [vmem:[%s1 + $0x30] sm:$0xf]
    %v42 = vld [vmem:[%s1 + $0x34] sm:$0xf]
    %v43 = vld [vmem:[%s1 + $0x38] sm:$0xf]
    %v44 = vld [vmem:[%s1 + $0x3c] sm:$0xf]
    %v45 = vld [vmem:[%s1 + $0x40] sm:$0xf]
    %v46 = vld [vmem:[%s1 + $0x44] sm:$0xf]
    %v47 = vld [vmem:[%s1 + $0x48] sm:$0xf]
    %v48 = vld [vmem:[%s1 + $0x4c] sm:$0xf]
    %v49 = vld [vmem:[%s1 + $0x50] sm:$0xf]
    %v50 = vld [vmem:[%s1 + $0x54] sm:$0xf]
    %v51 = vld [vmem:[%s1 + $0x58] sm:$0xf]
    %v52 = vld [vmem:[%s1 + $0x5c] sm:$0xf]
    %v53 = vld [vmem:[%s1 + $0x60] sm:$0xf]
    %v54 = vld [vmem:[%s1 + $0x64] sm:$0xf]
    %v55 = vld [vmem:[%s1 + $0x68] sm:$0xf]
    %v56 = vld [vmem:[%s1 + $0x6c] sm:$0xf]
    %v57 = vld [vmem:[%s1 + $0x70] sm:$0xf]
    %v58 = vld [vmem:[%s1 + $0x74] sm:$0xf]
    %v59 = vld [vmem:[%s1 + $0x78] sm:$0xf]
    %v60 = vld [vmem:[%s1 + $0x7c] sm:$0xf]
    %v61 = vld [vmem:[%s1 + $0x80] sm:$0xf]
    %v62 = vld [vmem:[%s1 + $0x84] sm:$0xf]
    %v63 = vld [vmem:[%s1 + $0x88] sm:$0xf]
    %v64 = vld [vmem:[%s1 + $0x8c] sm:$0xf]
    %v65 = vld [vmem:[%s1 + $0x90] sm:$0xf]
    %v66 = vld [vmem:[%s1 + $0x94] sm:$0xf]
    %v67 = vld [vmem:[%s1 + $0x98] sm:$0xf]
    %v68 = vld [vmem:[%s1 + $0x9c] sm:$0xf]
    %v69 = vld [vmem:[%s1 + $0xa0] sm:$0xf]
    %v70 = vld [vmem:[%s1 + $0xa4] sm:$0xf]
    %v71 = vld [vmem:[%s1 + $0xa8] sm:$0xf]
    %v72 = vld [vmem:[%s1 + $0xac] sm:$0xf]
    %v73 = vld [vmem:[%s1 + $0xb0] sm:$0xf]
    %v74 = vld [vmem:[%s1 + $0xb4] sm:$0xf]
    %v75 = vld [vmem:[%s1 + $0xb8] sm:$0xf]
    %v76 = vld [vmem:[%s1 + $0xbc] sm:$0xf]
    %v77 = vld [vmem:[%s1 + $0xc0] sm:$0xf]
    %v78 = vld [vmem:[%s1 + $0xc4] sm:$0xf]
    %v79 = vld [vmem:[%s2] sm:$0x1]
    %v81 = vlaneseq
    %v82 = vshrl.u32 %v81, 7
    %v83 = vsub.s32 0, %v82
    %v84 = vrot.slane %v79, %v83
    %v88 = vunpack.c.l.s4 1966171168
    %v89 = vunpack.c.0.s8 %v88
    %v90 = vlaneseq
    %v91 = vshrl.u32 %v90, 7
    %v92 = vsub.s32 %v89, %v91
    %v93 = vrot.slane %v28, %v92
    %v94 = vcombine.high %v93, %v93
    %v96 = vunpack.c.l.s4 1966171168
    %v97 = vunpack.c.0.s8 %v96
    %v98 = vlaneseq
    %v99 = vshrl.u32 %v98, 7
    %v100 = vsub.s32 %v97, %v99
    %v101 = vrot.slane %v93, %v100
    %v103 = vunpack.c.l.s4 1966171168
    %v104 = vunpack.c.0.s8 %v103
    %v105 = vlaneseq
    %v106 = vshrl.u32 %v105, 7
    %v107 = vsub.s32 %v104, %v106
    %v108 = vrot.slane %v94, %v107
    %v109 = vcombine.high %v101, %v101
    %v110 = vcombine.high %v108, %v108
    %v164 = vunpack.c.l.b16 %v29
    %v165 = vunpack.c.l.b16 %v30
    %v166 = vunpack.c.l.b16 %v31
    %v167 = vunpack.c.l.b16 %v32
    %v168 = vunpack.c.l.b16 %v33
    %v169 = vunpack.c.l.b16 %v34
    %v170 = vunpack.c.l.b16 %v35
    %v171 = vunpack.c.l.b16 %v36
    %v172 = vunpack.c.l.b16 %v37
    %v173 = vunpack.c.l.b16 %v38
    %v174 = vunpack.c.l.b16 %v39
    %v175 = vunpack.c.l.b16 %v40
    %v176 = vunpack.c.l.b16 %v41
    %v177 = vunpack.c.l.b16 %v42
    %v178 = vunpack.c.l.b16 %v43
    %v179 = vunpack.c.l.b16 %v44
    %v180 = vunpack.c.l.b16 %v45
    %v181 = vunpack.c.l.b16 %v46
    %v182 = vunpack.c.l.b16 %v47
    %v183 = vunpack.c.l.b16 %v48
    %v184 = vunpack.c.l.b16 %v49
    %v185 = vunpack.c.l.b16 %v50
    %v186 = vunpack.c.l.b16 %v51
    %v187 = vunpack.c.l.b16 %v52
    %v188 = vunpack.c.l.b16 %v53
    %v189 = vunpack.c.l.b16 %v54
    %v190 = vunpack.c.l.b16 %v55
    %v191 = vunpack.c.l.b16 %v56
    %v192 = vunpack.c.l.b16 %v57
    %v193 = vunpack.c.l.b16 %v58
    %v194 = vunpack.c.l.b16 %v59
    %v195 = vunpack.c.l.b16 %v60
    %v196 = vunpack.c.l.b16 %v61
    %v197 = vunpack.c.l.b16 %v62
    %v198 = vunpack.c.l.b16 %v63
    %v199 = vunpack.c.l.b16 %v64
    %v200 = vunpack.c.l.b16 %v65
    %v201 = vunpack.c.l.b16 %v66
    %v202 = vunpack.c.l.b16 %v67
    %v203 = vunpack.c.l.b16 %v68
    %v204 = vunpack.c.l.b16 %v69
    %v205 = vunpack.c.l.b16 %v70
    %v206 = vunpack.c.l.b16 %v71
    %v207 = vunpack.c.l.b16 %v72
    %v208 = vunpack.c.l.b16 %v73
    %v209 = vunpack.c.l.b16 %v74
    %v210 = vunpack.c.l.b16 %v75
    %v211 = vunpack.c.l.b16 %v76
    %v212 = vunpack.c.l.b16 %v77
    %v213 = vunpack.c.l.b16 %v78
    %v214 = vpack.c.b16 %v165, %v164
    %v215 = vpack.c.b16 %v167, %v166
    %v216 = vpack.c.b16 %v169, %v168
    %v217 = vpack.c.b16 %v171, %v170
    %v218 = vpack.c.b16 %v173, %v172
    %v219 = vpack.c.b16 %v175, %v174
    %v220 = vpack.c.b16 %v177, %v176
    %v221 = vpack.c.b16 %v179, %v178
    %v222 = vpack.c.b16 %v181, %v180
    %v223 = vpack.c.b16 %v183, %v182
    %v224 = vpack.c.b16 %v185, %v184
    %v225 = vpack.c.b16 %v187, %v186
    %v226 = vpack.c.b16 %v189, %v188
    %v227 = vpack.c.b16 %v191, %v190
    %v228 = vpack.c.b16 %v193, %v192
    %v229 = vpack.c.b16 %v195, %v194
    %v230 = vpack.c.b16 %v197, %v196
    %v231 = vpack.c.b16 %v199, %v198
    %v232 = vpack.c.b16 %v201, %v200
    %v233 = vpack.c.b16 %v203, %v202
    %v234 = vpack.c.b16 %v205, %v204
    %v235 = vpack.c.b16 %v207, %v206
    %v236 = vpack.c.b16 %v209, %v208
    %v237 = vpack.c.b16 %v211, %v210
    %v238 = vpack.c.b16 %v213, %v212
    %vm264 = vcmask 130048
    %v266 = vsel %vm264, %v110, 0
    %268 = vmatprep.subr.bf16.mxu0 0
    %269 = vmatpush1.bf16.msra.mxu0 %v214
    %270 = vmatprep.subr.bf16.mxu0 0
    %271 = vmatpush1.bf16.msra.mxu0 %v215
    %272 = vmatprep.subr.bf16.mxu0 0
    %273 = vmatpush1.bf16.msra.mxu0 %v216
    %274 = vmatprep.subr.bf16.mxu0 0
    %275 = vmatpush1.bf16.msra.mxu0 %v217
    %276 = vmatprep.subr.bf16.mxu0 0
    %277 = vmatpush1.bf16.msra.mxu0 %v218
    %278 = vmatprep.subr.bf16.mxu0 0
    %279 = vmatpush1.bf16.msra.mxu0 %v219
    %280 = vmatprep.subr.bf16.mxu0 0
    %281 = vmatpush1.bf16.msra.mxu0 %v220
    %282 = vmatprep.subr.bf16.mxu0 0
    %283 = vmatpush1.bf16.msra.mxu0 %v221
    %284 = vmatprep.subr.bf16.mxu0 0
    %285 = vmatpush1.bf16.msra.mxu0 %v222
    %286 = vmatprep.subr.bf16.mxu0 0
    %287 = vmatpush1.bf16.msra.mxu0 %v223
    %288 = vmatprep.subr.bf16.mxu0 0
    %289 = vmatpush1.bf16.msra.mxu0 %v224
    %290 = vmatprep.subr.bf16.mxu0 0
    %291 = vmatpush1.bf16.msra.mxu0 %v225
    %292 = vmatprep.subr.bf16.mxu0 0
    %293 = vmatpush1.bf16.msra.mxu0 %v226
    %294 = vmatprep.subr.bf16.mxu0 0
    %295 = vmatpush1.bf16.msra.mxu0 %v227
    %296 = vmatprep.subr.bf16.mxu0 0
    %297 = vmatpush1.bf16.msra.mxu0 %v228
    %298 = vmatprep.subr.bf16.mxu0 0
    %299 = vmatpush1.bf16.msra.mxu0 %v229
    %300 = vmatprep.mubr.bf16.mxu0 %v108
    %301 = vmatmul.mubr.bf16.gmra.mrb[0].mxu0 %v101
    %v302 = vpop.f32.mrb[0].mxu0
    %v303 = vadd.f32 %v84, %v302
    %v304 = vpop.f32.mrb[0].mxu0
    %v305 = vpop.f32.mrb[0].mxu0
    %v306 = vpop.f32.mrb[0].mxu0
    %307 = vdwg.mxu0
    %308 = vmatprep.subr.bf16.mxu0 0
    %309 = vmatpush1.bf16.msra.mxu0 %v230
    %310 = vmatprep.subr.bf16.mxu0 0
    %311 = vmatpush1.bf16.msra.mxu0 %v231
    %312 = vmatprep.subr.bf16.mxu0 0
    %313 = vmatpush1.bf16.msra.mxu0 %v232
    %314 = vmatprep.subr.bf16.mxu0 0
    %315 = vmatpush1.bf16.msra.mxu0 %v233
    %316 = vmatprep.subr.bf16.mxu0 0
    %317 = vmatpush1.bf16.msra.mxu0 %v234
    %318 = vmatprep.subr.bf16.mxu0 0
    %319 = vmatpush1.bf16.msra.mxu0 %v235
    %320 = vmatprep.subr.bf16.mxu0 0
    %321 = vmatpush1.bf16.msra.mxu0 %v236
    %322 = vmatprep.subr.bf16.mxu0 0
    %323 = vmatpush1.bf16.msra.mxu0 %v237
    %324 = vmatprep.subr.bf16.mxu0 0
    %325 = vmatpush1.bf16.msra.mxu0 %v238
    %326 = vmatprep.subr.bf16.mxu0 0
    %327 = vmatpush1.bf16.msra.mxu0 0
    %328 = vmatprep.subr.bf16.mxu0 0
    %329 = vmatpush1.bf16.msra.mxu0 0
    %330 = vmatprep.subr.bf16.mxu0 0
    %331 = vmatpush1.bf16.msra.mxu0 0
    %332 = vmatprep.subr.bf16.mxu0 0
    %333 = vmatpush1.bf16.msra.mxu0 0
    %334 = vmatprep.subr.bf16.mxu0 0
    %335 = vmatpush1.bf16.msra.mxu0 0
    %336 = vmatprep.subr.bf16.mxu0 0
    %337 = vmatpush1.bf16.msra.mxu0 0
    %338 = vmatprep.subr.bf16.mxu0 0
    %339 = vmatpush1.bf16.msra.mxu0 0
    %340 = vmatprep.mubr.bf16.mxu0 %v266
    %341 = vmatmul.mubr.bf16.gmra.mrb[0].mxu0 %v109
    %v342 = vpop.f32.mrb[0].mxu0
    %v343 = vadd.f32 %v303, %v342
    %v344 = vpop.f32.mrb[0].mxu0
    %v345 = vpop.f32.mrb[0].mxu0
    %v346 = vpop.f32.mrb[0].mxu0
    %347 = vdwg.mxu0
    %v348 = vmax.f32 %v343, 0.0
    %v349 = vpack.c.bf16 %v348, %v348
    %v350 = vld [vmem:[%s3] sm:$0xf]
    %v351 = vld [vmem:[%s3 + $0x4] sm:$0xf]
    %v352 = vld [vmem:[%s3 + $0x8] sm:$0xf]
    %v353 = vld [vmem:[%s3 + $0xc] sm:$0xf]
    %v354 = vld [vmem:[%s3 + $0x10] sm:$0xf]
    %v355 = vld [vmem:[%s3 + $0x14] sm:$0xf]
    %v356 = vld [vmem:[%s3 + $0x18] sm:$0xf]
    %v357 = vld [vmem:[%s3 + $0x1c] sm:$0xf]
    %v358 = vld [vmem:[%s3 + $0x20] sm:$0xf]
    %v359 = vld [vmem:[%s3 + $0x24] sm:$0xf]
    %v360 = vld [vmem:[%s3 + $0x28] sm:$0xf]
    %v361 = vld [vmem:[%s3 + $0x2c] sm:$0xf]
    %v362 = vld [vmem:[%s3 + $0x30] sm:$0xf]
    %v363 = vld [vmem:[%s3 + $0x34] sm:$0xf]
    %v364 = vld [vmem:[%s3 + $0x38] sm:$0xf]
    %v365 = vld [vmem:[%s3 + $0x3c] sm:$0xf]
    %v366 = vld [vmem:[%s4] sm:$0x1]
    %v368 = vlaneseq
    %v369 = vshrl.u32 %v368, 7
    %v370 = vsub.s32 0, %v369
    %v371 = vrot.slane %v366, %v370
    %v389 = vunpack.c.l.b16 %v350
    %v390 = vunpack.c.l.b16 %v351
    %v391 = vunpack.c.l.b16 %v352
    %v392 = vunpack.c.l.b16 %v353
    %v393 = vunpack.c.l.b16 %v354
    %v394 = vunpack.c.l.b16 %v355
    %v395 = vunpack.c.l.b16 %v356
    %v396 = vunpack.c.l.b16 %v357
    %v397 = vunpack.c.l.b16 %v358
    %v398 = vunpack.c.l.b16 %v359
    %v399 = vunpack.c.l.b16 %v360
    %v400 = vunpack.c.l.b16 %v361
    %v401 = vunpack.c.l.b16 %v362
    %v402 = vunpack.c.l.b16 %v363
    %v403 = vunpack.c.l.b16 %v364
    %v404 = vunpack.c.l.b16 %v365
    %v405 = vpack.c.b16 %v390, %v389
    %v406 = vpack.c.b16 %v392, %v391
    %v407 = vpack.c.b16 %v394, %v393
    %v408 = vpack.c.b16 %v396, %v395
    %v409 = vpack.c.b16 %v398, %v397
    %v410 = vpack.c.b16 %v400, %v399
    %v411 = vpack.c.b16 %v402, %v401
    %v412 = vpack.c.b16 %v404, %v403
    %421 = vmatprep.subr.bf16.mxu0 0
    %422 = vmatpush1.bf16.msra.mxu0 %v405
    %423 = vmatprep.subr.bf16.mxu0 0
    %424 = vmatpush1.bf16.msra.mxu0 %v406
    %425 = vmatprep.subr.bf16.mxu0 0
    %426 = vmatpush1.bf16.msra.mxu0 %v407
    %427 = vmatprep.subr.bf16.mxu0 0
    %428 = vmatpush1.bf16.msra.mxu0 %v408
    %429 = vmatprep.subr.bf16.mxu0 0
    %430 = vmatpush1.bf16.msra.mxu0 %v409
    %431 = vmatprep.subr.bf16.mxu0 0
    %432 = vmatpush1.bf16.msra.mxu0 %v410
    %433 = vmatprep.subr.bf16.mxu0 0
    %434 = vmatpush1.bf16.msra.mxu0 %v411
    %435 = vmatprep.subr.bf16.mxu0 0
    %436 = vmatpush1.bf16.msra.mxu0 %v412
    %437 = vmatprep.subr.bf16.mxu0 0
    %438 = vmatpush1.bf16.msra.mxu0 0
    %439 = vmatprep.subr.bf16.mxu0 0
    %440 = vmatpush1.bf16.msra.mxu0 0
    %441 = vmatprep.subr.bf16.mxu0 0
    %442 = vmatpush1.bf16.msra.mxu0 0
    %443 = vmatprep.subr.bf16.mxu0 0
    %444 = vmatpush1.bf16.msra.mxu0 0
    %445 = vmatprep.subr.bf16.mxu0 0
    %446 = vmatpush1.bf16.msra.mxu0 0
    %447 = vmatprep.subr.bf16.mxu0 0
    %448 = vmatpush1.bf16.msra.mxu0 0
    %449 = vmatprep.subr.bf16.mxu0 0
    %450 = vmatpush1.bf16.msra.mxu0 0
    %451 = vmatprep.subr.bf16.mxu0 0
    %452 = vmatpush1.bf16.msra.mxu0 0
    %453 = vmatprep.mubr.bf16.mxu0 0
    %454 = vmatmul.mubr.bf16.gmra.mrb[0].mxu0 %v349
    %v455 = vpop.f32.mrb[0].mxu0
    %v456 = vadd.f32 %v371, %v455
    %v457 = vpop.f32.mrb[0].mxu0
    %v458 = vpop.f32.mrb[0].mxu0
    %v459 = vpop.f32.mrb[0].mxu0
    %460 = vdwg.mxu0
    %v461 = vmax.f32 %v456, 0.0
    %v462 = vpack.c.bf16 %v461, %v461
    %v463 = vld [vmem:[%s5] sm:$0xf]
    %v464 = vld [vmem:[%s5 + $0x4] sm:$0xf]
    %v465 = vld [vmem:[%s5 + $0x8] sm:$0xf]
    %v466 = vld [vmem:[%s5 + $0xc] sm:$0xf]
    %v467 = vld [vmem:[%s5 + $0x10] sm:$0xf]
    %v468 = vld [vmem:[%s5 + $0x14] sm:$0xf]
    %v469 = vld [vmem:[%s5 + $0x18] sm:$0xf]
    %v470 = vld [vmem:[%s5 + $0x1c] sm:$0xf]
    %v471 = vld [vmem:[%s5 + $0x20] sm:$0xf]
    %v472 = vld [vmem:[%s5 + $0x24] sm:$0xf]
    %v473 = vld [vmem:[%s5 + $0x28] sm:$0xf]
    %v474 = vld [vmem:[%s5 + $0x2c] sm:$0xf]
    %v475 = vld [vmem:[%s5 + $0x30] sm:$0xf]
    %v476 = vld [vmem:[%s5 + $0x34] sm:$0xf]
    %v477 = vld [vmem:[%s5 + $0x38] sm:$0xf]
    %v478 = vld [vmem:[%s5 + $0x3c] sm:$0xf]
    %v479 = vld [vmem:[%s6] sm:$0x1]
    %v481 = vlaneseq
    %v482 = vshrl.u32 %v481, 7
    %v483 = vsub.s32 0, %v482
    %v484 = vrot.slane %v479, %v483
    %v502 = vunpack.c.l.b16 %v463
    %v503 = vunpack.c.l.b16 %v464
    %v504 = vunpack.c.l.b16 %v465
    %v505 = vunpack.c.l.b16 %v466
    %v506 = vunpack.c.l.b16 %v467
    %v507 = vunpack.c.l.b16 %v468
    %v508 = vunpack.c.l.b16 %v469
    %v509 = vunpack.c.l.b16 %v470
    %v510 = vunpack.c.l.b16 %v471
    %v511 = vunpack.c.l.b16 %v472
    %v512 = vunpack.c.l.b16 %v473
    %v513 = vunpack.c.l.b16 %v474
    %v514 = vunpack.c.l.b16 %v475
    %v515 = vunpack.c.l.b16 %v476
    %v516 = vunpack.c.l.b16 %v477
    %v517 = vunpack.c.l.b16 %v478
    %v518 = vpack.c.b16 %v503, %v502
    %v519 = vpack.c.b16 %v505, %v504
    %v520 = vpack.c.b16 %v507, %v506
    %v521 = vpack.c.b16 %v509, %v508
    %v522 = vpack.c.b16 %v511, %v510
    %v523 = vpack.c.b16 %v513, %v512
    %v524 = vpack.c.b16 %v515, %v514
    %v525 = vpack.c.b16 %v517, %v516
    %534 = vmatprep.subr.bf16.mxu0 0
    %535 = vmatpush1.bf16.msra.mxu0 %v518
    %536 = vmatprep.subr.bf16.mxu0 0
    %537 = vmatpush1.bf16.msra.mxu0 %v519
    %538 = vmatprep.subr.bf16.mxu0 0
    %539 = vmatpush1.bf16.msra.mxu0 %v520
    %540 = vmatprep.subr.bf16.mxu0 0
    %541 = vmatpush1.bf16.msra.mxu0 %v521
    %542 = vmatprep.subr.bf16.mxu0 0
    %543 = vmatpush1.bf16.msra.mxu0 %v522
    %544 = vmatprep.subr.bf16.mxu0 0
    %545 = vmatpush1.bf16.msra.mxu0 %v523
    %546 = vmatprep.subr.bf16.mxu0 0
    %547 = vmatpush1.bf16.msra.mxu0 %v524
    %548 = vmatprep.subr.bf16.mxu0 0
    %549 = vmatpush1.bf16.msra.mxu0 %v525
    %550 = vmatprep.subr.bf16.mxu0 0
    %551 = vmatpush1.bf16.msra.mxu0 0
    %552 = vmatprep.subr.bf16.mxu0 0
    %553 = vmatpush1.bf16.msra.mxu0 0
    %554 = vmatprep.subr.bf16.mxu0 0
    %555 = vmatpush1.bf16.msra.mxu0 0
    %556 = vmatprep.subr.bf16.mxu0 0
    %557 = vmatpush1.bf16.msra.mxu0 0
    %558 = vmatprep.subr.bf16.mxu0 0
    %559 = vmatpush1.bf16.msra.mxu0 0
    %560 = vmatprep.subr.bf16.mxu0 0
    %561 = vmatpush1.bf16.msra.mxu0 0
    %562 = vmatprep.subr.bf16.mxu0 0
    %563 = vmatpush1.bf16.msra.mxu0 0
    %564 = vmatprep.subr.bf16.mxu0 0
    %565 = vmatpush1.bf16.msra.mxu0 0
    %566 = vmatprep.mubr.bf16.mxu0 0
    %567 = vmatmul.mubr.bf16.gmra.mrb[0].mxu0 %v462
    %v568 = vpop.f32.mrb[0].mxu0
    %v569 = vadd.f32 %v484, %v568
    %v570 = vpop.f32.mrb[0].mxu0
    %v571 = vpop.f32.mrb[0].mxu0
    %v572 = vpop.f32.mrb[0].mxu0
    %573 = vdwg.mxu0
    %574 = vst [vmem:[#allocation2] sm:$0x3] %v569
    // Predicated region
    $region30: #{net_forward.5} parent=1 // pred_check
      _
    $region31: #{net_forward.5} parent=1 // pred_check_branch
      %576 = sbr.rel (0) target = $region33
    $region32: #{net_forward.5} parent=1 // pred_region
      %s578 = ssub.s32 32, 32
      %579 = vsyncadd [#allocation3], %s578
      %s581 = sshll.u32 [#allocation2], 4
      %s582 = int_to_ptr.vmem [resolvable:$true] %s581
      %584 = dma.vmem_to_hbm [thread:$0]  %s582, 32, %s7, [#allocation3]
    $region33: #{net_forward.5} parent=1 // pred_fallthru
      _
    // Predicated region
    $region34: #{net_forward.5} parent=1 // pred_check
      _
    $region35: #{net_forward.5} parent=1 // pred_check_branch
      %586 = sbr.rel (0) target = $region37
    $region36: #{net_forward.5} parent=1 // pred_region
      %587 = dma.done [#allocation3], 32
    $region37: #{net_forward.5} parent=1 // pred_fallthru
      _
    %588 = vsyncpa [#allocation3], 1

</llo_original>
